<compile_context>
chip_gen: v7x
topology: tpu7x:2x2x1
jax: 0.10.0
libtpu: 0.0.40
codegen_flags: <defaults>
</compile_context>

<pallas_src>
import functools

import numpy as np
import jax
import jax.numpy as jnp
from jax.experimental import pallas as pl
from jax.experimental.pallas import tpu as pltpu


def _round_up(a, b):
    return (a + b - 1) // b * b


def _make_latconv_index(H, W, ksize):
    # Synthetic latitude-dependent nearest-neighbour upsampling index (flat into H*W).
    kH, kW = ksize * H, ksize * W
    rows = np.arange(kH) // ksize                                # source row per scaled row
    lat = (rows + 0.5) / H * np.pi - np.pi / 2.0                 # pseudo-latitude
    stretch = np.maximum(np.cos(lat), 1.0 / ksize)               # latitude-dependent stretch
    cols = np.arange(kW)
    src_col = (np.floor(cols[None, :] * stretch[:, None] / ksize)).astype(np.int64) % W
    idx = (rows[:, None] * W + src_col).reshape(-1).astype(np.int32)
    assert idx.min() >= 0 and idx.max() < H * W
    return idx


def _prep_cols(idx_flat, H, W, k):
    """Host-side index preprocessing (mirrors LatConv.load_index, done once)."""
    idx = np.asarray(jax.device_get(idx_flat)).astype(np.int64).reshape(k * H, k * W)
    if idx.min() < 0 or idx.max() >= H * W:
        raise ValueError("latconv index out of range for H*W (a plain gather would "
                         "clamp silently and produce wrong results)")
    src_row, src_col = idx // W, idx % W
    # Fused kernel relies on the latitude-index structure: the source row of every
    # scaled pixel equals its output row (only columns are latitude-permuted).
    want = np.repeat(np.arange(H), k)[:, None]
    if not np.array_equal(src_row, np.broadcast_to(want, src_row.shape)):
        # TODO(synk): general row-scrambling indices need the unfused im2col path.
        raise NotImplementedError("fused LatConv kernel requires a row-identity "
                                  "latitude index")
    # cols[h, ki*k + kj, w] = source column of x for output pixel (h, w), tap (ki, kj)
    cols = (src_col.reshape(H, k, W, k).transpose(0, 1, 3, 2)
            .reshape(H, k * k, W).astype(np.int32))
    return jnp.asarray(cols)


def _latconv_fused_kernel(x_ref, cols_ref, w_ref, b_ref, o_ref, *, ksize, compute_dtype):
    # x_ref:    (C,  TH, W)  f32   input rows for this (batch, row-tile)
    # cols_ref: (TH, kk, W)  i32   source column per (row, tap, output-col)
    # w_ref:    (kk, Op, C)  bf16  conv weight, tap-major (resident)
    # b_ref:    (Op, 1)      f32   bias (resident)
    # o_ref:    (Op, TH, W)  f32   output rows (full-sublane Op)
    kk = ksize * ksize
    C, TH, W = x_ref.shape

    cols = cols_ref[...]                                                  # (TH, kk, W)
    col_iota = jax.lax.broadcasted_iota(jnp.int32, (W, W), 0)             # source-col iota
    bias = b_ref[...]                                                     # (Op, 1)

    for r in range(TH):                              # static unroll over rows in the tile
        xrow = x_ref[:, r, :].astype(compute_dtype)                       # (C, W)
        acc = jnp.zeros((o_ref.shape[0], W), jnp.float32)
        for q in range(kk):                          # static unroll over conv taps
            cq = cols[r, q:q + 1, :]                                      # (1, W)
            # One-hot gather matrix sel[v, w] = 1 iff source column v feeds output w.
            sel = (col_iota == cq).astype(compute_dtype)                  # (W, W)
            # Exact in-VMEM column gather via the MXU (one-hot selection).
            g = jnp.dot(xrow, sel,
                        preferred_element_type=jnp.float32).astype(compute_dtype)  # (C, W)
            acc = acc + jnp.dot(w_ref[q], g,
                                preferred_element_type=jnp.float32)       # (Op, W)
        o_ref[:, r, :] = acc + bias                                       # bias broadcast


def latconv_forward(x, weight, bias, idx_flat, ksize, *, row_tile=8,
                    compute_dtype=jnp.bfloat16):
    """x: (B,C,H,W) f32, weight: (C,C,k,k) OIHW, bias: (C,), idx_flat: (k*H*k*W,) int."""
    B, C, H, W = x.shape
    k = ksize
    kk = k * k
    Op = _round_up(C, 8)              # pad OUTPUT channels to a full f32 sublane group

    cols = _prep_cols(idx_flat, H, W, k)                                  # (H, kk, W)

    # weight -> tap-major (kk, Op, C); bias -> (Op, 1). Padding touches only the
    # (tiny) weight/bias, never x, so it costs no extra HBM traffic.
    w_t = jnp.transpose(weight, (2, 3, 0, 1)).reshape(kk, C, C)
    w_t = jnp.pad(w_t, ((0, 0), (0, Op - C), (0, 0))).astype(compute_dtype)
    b_t = jnp.pad(bias, (0, Op - C)).reshape(Op, 1).astype(jnp.float32)

    # Row tile: must be a multiple of 8 or the full H (BlockSpec sublane rule).
    TH = row_tile if (H % row_tile == 0) else H
    grid = (B, H // TH)

    # Chip-aware VMEM budget (v7x: 64 MiB total, 32 MiB default scoped).
    try:
        vmem_cap = int(pltpu.get_tpu_info().vmem_capacity_bytes)
    except Exception:
        vmem_cap = 64 * 1024 * 1024
    per_step = (2 * C * TH * W * 4           # x block (double-buffered)
                + 2 * Op * TH * W * 4        # out block
                + 2 * TH * kk * W * 4        # cols block
                + 2 * kk * Op * C * 2        # weight (resident)
                + 2 * Op * 4                 # bias
                + kk * W * W * 2 + 4 * Op * W * 4)   # in-kernel one-hot / accum slack
    vmem_limit = int(min(max(4 * per_step, 8 * 1024 * 1024),
                         32 * 1024 * 1024, vmem_cap // 2))

    cost = pl.CostEstimate(
        flops=int(2 * B * H * kk * W * (C * W + Op * C)),
        transcendentals=0,
        bytes_accessed=int(B * C * H * W * 4 + B * Op * H * W * 4
                           + H * kk * W * 4 + kk * Op * C * 2 + Op * 4),
    )

    kernel = functools.partial(_latconv_fused_kernel, ksize=k, compute_dtype=compute_dtype)

    out = pl.pallas_call(
        kernel,
        out_shape=jax.ShapeDtypeStruct((B, Op, H, W), jnp.float32),
        grid_spec=pltpu.PrefetchScalarGridSpec(
            num_scalar_prefetch=0,
            grid=grid,
            in_specs=[
                pl.BlockSpec((None, C, TH, W), lambda b, j: (b, 0, j, 0)),  # x rows (streamed)
                pl.BlockSpec((TH, kk, W), lambda b, j: (j, 0, 0)),          # gather columns
                pl.BlockSpec((kk, Op, C), lambda b, j: (0, 0, 0)),          # weight (resident)
                pl.BlockSpec((Op, 1), lambda b, j: (0, 0)),                 # bias (resident)
            ],
            out_specs=pl.BlockSpec((None, Op, TH, W), lambda b, j: (b, 0, j, 0)),
        ),
        compiler_params=pltpu.CompilerParams(
            dimension_semantics=("parallel", "parallel"),
            vmem_limit_bytes=vmem_limit),
        cost_estimate=cost,
    )(x, cols, w_t, b_t)

    return out[:, :C].astype(x.dtype)


if __name__ == "__main__":
    B, C, H, W, ksize = 2, 4, 16, 16, 2

    key = jax.random.PRNGKey(0)
    kx, kw, kb = jax.random.split(key, 3)
    x = jax.random.normal(kx, (B, C, H, W), dtype=jnp.float32)

    fan_in = C * ksize * ksize
    bound = 1.0 / np.sqrt(fan_in)
    weight = jax.random.uniform(kw, (C, C, ksize, ksize), jnp.float32, -bound, bound)
    bias = jax.random.uniform(kb, (C,), jnp.float32, -bound, bound)

    idx_flat = jnp.asarray(_make_latconv_index(H, W, ksize))

    out = jax.block_until_ready(latconv_forward(x, weight, bias, idx_flat, ksize))
    assert out.shape == (B, C, H, W)

    # Pure-JAX f32 reference: gather -> strided conv (matches the PyTorch forward).
    x1d = x.reshape(B, C, H * W)
    scaled = jnp.take(x1d, idx_flat, axis=2).reshape(B, C, ksize * H, ksize * W)
    ref = jax.lax.conv_general_dilated(
        scaled, weight, window_strides=(ksize, ksize), padding="VALID",
        dimension_numbers=("NCHW", "OIHW", "NCHW")) + bias.reshape(1, C, 1, 1)
    # bf16 weight / activation stream with f32 accumulation -> loosened tolerance.
    assert jnp.allclose(out, ref, atol=3e-2, rtol=3e-2), "mismatch vs reference"

    print("KERNEL_OK")
</pallas_src>

<mosaic_0001>
module attributes {stable_mosaic.version = 11 : i64} {
  func.func @_latconv_fused_kernel(%arg0: i32, %arg1: i32, %arg2: memref<1x4x8x16xf32, #tpu.memory_space<vmem>>, %arg3: memref<8x4x16xi32, #tpu.memory_space<vmem>>, %arg4: memref<4x8x4xbf16, #tpu.memory_space<vmem>>, %arg5: memref<8x1xf32, #tpu.memory_space<vmem>>, %arg6: memref<1x8x8x16xf32, #tpu.memory_space<vmem>>) attributes {dimension_semantics = [#tpu.dimension_semantics<parallel>, #tpu.dimension_semantics<parallel>], iteration_bounds = array<i64: 2, 2>, scalar_prefetch = 0 : i64, scratch_operands = 0 : i64, tpu.core_type = #tpu.core_type<tc>, window_params = [{transform_indices = @transform_0, window_bounds = array<i64: 1, 4, 8, 16>}, {transform_indices = @transform_1, window_bounds = array<i64: 8, 4, 16>}, {pipeline_mode = #tpu.pipeline_mode<synchronous>, transform_indices = @transform_2, window_bounds = array<i64: 4, 8, 4>}, {pipeline_mode = #tpu.pipeline_mode<synchronous>, transform_indices = @transform_3, window_bounds = array<i64: 8, 1>}, {transform_indices = @transform_4, window_bounds = array<i64: 1, 8, 8, 16>}]} {
    %c0 = arith.constant 0 : index
    %c0_0 = arith.constant 0 : index
    %c0_1 = arith.constant 0 : index
    %0 = vector.load %arg3[%c0, %c0_0, %c0_1] : memref<8x4x16xi32, #tpu.memory_space<vmem>>, vector<8x4x16xi32>
    %1 = tpu.iota {dimensions = array<i32: 0>} : vector<16x16xi32>
    %c0_2 = arith.constant 0 : index
    %c0_3 = arith.constant 0 : index
    %2 = vector.load %arg5[%c0_2, %c0_3] : memref<8x1xf32, #tpu.memory_space<vmem>>, vector<8x1xf32>
    %c0_4 = arith.constant 0 : index
    %c0_5 = arith.constant 0 : index
    %c0_6 = arith.constant 0 : index
    %c0_7 = arith.constant 0 : index
    %3 = vector.load %arg2[%c0_4, %c0_5, %c0_6, %c0_7] : memref<1x4x8x16xf32, #tpu.memory_space<vmem>>, vector<1x4x1x16xf32>
    %4 = vector.shape_cast %3 : vector<1x4x1x16xf32> to vector<4x16xf32>
    %5 = arith.truncf %4 : vector<4x16xf32> to vector<4x16xbf16>
    %cst = arith.constant 0.000000e+00 : f32
    %6 = vector.broadcast %cst : f32 to vector<8x16xf32>
    %7 = vector.extract_strided_slice %0 {offsets = [0, 0, 0], sizes = [1, 1, 16], strides = [1, 1, 1]} : vector<8x4x16xi32> to vector<1x1x16xi32>
    %8 = vector.shape_cast %7 : vector<1x1x16xi32> to vector<1x16xi32>
    %9 = vector.broadcast %8 : vector<1x16xi32> to vector<16x16xi32>
    %10 = arith.cmpi eq, %1, %9 : vector<16x16xi32>
    %11 = arith.extui %10 : vector<16x16xi1> to vector<16x16xi32>
    %12 = arith.sitofp %11 : vector<16x16xi32> to vector<16x16xf32>
    %13 = arith.truncf %12 : vector<16x16xf32> to vector<16x16xbf16>
    %cst_8 = arith.constant dense<0.000000e+00> : vector<4x16xf32>
    %14 = tpu.matmul %5, %13, %cst_8 {dimension_numbers = #tpu.dot_dimension_numbers<[1], [0], [0], [1], [0, 0, 1, 1], [], []>} : vector<4x16xbf16>, vector<16x16xbf16>, vector<4x16xf32> -> vector<4x16xf32>
    %15 = arith.truncf %14 : vector<4x16xf32> to vector<4x16xbf16>
    %c0_9 = arith.constant 0 : index
    %c0_10 = arith.constant 0 : index
    %c0_11 = arith.constant 0 : index
    %16 = vector.load %arg4[%c0_9, %c0_10, %c0_11] : memref<4x8x4xbf16, #tpu.memory_space<vmem>>, vector<1x8x4xbf16>
    %17 = vector.shape_cast %16 : vector<1x8x4xbf16> to vector<8x4xbf16>
    %cst_12 = arith.constant dense<0.000000e+00> : vector<8x16xf32>
    %18 = tpu.matmul %17, %15, %cst_12 {dimension_numbers = #tpu.dot_dimension_numbers<[1], [0], [0], [1], [0, 0, 1, 1], [], []>} : vector<8x4xbf16>, vector<4x16xbf16>, vector<8x16xf32> -> vector<8x16xf32>
    %19 = arith.addf %6, %18 : vector<8x16xf32>
    %20 = vector.extract_strided_slice %0 {offsets = [0, 1, 0], sizes = [1, 1, 16], strides = [1, 1, 1]} : vector<8x4x16xi32> to vector<1x1x16xi32>
    %21 = vector.shape_cast %20 : vector<1x1x16xi32> to vector<1x16xi32>
    %22 = vector.broadcast %21 : vector<1x16xi32> to vector<16x16xi32>
    %23 = arith.cmpi eq, %1, %22 : vector<16x16xi32>
    %24 = arith.extui %23 : vector<16x16xi1> to vector<16x16xi32>
    %25 = arith.sitofp %24 : vector<16x16xi32> to vector<16x16xf32>
    %26 = arith.truncf %25 : vector<16x16xf32> to vector<16x16xbf16>
    %cst_13 = arith.constant dense<0.000000e+00> : vector<4x16xf32>
    %27 = tpu.matmul %5, %26, %cst_13 {dimension_numbers = #tpu.dot_dimension_numbers<[1], [0], [0], [1], [0, 0, 1, 1], [], []>} : vector<4x16xbf16>, vector<16x16xbf16>, vector<4x16xf32> -> vector<4x16xf32>
    %28 = arith.truncf %27 : vector<4x16xf32> to vector<4x16xbf16>
    %c1 = arith.constant 1 : index
    %c0_14 = arith.constant 0 : index
    %c0_15 = arith.constant 0 : index
    %29 = vector.load %arg4[%c1, %c0_14, %c0_15] : memref<4x8x4xbf16, #tpu.memory_space<vmem>>, vector<1x8x4xbf16>
    %30 = vector.shape_cast %29 : vector<1x8x4xbf16> to vector<8x4xbf16>
    %cst_16 = arith.constant dense<0.000000e+00> : vector<8x16xf32>
    %31 = tpu.matmul %30, %28, %cst_16 {dimension_numbers = #tpu.dot_dimension_numbers<[1], [0], [0], [1], [0, 0, 1, 1], [], []>} : vector<8x4xbf16>, vector<4x16xbf16>, vector<8x16xf32> -> vector<8x16xf32>
    %32 = arith.addf %19, %31 : vector<8x16xf32>
    %33 = vector.extract_strided_slice %0 {offsets = [0, 2, 0], sizes = [1, 1, 16], strides = [1, 1, 1]} : vector<8x4x16xi32> to vector<1x1x16xi32>
    %34 = vector.shape_cast %33 : vector<1x1x16xi32> to vector<1x16xi32>
    %35 = vector.broadcast %34 : vector<1x16xi32> to vector<16x16xi32>
    %36 = arith.cmpi eq, %1, %35 : vector<16x16xi32>
    %37 = arith.extui %36 : vector<16x16xi1> to vector<16x16xi32>
    %38 = arith.sitofp %37 : vector<16x16xi32> to vector<16x16xf32>
    %39 = arith.truncf %38 : vector<16x16xf32> to vector<16x16xbf16>
    %cst_17 = arith.constant dense<0.000000e+00> : vector<4x16xf32>
    %40 = tpu.matmul %5, %39, %cst_17 {dimension_numbers = #tpu.dot_dimension_numbers<[1], [0], [0], [1], [0, 0, 1, 1], [], []>} : vector<4x16xbf16>, vector<16x16xbf16>, vector<4x16xf32> -> vector<4x16xf32>
    %41 = arith.truncf %40 : vector<4x16xf32> to vector<4x16xbf16>
    %c2 = arith.constant 2 : index
    %c0_18 = arith.constant 0 : index
    %c0_19 = arith.constant 0 : index
    %42 = vector.load %arg4[%c2, %c0_18, %c0_19] : memref<4x8x4xbf16, #tpu.memory_space<vmem>>, vector<1x8x4xbf16>
    %43 = vector.shape_cast %42 : vector<1x8x4xbf16> to vector<8x4xbf16>
    %cst_20 = arith.constant dense<0.000000e+00> : vector<8x16xf32>
    %44 = tpu.matmul %43, %41, %cst_20 {dimension_numbers = #tpu.dot_dimension_numbers<[1], [0], [0], [1], [0, 0, 1, 1], [], []>} : vector<8x4xbf16>, vector<4x16xbf16>, vector<8x16xf32> -> vector<8x16xf32>
    %45 = arith.addf %32, %44 : vector<8x16xf32>
    %46 = vector.extract_strided_slice %0 {offsets = [0, 3, 0], sizes = [1, 1, 16], strides = [1, 1, 1]} : vector<8x4x16xi32> to vector<1x1x16xi32>
    %47 = vector.shape_cast %46 : vector<1x1x16xi32> to vector<1x16xi32>
    %48 = vector.broadcast %47 : vector<1x16xi32> to vector<16x16xi32>
    %49 = arith.cmpi eq, %1, %48 : vector<16x16xi32>
    %50 = arith.extui %49 : vector<16x16xi1> to vector<16x16xi32>
    %51 = arith.sitofp %50 : vector<16x16xi32> to vector<16x16xf32>
    %52 = arith.truncf %51 : vector<16x16xf32> to vector<16x16xbf16>
    %cst_21 = arith.constant dense<0.000000e+00> : vector<4x16xf32>
    %53 = tpu.matmul %5, %52, %cst_21 {dimension_numbers = #tpu.dot_dimension_numbers<[1], [0], [0], [1], [0, 0, 1, 1], [], []>} : vector<4x16xbf16>, vector<16x16xbf16>, vector<4x16xf32> -> vector<4x16xf32>
    %54 = arith.truncf %53 : vector<4x16xf32> to vector<4x16xbf16>
    %c3 = arith.constant 3 : index
    %c0_22 = arith.constant 0 : index
    %c0_23 = arith.constant 0 : index
    %55 = vector.load %arg4[%c3, %c0_22, %c0_23] : memref<4x8x4xbf16, #tpu.memory_space<vmem>>, vector<1x8x4xbf16>
    %56 = vector.shape_cast %55 : vector<1x8x4xbf16> to vector<8x4xbf16>
    %cst_24 = arith.constant dense<0.000000e+00> : vector<8x16xf32>
    %57 = tpu.matmul %56, %54, %cst_24 {dimension_numbers = #tpu.dot_dimension_numbers<[1], [0], [0], [1], [0, 0, 1, 1], [], []>} : vector<8x4xbf16>, vector<4x16xbf16>, vector<8x16xf32> -> vector<8x16xf32>
    %58 = arith.addf %45, %57 : vector<8x16xf32>
    %59 = vector.broadcast %2 : vector<8x1xf32> to vector<8x16xf32>
    %60 = arith.addf %58, %59 : vector<8x16xf32>
    %c0_25 = arith.constant 0 : index
    %c0_26 = arith.constant 0 : index
    %c0_27 = arith.constant 0 : index
    %c0_28 = arith.constant 0 : index
    %61 = vector.load %arg6[%c0_25, %c0_26, %c0_27, %c0_28] : memref<1x8x8x16xf32, #tpu.memory_space<vmem>>, vector<1x8x1x16xf32>
    %62 = vector.shape_cast %61 : vector<1x8x1x16xf32> to vector<8x16xf32>
    %63 = vector.shape_cast %60 : vector<8x16xf32> to vector<1x8x1x16xf32>
    tpu.vector_store %arg6[%c0_25, %c0_26, %c0_27, %c0_28], %63 {strides = array<i32>} : memref<1x8x8x16xf32, #tpu.memory_space<vmem>>, vector<1x8x1x16xf32>,
    %c0_29 = arith.constant 0 : index
    %c0_30 = arith.constant 0 : index
    %c1_31 = arith.constant 1 : index
    %c0_32 = arith.constant 0 : index
    %64 = vector.load %arg2[%c0_29, %c0_30, %c1_31, %c0_32] : memref<1x4x8x16xf32, #tpu.memory_space<vmem>>, vector<1x4x1x16xf32>
    %65 = vector.shape_cast %64 : vector<1x4x1x16xf32> to vector<4x16xf32>
    %66 = arith.truncf %65 : vector<4x16xf32> to vector<4x16xbf16>
    %cst_33 = arith.constant 0.000000e+00 : f32
    %67 = vector.broadcast %cst_33 : f32 to vector<8x16xf32>
    %68 = vector.extract_strided_slice %0 {offsets = [1, 0, 0], sizes = [1, 1, 16], strides = [1, 1, 1]} : vector<8x4x16xi32> to vector<1x1x16xi32>
    %69 = vector.shape_cast %68 : vector<1x1x16xi32> to vector<1x16xi32>
    %70 = vector.broadcast %69 : vector<1x16xi32> to vector<16x16xi32>
    %71 = arith.cmpi eq, %1, %70 : vector<16x16xi32>
    %72 = arith.extui %71 : vector<16x16xi1> to vector<16x16xi32>
    %73 = arith.sitofp %72 : vector<16x16xi32> to vector<16x16xf32>
    %74 = arith.truncf %73 : vector<16x16xf32> to vector<16x16xbf16>
    %cst_34 = arith.constant dense<0.000000e+00> : vector<4x16xf32>
    %75 = tpu.matmul %66, %74, %cst_34 {dimension_numbers = #tpu.dot_dimension_numbers<[1], [0], [0], [1], [0, 0, 1, 1], [], []>} : vector<4x16xbf16>, vector<16x16xbf16>, vector<4x16xf32> -> vector<4x16xf32>
    %76 = arith.truncf %75 : vector<4x16xf32> to vector<4x16xbf16>
    %c0_35 = arith.constant 0 : index
    %c0_36 = arith.constant 0 : index
    %c0_37 = arith.constant 0 : index
    %77 = vector.load %arg4[%c0_35, %c0_36, %c0_37] : memref<4x8x4xbf16, #tpu.memory_space<vmem>>, vector<1x8x4xbf16>
    %78 = vector.shape_cast %77 : vector<1x8x4xbf16> to vector<8x4xbf16>
    %cst_38 = arith.constant dense<0.000000e+00> : vector<8x16xf32>
    %79 = tpu.matmul %78, %76, %cst_38 {dimension_numbers = #tpu.dot_dimension_numbers<[1], [0], [0], [1], [0, 0, 1, 1], [], []>} : vector<8x4xbf16>, vector<4x16xbf16>, vector<8x16xf32> -> vector<8x16xf32>
    %80 = arith.addf %67, %79 : vector<8x16xf32>
    %81 = vector.extract_strided_slice %0 {offsets = [1, 1, 0], sizes = [1, 1, 16], strides = [1, 1, 1]} : vector<8x4x16xi32> to vector<1x1x16xi32>
    %82 = vector.shape_cast %81 : vector<1x1x16xi32> to vector<1x16xi32>
    %83 = vector.broadcast %82 : vector<1x16xi32> to vector<16x16xi32>
    %84 = arith.cmpi eq, %1, %83 : vector<16x16xi32>
    %85 = arith.extui %84 : vector<16x16xi1> to vector<16x16xi32>
    %86 = arith.sitofp %85 : vector<16x16xi32> to vector<16x16xf32>
    %87 = arith.truncf %86 : vector<16x16xf32> to vector<16x16xbf16>
    %cst_39 = arith.constant dense<0.000000e+00> : vector<4x16xf32>
    %88 = tpu.matmul %66, %87, %cst_39 {dimension_numbers = #tpu.dot_dimension_numbers<[1], [0], [0], [1], [0, 0, 1, 1], [], []>} : vector<4x16xbf16>, vector<16x16xbf16>, vector<4x16xf32> -> vector<4x16xf32>
    %89 = arith.truncf %88 : vector<4x16xf32> to vector<4x16xbf16>
    %c1_40 = arith.constant 1 : index
    %c0_41 = arith.constant 0 : index
    %c0_42 = arith.constant 0 : index
    %90 = vector.load %arg4[%c1_40, %c0_41, %c0_42] : memref<4x8x4xbf16, #tpu.memory_space<vmem>>, vector<1x8x4xbf16>
    %91 = vector.shape_cast %90 : vector<1x8x4xbf16> to vector<8x4xbf16>
    %cst_43 = arith.constant dense<0.000000e+00> : vector<8x16xf32>
    %92 = tpu.matmul %91, %89, %cst_43 {dimension_numbers = #tpu.dot_dimension_numbers<[1], [0], [0], [1], [0, 0, 1, 1], [], []>} : vector<8x4xbf16>, vector<4x16xbf16>, vector<8x16xf32> -> vector<8x16xf32>
    %93 = arith.addf %80, %92 : vector<8x16xf32>
    %94 = vector.extract_strided_slice %0 {offsets = [1, 2, 0], sizes = [1, 1, 16], strides = [1, 1, 1]} : vector<8x4x16xi32> to vector<1x1x16xi32>
    %95 = vector.shape_cast %94 : vector<1x1x16xi32> to vector<1x16xi32>
    %96 = vector.broadcast %95 : vector<1x16xi32> to vector<16x16xi32>
    %97 = arith.cmpi eq, %1, %96 : vector<16x16xi32>
    %98 = arith.extui %97 : vector<16x16xi1> to vector<16x16xi32>
    %99 = arith.sitofp %98 : vector<16x16xi32> to vector<16x16xf32>
    %100 = arith.truncf %99 : vector<16x16xf32> to vector<16x16xbf16>
    %cst_44 = arith.constant dense<0.000000e+00> : vector<4x16xf32>
    %101 = tpu.matmul %66, %100, %cst_44 {dimension_numbers = #tpu.dot_dimension_numbers<[1], [0], [0], [1], [0, 0, 1, 1], [], []>} : vector<4x16xbf16>, vector<16x16xbf16>, vector<4x16xf32> -> vector<4x16xf32>
    %102 = arith.truncf %101 : vector<4x16xf32> to vector<4x16xbf16>
    %c2_45 = arith.constant 2 : index
    %c0_46 = arith.constant 0 : index
    %c0_47 = arith.constant 0 : index
    %103 = vector.load %arg4[%c2_45, %c0_46, %c0_47] : memref<4x8x4xbf16, #tpu.memory_space<vmem>>, vector<1x8x4xbf16>
    %104 = vector.shape_cast %103 : vector<1x8x4xbf16> to vector<8x4xbf16>
    %cst_48 = arith.constant dense<0.000000e+00> : vector<8x16xf32>
    %105 = tpu.matmul %104, %102, %cst_48 {dimension_numbers = #tpu.dot_dimension_numbers<[1], [0], [0], [1], [0, 0, 1, 1], [], []>} : vector<8x4xbf16>, vector<4x16xbf16>, vector<8x16xf32> -> vector<8x16xf32>
    %106 = arith.addf %93, %105 : vector<8x16xf32>
    %107 = vector.extract_strided_slice %0 {offsets = [1, 3, 0], sizes = [1, 1, 16], strides = [1, 1, 1]} : vector<8x4x16xi32> to vector<1x1x16xi32>
    %108 = vector.shape_cast %107 : vector<1x1x16xi32> to vector<1x16xi32>
    %109 = vector.broadcast %108 : vector<1x16xi32> to vector<16x16xi32>
    %110 = arith.cmpi eq, %1, %109 : vector<16x16xi32>
    %111 = arith.extui %110 : vector<16x16xi1> to vector<16x16xi32>
    %112 = arith.sitofp %111 : vector<16x16xi32> to vector<16x16xf32>
    %113 = arith.truncf %112 : vector<16x16xf32> to vector<16x16xbf16>
    %cst_49 = arith.constant dense<0.000000e+00> : vector<4x16xf32>
    %114 = tpu.matmul %66, %113, %cst_49 {dimension_numbers = #tpu.dot_dimension_numbers<[1], [0], [0], [1], [0, 0, 1, 1], [], []>} : vector<4x16xbf16>, vector<16x16xbf16>, vector<4x16xf32> -> vector<4x16xf32>
    %115 = arith.truncf %114 : vector<4x16xf32> to vector<4x16xbf16>
    %c3_50 = arith.constant 3 : index
    %c0_51 = arith.constant 0 : index
    %c0_52 = arith.constant 0 : index
    %116 = vector.load %arg4[%c3_50, %c0_51, %c0_52] : memref<4x8x4xbf16, #tpu.memory_space<vmem>>, vector<1x8x4xbf16>
    %117 = vector.shape_cast %116 : vector<1x8x4xbf16> to vector<8x4xbf16>
    %cst_53 = arith.constant dense<0.000000e+00> : vector<8x16xf32>
    %118 = tpu.matmul %117, %115, %cst_53 {dimension_numbers = #tpu.dot_dimension_numbers<[1], [0], [0], [1], [0, 0, 1, 1], [], []>} : vector<8x4xbf16>, vector<4x16xbf16>, vector<8x16xf32> -> vector<8x16xf32>
    %119 = arith.addf %106, %118 : vector<8x16xf32>
    %120 = vector.broadcast %2 : vector<8x1xf32> to vector<8x16xf32>
    %121 = arith.addf %119, %120 : vector<8x16xf32>
    %c0_54 = arith.constant 0 : index
    %c0_55 = arith.constant 0 : index
    %c1_56 = arith.constant 1 : index
    %c0_57 = arith.constant 0 : index
    %122 = vector.load %arg6[%c0_54, %c0_55, %c1_56, %c0_57] : memref<1x8x8x16xf32, #tpu.memory_space<vmem>>, vector<1x8x1x16xf32>
    %123 = vector.shape_cast %122 : vector<1x8x1x16xf32> to vector<8x16xf32>
    %124 = vector.shape_cast %121 : vector<8x16xf32> to vector<1x8x1x16xf32>
    tpu.vector_store %arg6[%c0_54, %c0_55, %c1_56, %c0_57], %124 {strides = array<i32>} : memref<1x8x8x16xf32, #tpu.memory_space<vmem>>, vector<1x8x1x16xf32>,
    %c0_58 = arith.constant 0 : index
    %c0_59 = arith.constant 0 : index
    %c2_60 = arith.constant 2 : index
    %c0_61 = arith.constant 0 : index
    %125 = vector.load %arg2[%c0_58, %c0_59, %c2_60, %c0_61] : memref<1x4x8x16xf32, #tpu.memory_space<vmem>>, vector<1x4x1x16xf32>
    %126 = vector.shape_cast %125 : vector<1x4x1x16xf32> to vector<4x16xf32>
    %127 = arith.truncf %126 : vector<4x16xf32> to vector<4x16xbf16>
    %cst_62 = arith.constant 0.000000e+00 : f32
    %128 = vector.broadcast %cst_62 : f32 to vector<8x16xf32>
    %129 = vector.extract_strided_slice %0 {offsets = [2, 0, 0], sizes = [1, 1, 16], strides = [1, 1, 1]} : vector<8x4x16xi32> to vector<1x1x16xi32>
    %130 = vector.shape_cast %129 : vector<1x1x16xi32> to vector<1x16xi32>
    %131 = vector.broadcast %130 : vector<1x16xi32> to vector<16x16xi32>
    %132 = arith.cmpi eq, %1, %131 : vector<16x16xi32>
    %133 = arith.extui %132 : vector<16x16xi1> to vector<16x16xi32>
    %134 = arith.sitofp %133 : vector<16x16xi32> to vector<16x16xf32>
    %135 = arith.truncf %134 : vector<16x16xf32> to vector<16x16xbf16>
    %cst_63 = arith.constant dense<0.000000e+00> : vector<4x16xf32>
    %136 = tpu.matmul %127, %135, %cst_63 {dimension_numbers = #tpu.dot_dimension_numbers<[1], [0], [0], [1], [0, 0, 1, 1], [], []>} : vector<4x16xbf16>, vector<16x16xbf16>, vector<4x16xf32> -> vector<4x16xf32>
    %137 = arith.truncf %136 : vector<4x16xf32> to vector<4x16xbf16>
    %c0_64 = arith.constant 0 : index
    %c0_65 = arith.constant 0 : index
    %c0_66 = arith.constant 0 : index
    %138 = vector.load %arg4[%c0_64, %c0_65, %c0_66] : memref<4x8x4xbf16, #tpu.memory_space<vmem>>, vector<1x8x4xbf16>
    %139 = vector.shape_cast %138 : vector<1x8x4xbf16> to vector<8x4xbf16>
    %cst_67 = arith.constant dense<0.000000e+00> : vector<8x16xf32>
    %140 = tpu.matmul %139, %137, %cst_67 {dimension_numbers = #tpu.dot_dimension_numbers<[1], [0], [0], [1], [0, 0, 1, 1], [], []>} : vector<8x4xbf16>, vector<4x16xbf16>, vector<8x16xf32> -> vector<8x16xf32>
    %141 = arith.addf %128, %140 : vector<8x16xf32>
    %142 = vector.extract_strided_slice %0 {offsets = [2, 1, 0], sizes = [1, 1, 16], strides = [1, 1, 1]} : vector<8x4x16xi32> to vector<1x1x16xi32>
    %143 = vector.shape_cast %142 : vector<1x1x16xi32> to vector<1x16xi32>
    %144 = vector.broadcast %143 : vector<1x16xi32> to vector<16x16xi32>
    %145 = arith.cmpi eq, %1, %144 : vector<16x16xi32>
    %146 = arith.extui %145 : vector<16x16xi1> to vector<16x16xi32>
    %147 = arith.sitofp %146 : vector<16x16xi32> to vector<16x16xf32>
    %148 = arith.truncf %147 : vector<16x16xf32> to vector<16x16xbf16>
    %cst_68 = arith.constant dense<0.000000e+00> : vector<4x16xf32>
    %149 = tpu.matmul %127, %148, %cst_68 {dimension_numbers = #tpu.dot_dimension_numbers<[1], [0], [0], [1], [0, 0, 1, 1], [], []>} : vector<4x16xbf16>, vector<16x16xbf16>, vector<4x16xf32> -> vector<4x16xf32>
    %150 = arith.truncf %149 : vector<4x16xf32> to vector<4x16xbf16>
    %c1_69 = arith.constant 1 : index
    %c0_70 = arith.constant 0 : index
    %c0_71 = arith.constant 0 : index
    %151 = vector.load %arg4[%c1_69, %c0_70, %c0_71] : memref<4x8x4xbf16, #tpu.memory_space<vmem>>, vector<1x8x4xbf16>
    %152 = vector.shape_cast %151 : vector<1x8x4xbf16> to vector<8x4xbf16>
    %cst_72 = arith.constant dense<0.000000e+00> : vector<8x16xf32>
    %153 = tpu.matmul %152, %150, %cst_72 {dimension_numbers = #tpu.dot_dimension_numbers<[1], [0], [0], [1], [0, 0, 1, 1], [], []>} : vector<8x4xbf16>, vector<4x16xbf16>, vector<8x16xf32> -> vector<8x16xf32>
    %154 = arith.addf %141, %153 : vector<8x16xf32>
    %155 = vector.extract_strided_slice %0 {offsets = [2, 2, 0], sizes = [1, 1, 16], strides = [1, 1, 1]} : vector<8x4x16xi32> to vector<1x1x16xi32>
    %156 = vector.shape_cast %155 : vector<1x1x16xi32> to vector<1x16xi32>
    %157 = vector.broadcast %156 : vector<1x16xi32> to vector<16x16xi32>
    %158 = arith.cmpi eq, %1, %157 : vector<16x16xi32>
    %159 = arith.extui %158 : vector<16x16xi1> to vector<16x16xi32>
    %160 = arith.sitofp %159 : vector<16x16xi32> to vector<16x16xf32>
    %161 = arith.truncf %160 : vector<16x16xf32> to vector<16x16xbf16>
    %cst_73 = arith.constant dense<0.000000e+00> : vector<4x16xf32>
    %162 = tpu.matmul %127, %161, %cst_73 {dimension_numbers = #tpu.dot_dimension_numbers<[1], [0], [0], [1], [0, 0, 1, 1], [], []>} : vector<4x16xbf16>, vector<16x16xbf16>, vector<4x16xf32> -> vector<4x16xf32>
    %163 = arith.truncf %162 : vector<4x16xf32> to vector<4x16xbf16>
    %c2_74 = arith.constant 2 : index
    %c0_75 = arith.constant 0 : index
    %c0_76 = arith.constant 0 : index
    %164 = vector.load %arg4[%c2_74, %c0_75, %c0_76] : memref<4x8x4xbf16, #tpu.memory_space<vmem>>, vector<1x8x4xbf16>
    %165 = vector.shape_cast %164 : vector<1x8x4xbf16> to vector<8x4xbf16>
    %cst_77 = arith.constant dense<0.000000e+00> : vector<8x16xf32>
    %166 = tpu.matmul %165, %163, %cst_77 {dimension_numbers = #tpu.dot_dimension_numbers<[1], [0], [0], [1], [0, 0, 1, 1], [], []>} : vector<8x4xbf16>, vector<4x16xbf16>, vector<8x16xf32> -> vector<8x16xf32>
    %167 = arith.addf %154, %166 : vector<8x16xf32>
    %168 = vector.extract_strided_slice %0 {offsets = [2, 3, 0], sizes = [1, 1, 16], strides = [1, 1, 1]} : vector<8x4x16xi32> to vector<1x1x16xi32>
    %169 = vector.shape_cast %168 : vector<1x1x16xi32> to vector<1x16xi32>
    %170 = vector.broadcast %169 : vector<1x16xi32> to vector<16x16xi32>
    %171 = arith.cmpi eq, %1, %170 : vector<16x16xi32>
    %172 = arith.extui %171 : vector<16x16xi1> to vector<16x16xi32>
    %173 = arith.sitofp %172 : vector<16x16xi32> to vector<16x16xf32>
    %174 = arith.truncf %173 : vector<16x16xf32> to vector<16x16xbf16>
    %cst_78 = arith.constant dense<0.000000e+00> : vector<4x16xf32>
    %175 = tpu.matmul %127, %174, %cst_78 {dimension_numbers = #tpu.dot_dimension_numbers<[1], [0], [0], [1], [0, 0, 1, 1], [], []>} : vector<4x16xbf16>, vector<16x16xbf16>, vector<4x16xf32> -> vector<4x16xf32>
    %176 = arith.truncf %175 : vector<4x16xf32> to vector<4x16xbf16>
    %c3_79 = arith.constant 3 : index
    %c0_80 = arith.constant 0 : index
    %c0_81 = arith.constant 0 : index
    %177 = vector.load %arg4[%c3_79, %c0_80, %c0_81] : memref<4x8x4xbf16, #tpu.memory_space<vmem>>, vector<1x8x4xbf16>
    %178 = vector.shape_cast %177 : vector<1x8x4xbf16> to vector<8x4xbf16>
    %cst_82 = arith.constant dense<0.000000e+00> : vector<8x16xf32>
    %179 = tpu.matmul %178, %176, %cst_82 {dimension_numbers = #tpu.dot_dimension_numbers<[1], [0], [0], [1], [0, 0, 1, 1], [], []>} : vector<8x4xbf16>, vector<4x16xbf16>, vector<8x16xf32> -> vector<8x16xf32>
    %180 = arith.addf %167, %179 : vector<8x16xf32>
    %181 = vector.broadcast %2 : vector<8x1xf32> to vector<8x16xf32>
    %182 = arith.addf %180, %181 : vector<8x16xf32>
    %c0_83 = arith.constant 0 : index
    %c0_84 = arith.constant 0 : index
    %c2_85 = arith.constant 2 : index
    %c0_86 = arith.constant 0 : index
    %183 = vector.load %arg6[%c0_83, %c0_84, %c2_85, %c0_86] : memref<1x8x8x16xf32, #tpu.memory_space<vmem>>, vector<1x8x1x16xf32>
    %184 = vector.shape_cast %183 : vector<1x8x1x16xf32> to vector<8x16xf32>
    %185 = vector.shape_cast %182 : vector<8x16xf32> to vector<1x8x1x16xf32>
    tpu.vector_store %arg6[%c0_83, %c0_84, %c2_85, %c0_86], %185 {strides = array<i32>} : memref<1x8x8x16xf32, #tpu.memory_space<vmem>>, vector<1x8x1x16xf32>,
    %c0_87 = arith.constant 0 : index
    %c0_88 = arith.constant 0 : index
    %c3_89 = arith.constant 3 : index
    %c0_90 = arith.constant 0 : index
    %186 = vector.load %arg2[%c0_87, %c0_88, %c3_89, %c0_90] : memref<1x4x8x16xf32, #tpu.memory_space<vmem>>, vector<1x4x1x16xf32>
    %187 = vector.shape_cast %186 : vector<1x4x1x16xf32> to vector<4x16xf32>
    %188 = arith.truncf %187 : vector<4x16xf32> to vector<4x16xbf16>
    %cst_91 = arith.constant 0.000000e+00 : f32
    %189 = vector.broadcast %cst_91 : f32 to vector<8x16xf32>
    %190 = vector.extract_strided_slice %0 {offsets = [3, 0, 0], sizes = [1, 1, 16], strides = [1, 1, 1]} : vector<8x4x16xi32> to vector<1x1x16xi32>
    %191 = vector.shape_cast %190 : vector<1x1x16xi32> to vector<1x16xi32>
    %192 = vector.broadcast %191 : vector<1x16xi32> to vector<16x16xi32>
    %193 = arith.cmpi eq, %1, %192 : vector<16x16xi32>
    %194 = arith.extui %193 : vector<16x16xi1> to vector<16x16xi32>
    %195 = arith.sitofp %194 : vector<16x16xi32> to vector<16x16xf32>
    %196 = arith.truncf %195 : vector<16x16xf32> to vector<16x16xbf16>
    %cst_92 = arith.constant dense<0.000000e+00> : vector<4x16xf32>
    %197 = tpu.matmul %188, %196, %cst_92 {dimension_numbers = #tpu.dot_dimension_numbers<[1], [0], [0], [1], [0, 0, 1, 1], [], []>} : vector<4x16xbf16>, vector<16x16xbf16>, vector<4x16xf32> -> vector<4x16xf32>
    %198 = arith.truncf %197 : vector<4x16xf32> to vector<4x16xbf16>
    %c0_93 = arith.constant 0 : index
    %c0_94 = arith.constant 0 : index
    %c0_95 = arith.constant 0 : index
    %199 = vector.load %arg4[%c0_93, %c0_94, %c0_95] : memref<4x8x4xbf16, #tpu.memory_space<vmem>>, vector<1x8x4xbf16>
    %200 = vector.shape_cast %199 : vector<1x8x4xbf16> to vector<8x4xbf16>
    %cst_96 = arith.constant dense<0.000000e+00> : vector<8x16xf32>
    %201 = tpu.matmul %200, %198, %cst_96 {dimension_numbers = #tpu.dot_dimension_numbers<[1], [0], [0], [1], [0, 0, 1, 1], [], []>} : vector<8x4xbf16>, vector<4x16xbf16>, vector<8x16xf32> -> vector<8x16xf32>
    %202 = arith.addf %189, %201 : vector<8x16xf32>
    %203 = vector.extract_strided_slice %0 {offsets = [3, 1, 0], sizes = [1, 1, 16], strides = [1, 1, 1]} : vector<8x4x16xi32> to vector<1x1x16xi32>
    %204 = vector.shape_cast %203 : vector<1x1x16xi32> to vector<1x16xi32>
    %205 = vector.broadcast %204 : vector<1x16xi32> to vector<16x16xi32>
    %206 = arith.cmpi eq, %1, %205 : vector<16x16xi32>
    %207 = arith.extui %206 : vector<16x16xi1> to vector<16x16xi32>
    %208 = arith.sitofp %207 : vector<16x16xi32> to vector<16x16xf32>
    %209 = arith.truncf %208 : vector<16x16xf32> to vector<16x16xbf16>
    %cst_97 = arith.constant dense<0.000000e+00> : vector<4x16xf32>
    %210 = tpu.matmul %188, %209, %cst_97 {dimension_numbers = #tpu.dot_dimension_numbers<[1], [0], [0], [1], [0, 0, 1, 1], [], []>} : vector<4x16xbf16>, vector<16x16xbf16>, vector<4x16xf32> -> vector<4x16xf32>
    %211 = arith.truncf %210 : vector<4x16xf32> to vector<4x16xbf16>
    %c1_98 = arith.constant 1 : index
    %c0_99 = arith.constant 0 : index
    %c0_100 = arith.constant 0 : index
    %212 = vector.load %arg4[%c1_98, %c0_99, %c0_100] : memref<4x8x4xbf16, #tpu.memory_space<vmem>>, vector<1x8x4xbf16>
    %213 = vector.shape_cast %212 : vector<1x8x4xbf16> to vector<8x4xbf16>
    %cst_101 = arith.constant dense<0.000000e+00> : vector<8x16xf32>
    %214 = tpu.matmul %213, %211, %cst_101 {dimension_numbers = #tpu.dot_dimension_numbers<[1], [0], [0], [1], [0, 0, 1, 1], [], []>} : vector<8x4xbf16>, vector<4x16xbf16>, vector<8x16xf32> -> vector<8x16xf32>
    %215 = arith.addf %202, %214 : vector<8x16xf32>
    %216 = vector.extract_strided_slice %0 {offsets = [3, 2, 0], sizes = [1, 1, 16], strides = [1, 1, 1]} : vector<8x4x16xi32> to vector<1x1x16xi32>
    %217 = vector.shape_cast %216 : vector<1x1x16xi32> to vector<1x16xi32>
    %218 = vector.broadcast %217 : vector<1x16xi32> to vector<16x16xi32>
    %219 = arith.cmpi eq, %1, %218 : vector<16x16xi32>
    %220 = arith.extui %219 : vector<16x16xi1> to vector<16x16xi32>
    %221 = arith.sitofp %220 : vector<16x16xi32> to vector<16x16xf32>
    %222 = arith.truncf %221 : vector<16x16xf32> to vector<16x16xbf16>
    %cst_102 = arith.constant dense<0.000000e+00> : vector<4x16xf32>
    %223 = tpu.matmul %188, %222, %cst_102 {dimension_numbers = #tpu.dot_dimension_numbers<[1], [0], [0], [1], [0, 0, 1, 1], [], []>} : vector<4x16xbf16>, vector<16x16xbf16>, vector<4x16xf32> -> vector<4x16xf32>
    %224 = arith.truncf %223 : vector<4x16xf32> to vector<4x16xbf16>
    %c2_103 = arith.constant 2 : index
    %c0_104 = arith.constant 0 : index
    %c0_105 = arith.constant 0 : index
    %225 = vector.load %arg4[%c2_103, %c0_104, %c0_105] : memref<4x8x4xbf16, #tpu.memory_space<vmem>>, vector<1x8x4xbf16>
    %226 = vector.shape_cast %225 : vector<1x8x4xbf16> to vector<8x4xbf16>
    %cst_106 = arith.constant dense<0.000000e+00> : vector<8x16xf32>
    %227 = tpu.matmul %226, %224, %cst_106 {dimension_numbers = #tpu.dot_dimension_numbers<[1], [0], [0], [1], [0, 0, 1, 1], [], []>} : vector<8x4xbf16>, vector<4x16xbf16>, vector<8x16xf32> -> vector<8x16xf32>
    %228 = arith.addf %215, %227 : vector<8x16xf32>
    %229 = vector.extract_strided_slice %0 {offsets = [3, 3, 0], sizes = [1, 1, 16], strides = [1, 1, 1]} : vector<8x4x16xi32> to vector<1x1x16xi32>
    %230 = vector.shape_cast %229 : vector<1x1x16xi32> to vector<1x16xi32>
    %231 = vector.broadcast %230 : vector<1x16xi32> to vector<16x16xi32>
    %232 = arith.cmpi eq, %1, %231 : vector<16x16xi32>
    %233 = arith.extui %232 : vector<16x16xi1> to vector<16x16xi32>
    %234 = arith.sitofp %233 : vector<16x16xi32> to vector<16x16xf32>
    %235 = arith.truncf %234 : vector<16x16xf32> to vector<16x16xbf16>
    %cst_107 = arith.constant dense<0.000000e+00> : vector<4x16xf32>
    %236 = tpu.matmul %188, %235, %cst_107 {dimension_numbers = #tpu.dot_dimension_numbers<[1], [0], [0], [1], [0, 0, 1, 1], [], []>} : vector<4x16xbf16>, vector<16x16xbf16>, vector<4x16xf32> -> vector<4x16xf32>
    %237 = arith.truncf %236 : vector<4x16xf32> to vector<4x16xbf16>
    %c3_108 = arith.constant 3 : index
    %c0_109 = arith.constant 0 : index
    %c0_110 = arith.constant 0 : index
    %238 = vector.load %arg4[%c3_108, %c0_109, %c0_110] : memref<4x8x4xbf16, #tpu.memory_space<vmem>>, vector<1x8x4xbf16>
    %239 = vector.shape_cast %238 : vector<1x8x4xbf16> to vector<8x4xbf16>
    %cst_111 = arith.constant dense<0.000000e+00> : vector<8x16xf32>
    %240 = tpu.matmul %239, %237, %cst_111 {dimension_numbers = #tpu.dot_dimension_numbers<[1], [0], [0], [1], [0, 0, 1, 1], [], []>} : vector<8x4xbf16>, vector<4x16xbf16>, vector<8x16xf32> -> vector<8x16xf32>
    %241 = arith.addf %228, %240 : vector<8x16xf32>
    %242 = vector.broadcast %2 : vector<8x1xf32> to vector<8x16xf32>
    %243 = arith.addf %241, %242 : vector<8x16xf32>
    %c0_112 = arith.constant 0 : index
    %c0_113 = arith.constant 0 : index
    %c3_114 = arith.constant 3 : index
    %c0_115 = arith.constant 0 : index
    %244 = vector.load %arg6[%c0_112, %c0_113, %c3_114, %c0_115] : memref<1x8x8x16xf32, #tpu.memory_space<vmem>>, vector<1x8x1x16xf32>
    %245 = vector.shape_cast %244 : vector<1x8x1x16xf32> to vector<8x16xf32>
    %246 = vector.shape_cast %243 : vector<8x16xf32> to vector<1x8x1x16xf32>
    tpu.vector_store %arg6[%c0_112, %c0_113, %c3_114, %c0_115], %246 {strides = array<i32>} : memref<1x8x8x16xf32, #tpu.memory_space<vmem>>, vector<1x8x1x16xf32>,
    %c0_116 = arith.constant 0 : index
    %c0_117 = arith.constant 0 : index
    %c4 = arith.constant 4 : index
    %c0_118 = arith.constant 0 : index
    %247 = vector.load %arg2[%c0_116, %c0_117, %c4, %c0_118] : memref<1x4x8x16xf32, #tpu.memory_space<vmem>>, vector<1x4x1x16xf32>
    %248 = vector.shape_cast %247 : vector<1x4x1x16xf32> to vector<4x16xf32>
    %249 = arith.truncf %248 : vector<4x16xf32> to vector<4x16xbf16>
    %cst_119 = arith.constant 0.000000e+00 : f32
    %250 = vector.broadcast %cst_119 : f32 to vector<8x16xf32>
    %251 = vector.extract_strided_slice %0 {offsets = [4, 0, 0], sizes = [1, 1, 16], strides = [1, 1, 1]} : vector<8x4x16xi32> to vector<1x1x16xi32>
    %252 = vector.shape_cast %251 : vector<1x1x16xi32> to vector<1x16xi32>
    %253 = vector.broadcast %252 : vector<1x16xi32> to vector<16x16xi32>
    %254 = arith.cmpi eq, %1, %253 : vector<16x16xi32>
    %255 = arith.extui %254 : vector<16x16xi1> to vector<16x16xi32>
    %256 = arith.sitofp %255 : vector<16x16xi32> to vector<16x16xf32>
    %257 = arith.truncf %256 : vector<16x16xf32> to vector<16x16xbf16>
    %cst_120 = arith.constant dense<0.000000e+00> : vector<4x16xf32>
    %258 = tpu.matmul %249, %257, %cst_120 {dimension_numbers = #tpu.dot_dimension_numbers<[1], [0], [0], [1], [0, 0, 1, 1], [], []>} : vector<4x16xbf16>, vector<16x16xbf16>, vector<4x16xf32> -> vector<4x16xf32>
    %259 = arith.truncf %258 : vector<4x16xf32> to vector<4x16xbf16>
    %c0_121 = arith.constant 0 : index
    %c0_122 = arith.constant 0 : index
    %c0_123 = arith.constant 0 : index
    %260 = vector.load %arg4[%c0_121, %c0_122, %c0_123] : memref<4x8x4xbf16, #tpu.memory_space<vmem>>, vector<1x8x4xbf16>
    %261 = vector.shape_cast %260 : vector<1x8x4xbf16> to vector<8x4xbf16>
    %cst_124 = arith.constant dense<0.000000e+00> : vector<8x16xf32>
    %262 = tpu.matmul %261, %259, %cst_124 {dimension_numbers = #tpu.dot_dimension_numbers<[1], [0], [0], [1], [0, 0, 1, 1], [], []>} : vector<8x4xbf16>, vector<4x16xbf16>, vector<8x16xf32> -> vector<8x16xf32>
    %263 = arith.addf %250, %262 : vector<8x16xf32>
    %264 = vector.extract_strided_slice %0 {offsets = [4, 1, 0], sizes = [1, 1, 16], strides = [1, 1, 1]} : vector<8x4x16xi32> to vector<1x1x16xi32>
    %265 = vector.shape_cast %264 : vector<1x1x16xi32> to vector<1x16xi32>
    %266 = vector.broadcast %265 : vector<1x16xi32> to vector<16x16xi32>
    %267 = arith.cmpi eq, %1, %266 : vector<16x16xi32>
    %268 = arith.extui %267 : vector<16x16xi1> to vector<16x16xi32>
    %269 = arith.sitofp %268 : vector<16x16xi32> to vector<16x16xf32>
    %270 = arith.truncf %269 : vector<16x16xf32> to vector<16x16xbf16>
    %cst_125 = arith.constant dense<0.000000e+00> : vector<4x16xf32>
    %271 = tpu.matmul %249, %270, %cst_125 {dimension_numbers = #tpu.dot_dimension_numbers<[1], [0], [0], [1], [0, 0, 1, 1], [], []>} : vector<4x16xbf16>, vector<16x16xbf16>, vector<4x16xf32> -> vector<4x16xf32>
    %272 = arith.truncf %271 : vector<4x16xf32> to vector<4x16xbf16>
    %c1_126 = arith.constant 1 : index
    %c0_127 = arith.constant 0 : index
    %c0_128 = arith.constant 0 : index
    %273 = vector.load %arg4[%c1_126, %c0_127, %c0_128] : memref<4x8x4xbf16, #tpu.memory_space<vmem>>, vector<1x8x4xbf16>
    %274 = vector.shape_cast %273 : vector<1x8x4xbf16> to vector<8x4xbf16>
    %cst_129 = arith.constant dense<0.000000e+00> : vector<8x16xf32>
    %275 = tpu.matmul %274, %272, %cst_129 {dimension_numbers = #tpu.dot_dimension_numbers<[1], [0], [0], [1], [0, 0, 1, 1], [], []>} : vector<8x4xbf16>, vector<4x16xbf16>, vector<8x16xf32> -> vector<8x16xf32>
    %276 = arith.addf %263, %275 : vector<8x16xf32>
    %277 = vector.extract_strided_slice %0 {offsets = [4, 2, 0], sizes = [1, 1, 16], strides = [1, 1, 1]} : vector<8x4x16xi32> to vector<1x1x16xi32>
    %278 = vector.shape_cast %277 : vector<1x1x16xi32> to vector<1x16xi32>
    %279 = vector.broadcast %278 : vector<1x16xi32> to vector<16x16xi32>
    %280 = arith.cmpi eq, %1, %279 : vector<16x16xi32>
    %281 = arith.extui %280 : vector<16x16xi1> to vector<16x16xi32>
    %282 = arith.sitofp %281 : vector<16x16xi32> to vector<16x16xf32>
    %283 = arith.truncf %282 : vector<16x16xf32> to vector<16x16xbf16>
    %cst_130 = arith.constant dense<0.000000e+00> : vector<4x16xf32>
    %284 = tpu.matmul %249, %283, %cst_130 {dimension_numbers = #tpu.dot_dimension_numbers<[1], [0], [0], [1], [0, 0, 1, 1], [], []>} : vector<4x16xbf16>, vector<16x16xbf16>, vector<4x16xf32> -> vector<4x16xf32>
    %285 = arith.truncf %284 : vector<4x16xf32> to vector<4x16xbf16>
    %c2_131 = arith.constant 2 : index
    %c0_132 = arith.constant 0 : index
    %c0_133 = arith.constant 0 : index
    %286 = vector.load %arg4[%c2_131, %c0_132, %c0_133] : memref<4x8x4xbf16, #tpu.memory_space<vmem>>, vector<1x8x4xbf16>
    %287 = vector.shape_cast %286 : vector<1x8x4xbf16> to vector<8x4xbf16>
    %cst_134 = arith.constant dense<0.000000e+00> : vector<8x16xf32>
    %288 = tpu.matmul %287, %285, %cst_134 {dimension_numbers = #tpu.dot_dimension_numbers<[1], [0], [0], [1], [0, 0, 1, 1], [], []>} : vector<8x4xbf16>, vector<4x16xbf16>, vector<8x16xf32> -> vector<8x16xf32>
    %289 = arith.addf %276, %288 : vector<8x16xf32>
    %290 = vector.extract_strided_slice %0 {offsets = [4, 3, 0], sizes = [1, 1, 16], strides = [1, 1, 1]} : vector<8x4x16xi32> to vector<1x1x16xi32>
    %291 = vector.shape_cast %290 : vector<1x1x16xi32> to vector<1x16xi32>
    %292 = vector.broadcast %291 : vector<1x16xi32> to vector<16x16xi32>
    %293 = arith.cmpi eq, %1, %292 : vector<16x16xi32>
    %294 = arith.extui %293 : vector<16x16xi1> to vector<16x16xi32>
    %295 = arith.sitofp %294 : vector<16x16xi32> to vector<16x16xf32>
    %296 = arith.truncf %295 : vector<16x16xf32> to vector<16x16xbf16>
    %cst_135 = arith.constant dense<0.000000e+00> : vector<4x16xf32>
    %297 = tpu.matmul %249, %296, %cst_135 {dimension_numbers = #tpu.dot_dimension_numbers<[1], [0], [0], [1], [0, 0, 1, 1], [], []>} : vector<4x16xbf16>, vector<16x16xbf16>, vector<4x16xf32> -> vector<4x16xf32>
    %298 = arith.truncf %297 : vector<4x16xf32> to vector<4x16xbf16>
    %c3_136 = arith.constant 3 : index
    %c0_137 = arith.constant 0 : index
    %c0_138 = arith.constant 0 : index
    %299 = vector.load %arg4[%c3_136, %c0_137, %c0_138] : memref<4x8x4xbf16, #tpu.memory_space<vmem>>, vector<1x8x4xbf16>
    %300 = vector.shape_cast %299 : vector<1x8x4xbf16> to vector<8x4xbf16>
    %cst_139 = arith.constant dense<0.000000e+00> : vector<8x16xf32>
    %301 = tpu.matmul %300, %298, %cst_139 {dimension_numbers = #tpu.dot_dimension_numbers<[1], [0], [0], [1], [0, 0, 1, 1], [], []>} : vector<8x4xbf16>, vector<4x16xbf16>, vector<8x16xf32> -> vector<8x16xf32>
    %302 = arith.addf %289, %301 : vector<8x16xf32>
    %303 = vector.broadcast %2 : vector<8x1xf32> to vector<8x16xf32>
    %304 = arith.addf %302, %303 : vector<8x16xf32>
    %c0_140 = arith.constant 0 : index
    %c0_141 = arith.constant 0 : index
    %c4_142 = arith.constant 4 : index
    %c0_143 = arith.constant 0 : index
    %305 = vector.load %arg6[%c0_140, %c0_141, %c4_142, %c0_143] : memref<1x8x8x16xf32, #tpu.memory_space<vmem>>, vector<1x8x1x16xf32>
    %306 = vector.shape_cast %305 : vector<1x8x1x16xf32> to vector<8x16xf32>
    %307 = vector.shape_cast %304 : vector<8x16xf32> to vector<1x8x1x16xf32>
    tpu.vector_store %arg6[%c0_140, %c0_141, %c4_142, %c0_143], %307 {strides = array<i32>} : memref<1x8x8x16xf32, #tpu.memory_space<vmem>>, vector<1x8x1x16xf32>,
    %c0_144 = arith.constant 0 : index
    %c0_145 = arith.constant 0 : index
    %c5 = arith.constant 5 : index
    %c0_146 = arith.constant 0 : index
    %308 = vector.load %arg2[%c0_144, %c0_145, %c5, %c0_146] : memref<1x4x8x16xf32, #tpu.memory_space<vmem>>, vector<1x4x1x16xf32>
    %309 = vector.shape_cast %308 : vector<1x4x1x16xf32> to vector<4x16xf32>
    %310 = arith.truncf %309 : vector<4x16xf32> to vector<4x16xbf16>
    %cst_147 = arith.constant 0.000000e+00 : f32
    %311 = vector.broadcast %cst_147 : f32 to vector<8x16xf32>
    %312 = vector.extract_strided_slice %0 {offsets = [5, 0, 0], sizes = [1, 1, 16], strides = [1, 1, 1]} : vector<8x4x16xi32> to vector<1x1x16xi32>
    %313 = vector.shape_cast %312 : vector<1x1x16xi32> to vector<1x16xi32>
    %314 = vector.broadcast %313 : vector<1x16xi32> to vector<16x16xi32>
    %315 = arith.cmpi eq, %1, %314 : vector<16x16xi32>
    %316 = arith.extui %315 : vector<16x16xi1> to vector<16x16xi32>
    %317 = arith.sitofp %316 : vector<16x16xi32> to vector<16x16xf32>
    %318 = arith.truncf %317 : vector<16x16xf32> to vector<16x16xbf16>
    %cst_148 = arith.constant dense<0.000000e+00> : vector<4x16xf32>
    %319 = tpu.matmul %310, %318, %cst_148 {dimension_numbers = #tpu.dot_dimension_numbers<[1], [0], [0], [1], [0, 0, 1, 1], [], []>} : vector<4x16xbf16>, vector<16x16xbf16>, vector<4x16xf32> -> vector<4x16xf32>
    %320 = arith.truncf %319 : vector<4x16xf32> to vector<4x16xbf16>
    %c0_149 = arith.constant 0 : index
    %c0_150 = arith.constant 0 : index
    %c0_151 = arith.constant 0 : index
    %321 = vector.load %arg4[%c0_149, %c0_150, %c0_151] : memref<4x8x4xbf16, #tpu.memory_space<vmem>>, vector<1x8x4xbf16>
    %322 = vector.shape_cast %321 : vector<1x8x4xbf16> to vector<8x4xbf16>
    %cst_152 = arith.constant dense<0.000000e+00> : vector<8x16xf32>
    %323 = tpu.matmul %322, %320, %cst_152 {dimension_numbers = #tpu.dot_dimension_numbers<[1], [0], [0], [1], [0, 0, 1, 1], [], []>} : vector<8x4xbf16>, vector<4x16xbf16>, vector<8x16xf32> -> vector<8x16xf32>
    %324 = arith.addf %311, %323 : vector<8x16xf32>
    %325 = vector.extract_strided_slice %0 {offsets = [5, 1, 0], sizes = [1, 1, 16], strides = [1, 1, 1]} : vector<8x4x16xi32> to vector<1x1x16xi32>
    %326 = vector.shape_cast %325 : vector<1x1x16xi32> to vector<1x16xi32>
    %327 = vector.broadcast %326 : vector<1x16xi32> to vector<16x16xi32>
    %328 = arith.cmpi eq, %1, %327 : vector<16x16xi32>
    %329 = arith.extui %328 : vector<16x16xi1> to vector<16x16xi32>
    %330 = arith.sitofp %329 : vector<16x16xi32> to vector<16x16xf32>
    %331 = arith.truncf %330 : vector<16x16xf32> to vector<16x16xbf16>
    %cst_153 = arith.constant dense<0.000000e+00> : vector<4x16xf32>
    %332 = tpu.matmul %310, %331, %cst_153 {dimension_numbers = #tpu.dot_dimension_numbers<[1], [0], [0], [1], [0, 0, 1, 1], [], []>} : vector<4x16xbf16>, vector<16x16xbf16>, vector<4x16xf32> -> vector<4x16xf32>
    %333 = arith.truncf %332 : vector<4x16xf32> to vector<4x16xbf16>
    %c1_154 = arith.constant 1 : index
    %c0_155 = arith.constant 0 : index
    %c0_156 = arith.constant 0 : index
    %334 = vector.load %arg4[%c1_154, %c0_155, %c0_156] : memref<4x8x4xbf16, #tpu.memory_space<vmem>>, vector<1x8x4xbf16>
    %335 = vector.shape_cast %334 : vector<1x8x4xbf16> to vector<8x4xbf16>
    %cst_157 = arith.constant dense<0.000000e+00> : vector<8x16xf32>
    %336 = tpu.matmul %335, %333, %cst_157 {dimension_numbers = #tpu.dot_dimension_numbers<[1], [0], [0], [1], [0, 0, 1, 1], [], []>} : vector<8x4xbf16>, vector<4x16xbf16>, vector<8x16xf32> -> vector<8x16xf32>
    %337 = arith.addf %324, %336 : vector<8x16xf32>
    %338 = vector.extract_strided_slice %0 {offsets = [5, 2, 0], sizes = [1, 1, 16], strides = [1, 1, 1]} : vector<8x4x16xi32> to vector<1x1x16xi32>
    %339 = vector.shape_cast %338 : vector<1x1x16xi32> to vector<1x16xi32>
    %340 = vector.broadcast %339 : vector<1x16xi32> to vector<16x16xi32>
    %341 = arith.cmpi eq, %1, %340 : vector<16x16xi32>
    %342 = arith.extui %341 : vector<16x16xi1> to vector<16x16xi32>
    %343 = arith.sitofp %342 : vector<16x16xi32> to vector<16x16xf32>
    %344 = arith.truncf %343 : vector<16x16xf32> to vector<16x16xbf16>
    %cst_158 = arith.constant dense<0.000000e+00> : vector<4x16xf32>
    %345 = tpu.matmul %310, %344, %cst_158 {dimension_numbers = #tpu.dot_dimension_numbers<[1], [0], [0], [1], [0, 0, 1, 1], [], []>} : vector<4x16xbf16>, vector<16x16xbf16>, vector<4x16xf32> -> vector<4x16xf32>
    %346 = arith.truncf %345 : vector<4x16xf32> to vector<4x16xbf16>
    %c2_159 = arith.constant 2 : index
    %c0_160 = arith.constant 0 : index
    %c0_161 = arith.constant 0 : index
    %347 = vector.load %arg4[%c2_159, %c0_160, %c0_161] : memref<4x8x4xbf16, #tpu.memory_space<vmem>>, vector<1x8x4xbf16>
    %348 = vector.shape_cast %347 : vector<1x8x4xbf16> to vector<8x4xbf16>
    %cst_162 = arith.constant dense<0.000000e+00> : vector<8x16xf32>
    %349 = tpu.matmul %348, %346, %cst_162 {dimension_numbers = #tpu.dot_dimension_numbers<[1], [0], [0], [1], [0, 0, 1, 1], [], []>} : vector<8x4xbf16>, vector<4x16xbf16>, vector<8x16xf32> -> vector<8x16xf32>
    %350 = arith.addf %337, %349 : vector<8x16xf32>
    %351 = vector.extract_strided_slice %0 {offsets = [5, 3, 0], sizes = [1, 1, 16], strides = [1, 1, 1]} : vector<8x4x16xi32> to vector<1x1x16xi32>
    %352 = vector.shape_cast %351 : vector<1x1x16xi32> to vector<1x16xi32>
    %353 = vector.broadcast %352 : vector<1x16xi32> to vector<16x16xi32>
    %354 = arith.cmpi eq, %1, %353 : vector<16x16xi32>
    %355 = arith.extui %354 : vector<16x16xi1> to vector<16x16xi32>
    %356 = arith.sitofp %355 : vector<16x16xi32> to vector<16x16xf32>
    %357 = arith.truncf %356 : vector<16x16xf32> to vector<16x16xbf16>
    %cst_163 = arith.constant dense<0.000000e+00> : vector<4x16xf32>
    %358 = tpu.matmul %310, %357, %cst_163 {dimension_numbers = #tpu.dot_dimension_numbers<[1], [0], [0], [1], [0, 0, 1, 1], [], []>} : vector<4x16xbf16>, vector<16x16xbf16>, vector<4x16xf32> -> vector<4x16xf32>
    %359 = arith.truncf %358 : vector<4x16xf32> to vector<4x16xbf16>
    %c3_164 = arith.constant 3 : index
    %c0_165 = arith.constant 0 : index
    %c0_166 = arith.constant 0 : index
    %360 = vector.load %arg4[%c3_164, %c0_165, %c0_166] : memref<4x8x4xbf16, #tpu.memory_space<vmem>>, vector<1x8x4xbf16>
    %361 = vector.shape_cast %360 : vector<1x8x4xbf16> to vector<8x4xbf16>
    %cst_167 = arith.constant dense<0.000000e+00> : vector<8x16xf32>
    %362 = tpu.matmul %361, %359, %cst_167 {dimension_numbers = #tpu.dot_dimension_numbers<[1], [0], [0], [1], [0, 0, 1, 1], [], []>} : vector<8x4xbf16>, vector<4x16xbf16>, vector<8x16xf32> -> vector<8x16xf32>
    %363 = arith.addf %350, %362 : vector<8x16xf32>
    %364 = vector.broadcast %2 : vector<8x1xf32> to vector<8x16xf32>
    %365 = arith.addf %363, %364 : vector<8x16xf32>
    %c0_168 = arith.constant 0 : index
    %c0_169 = arith.constant 0 : index
    %c5_170 = arith.constant 5 : index
    %c0_171 = arith.constant 0 : index
    %366 = vector.load %arg6[%c0_168, %c0_169, %c5_170, %c0_171] : memref<1x8x8x16xf32, #tpu.memory_space<vmem>>, vector<1x8x1x16xf32>
    %367 = vector.shape_cast %366 : vector<1x8x1x16xf32> to vector<8x16xf32>
    %368 = vector.shape_cast %365 : vector<8x16xf32> to vector<1x8x1x16xf32>
    tpu.vector_store %arg6[%c0_168, %c0_169, %c5_170, %c0_171], %368 {strides = array<i32>} : memref<1x8x8x16xf32, #tpu.memory_space<vmem>>, vector<1x8x1x16xf32>,
    %c0_172 = arith.constant 0 : index
    %c0_173 = arith.constant 0 : index
    %c6 = arith.constant 6 : index
    %c0_174 = arith.constant 0 : index
    %369 = vector.load %arg2[%c0_172, %c0_173, %c6, %c0_174] : memref<1x4x8x16xf32, #tpu.memory_space<vmem>>, vector<1x4x1x16xf32>
    %370 = vector.shape_cast %369 : vector<1x4x1x16xf32> to vector<4x16xf32>
    %371 = arith.truncf %370 : vector<4x16xf32> to vector<4x16xbf16>
    %cst_175 = arith.constant 0.000000e+00 : f32
    %372 = vector.broadcast %cst_175 : f32 to vector<8x16xf32>
    %373 = vector.extract_strided_slice %0 {offsets = [6, 0, 0], sizes = [1, 1, 16], strides = [1, 1, 1]} : vector<8x4x16xi32> to vector<1x1x16xi32>
    %374 = vector.shape_cast %373 : vector<1x1x16xi32> to vector<1x16xi32>
    %375 = vector.broadcast %374 : vector<1x16xi32> to vector<16x16xi32>
    %376 = arith.cmpi eq, %1, %375 : vector<16x16xi32>
    %377 = arith.extui %376 : vector<16x16xi1> to vector<16x16xi32>
    %378 = arith.sitofp %377 : vector<16x16xi32> to vector<16x16xf32>
    %379 = arith.truncf %378 : vector<16x16xf32> to vector<16x16xbf16>
    %cst_176 = arith.constant dense<0.000000e+00> : vector<4x16xf32>
    %380 = tpu.matmul %371, %379, %cst_176 {dimension_numbers = #tpu.dot_dimension_numbers<[1], [0], [0], [1], [0, 0, 1, 1], [], []>} : vector<4x16xbf16>, vector<16x16xbf16>, vector<4x16xf32> -> vector<4x16xf32>
    %381 = arith.truncf %380 : vector<4x16xf32> to vector<4x16xbf16>
    %c0_177 = arith.constant 0 : index
    %c0_178 = arith.constant 0 : index
    %c0_179 = arith.constant 0 : index
    %382 = vector.load %arg4[%c0_177, %c0_178, %c0_179] : memref<4x8x4xbf16, #tpu.memory_space<vmem>>, vector<1x8x4xbf16>
    %383 = vector.shape_cast %382 : vector<1x8x4xbf16> to vector<8x4xbf16>
    %cst_180 = arith.constant dense<0.000000e+00> : vector<8x16xf32>
    %384 = tpu.matmul %383, %381, %cst_180 {dimension_numbers = #tpu.dot_dimension_numbers<[1], [0], [0], [1], [0, 0, 1, 1], [], []>} : vector<8x4xbf16>, vector<4x16xbf16>, vector<8x16xf32> -> vector<8x16xf32>
    %385 = arith.addf %372, %384 : vector<8x16xf32>
    %386 = vector.extract_strided_slice %0 {offsets = [6, 1, 0], sizes = [1, 1, 16], strides = [1, 1, 1]} : vector<8x4x16xi32> to vector<1x1x16xi32>
    %387 = vector.shape_cast %386 : vector<1x1x16xi32> to vector<1x16xi32>
    %388 = vector.broadcast %387 : vector<1x16xi32> to vector<16x16xi32>
    %389 = arith.cmpi eq, %1, %388 : vector<16x16xi32>
    %390 = arith.extui %389 : vector<16x16xi1> to vector<16x16xi32>
    %391 = arith.sitofp %390 : vector<16x16xi32> to vector<16x16xf32>
    %392 = arith.truncf %391 : vector<16x16xf32> to vector<16x16xbf16>
    %cst_181 = arith.constant dense<0.000000e+00> : vector<4x16xf32>
    %393 = tpu.matmul %371, %392, %cst_181 {dimension_numbers = #tpu.dot_dimension_numbers<[1], [0], [0], [1], [0, 0, 1, 1], [], []>} : vector<4x16xbf16>, vector<16x16xbf16>, vector<4x16xf32> -> vector<4x16xf32>
    %394 = arith.truncf %393 : vector<4x16xf32> to vector<4x16xbf16>
    %c1_182 = arith.constant 1 : index
    %c0_183 = arith.constant 0 : index
    %c0_184 = arith.constant 0 : index
    %395 = vector.load %arg4[%c1_182, %c0_183, %c0_184] : memref<4x8x4xbf16, #tpu.memory_space<vmem>>, vector<1x8x4xbf16>
    %396 = vector.shape_cast %395 : vector<1x8x4xbf16> to vector<8x4xbf16>
    %cst_185 = arith.constant dense<0.000000e+00> : vector<8x16xf32>
    %397 = tpu.matmul %396, %394, %cst_185 {dimension_numbers = #tpu.dot_dimension_numbers<[1], [0], [0], [1], [0, 0, 1, 1], [], []>} : vector<8x4xbf16>, vector<4x16xbf16>, vector<8x16xf32> -> vector<8x16xf32>
    %398 = arith.addf %385, %397 : vector<8x16xf32>
    %399 = vector.extract_strided_slice %0 {offsets = [6, 2, 0], sizes = [1, 1, 16], strides = [1, 1, 1]} : vector<8x4x16xi32> to vector<1x1x16xi32>
    %400 = vector.shape_cast %399 : vector<1x1x16xi32> to vector<1x16xi32>
    %401 = vector.broadcast %400 : vector<1x16xi32> to vector<16x16xi32>
    %402 = arith.cmpi eq, %1, %401 : vector<16x16xi32>
    %403 = arith.extui %402 : vector<16x16xi1> to vector<16x16xi32>
    %404 = arith.sitofp %403 : vector<16x16xi32> to vector<16x16xf32>
    %405 = arith.truncf %404 : vector<16x16xf32> to vector<16x16xbf16>
    %cst_186 = arith.constant dense<0.000000e+00> : vector<4x16xf32>
    %406 = tpu.matmul %371, %405, %cst_186 {dimension_numbers = #tpu.dot_dimension_numbers<[1], [0], [0], [1], [0, 0, 1, 1], [], []>} : vector<4x16xbf16>, vector<16x16xbf16>, vector<4x16xf32> -> vector<4x16xf32>
    %407 = arith.truncf %406 : vector<4x16xf32> to vector<4x16xbf16>
    %c2_187 = arith.constant 2 : index
    %c0_188 = arith.constant 0 : index
    %c0_189 = arith.constant 0 : index
    %408 = vector.load %arg4[%c2_187, %c0_188, %c0_189] : memref<4x8x4xbf16, #tpu.memory_space<vmem>>, vector<1x8x4xbf16>
    %409 = vector.shape_cast %408 : vector<1x8x4xbf16> to vector<8x4xbf16>
    %cst_190 = arith.constant dense<0.000000e+00> : vector<8x16xf32>
    %410 = tpu.matmul %409, %407, %cst_190 {dimension_numbers = #tpu.dot_dimension_numbers<[1], [0], [0], [1], [0, 0, 1, 1], [], []>} : vector<8x4xbf16>, vector<4x16xbf16>, vector<8x16xf32> -> vector<8x16xf32>
    %411 = arith.addf %398, %410 : vector<8x16xf32>
    %412 = vector.extract_strided_slice %0 {offsets = [6, 3, 0], sizes = [1, 1, 16], strides = [1, 1, 1]} : vector<8x4x16xi32> to vector<1x1x16xi32>
    %413 = vector.shape_cast %412 : vector<1x1x16xi32> to vector<1x16xi32>
    %414 = vector.broadcast %413 : vector<1x16xi32> to vector<16x16xi32>
    %415 = arith.cmpi eq, %1, %414 : vector<16x16xi32>
    %416 = arith.extui %415 : vector<16x16xi1> to vector<16x16xi32>
    %417 = arith.sitofp %416 : vector<16x16xi32> to vector<16x16xf32>
    %418 = arith.truncf %417 : vector<16x16xf32> to vector<16x16xbf16>
    %cst_191 = arith.constant dense<0.000000e+00> : vector<4x16xf32>
    %419 = tpu.matmul %371, %418, %cst_191 {dimension_numbers = #tpu.dot_dimension_numbers<[1], [0], [0], [1], [0, 0, 1, 1], [], []>} : vector<4x16xbf16>, vector<16x16xbf16>, vector<4x16xf32> -> vector<4x16xf32>
    %420 = arith.truncf %419 : vector<4x16xf32> to vector<4x16xbf16>
    %c3_192 = arith.constant 3 : index
    %c0_193 = arith.constant 0 : index
    %c0_194 = arith.constant 0 : index
    %421 = vector.load %arg4[%c3_192, %c0_193, %c0_194] : memref<4x8x4xbf16, #tpu.memory_space<vmem>>, vector<1x8x4xbf16>
    %422 = vector.shape_cast %421 : vector<1x8x4xbf16> to vector<8x4xbf16>
    %cst_195 = arith.constant dense<0.000000e+00> : vector<8x16xf32>
    %423 = tpu.matmul %422, %420, %cst_195 {dimension_numbers = #tpu.dot_dimension_numbers<[1], [0], [0], [1], [0, 0, 1, 1], [], []>} : vector<8x4xbf16>, vector<4x16xbf16>, vector<8x16xf32> -> vector<8x16xf32>
    %424 = arith.addf %411, %423 : vector<8x16xf32>
    %425 = vector.broadcast %2 : vector<8x1xf32> to vector<8x16xf32>
    %426 = arith.addf %424, %425 : vector<8x16xf32>
    %c0_196 = arith.constant 0 : index
    %c0_197 = arith.constant 0 : index
    %c6_198 = arith.constant 6 : index
    %c0_199 = arith.constant 0 : index
    %427 = vector.load %arg6[%c0_196, %c0_197, %c6_198, %c0_199] : memref<1x8x8x16xf32, #tpu.memory_space<vmem>>, vector<1x8x1x16xf32>
    %428 = vector.shape_cast %427 : vector<1x8x1x16xf32> to vector<8x16xf32>
    %429 = vector.shape_cast %426 : vector<8x16xf32> to vector<1x8x1x16xf32>
    tpu.vector_store %arg6[%c0_196, %c0_197, %c6_198, %c0_199], %429 {strides = array<i32>} : memref<1x8x8x16xf32, #tpu.memory_space<vmem>>, vector<1x8x1x16xf32>,
    %c0_200 = arith.constant 0 : index
    %c0_201 = arith.constant 0 : index
    %c7 = arith.constant 7 : index
    %c0_202 = arith.constant 0 : index
    %430 = vector.load %arg2[%c0_200, %c0_201, %c7, %c0_202] : memref<1x4x8x16xf32, #tpu.memory_space<vmem>>, vector<1x4x1x16xf32>
    %431 = vector.shape_cast %430 : vector<1x4x1x16xf32> to vector<4x16xf32>
    %432 = arith.truncf %431 : vector<4x16xf32> to vector<4x16xbf16>
    %cst_203 = arith.constant 0.000000e+00 : f32
    %433 = vector.broadcast %cst_203 : f32 to vector<8x16xf32>
    %434 = vector.extract_strided_slice %0 {offsets = [7, 0, 0], sizes = [1, 1, 16], strides = [1, 1, 1]} : vector<8x4x16xi32> to vector<1x1x16xi32>
    %435 = vector.shape_cast %434 : vector<1x1x16xi32> to vector<1x16xi32>
    %436 = vector.broadcast %435 : vector<1x16xi32> to vector<16x16xi32>
    %437 = arith.cmpi eq, %1, %436 : vector<16x16xi32>
    %438 = arith.extui %437 : vector<16x16xi1> to vector<16x16xi32>
    %439 = arith.sitofp %438 : vector<16x16xi32> to vector<16x16xf32>
    %440 = arith.truncf %439 : vector<16x16xf32> to vector<16x16xbf16>
    %cst_204 = arith.constant dense<0.000000e+00> : vector<4x16xf32>
    %441 = tpu.matmul %432, %440, %cst_204 {dimension_numbers = #tpu.dot_dimension_numbers<[1], [0], [0], [1], [0, 0, 1, 1], [], []>} : vector<4x16xbf16>, vector<16x16xbf16>, vector<4x16xf32> -> vector<4x16xf32>
    %442 = arith.truncf %441 : vector<4x16xf32> to vector<4x16xbf16>
    %c0_205 = arith.constant 0 : index
    %c0_206 = arith.constant 0 : index
    %c0_207 = arith.constant 0 : index
    %443 = vector.load %arg4[%c0_205, %c0_206, %c0_207] : memref<4x8x4xbf16, #tpu.memory_space<vmem>>, vector<1x8x4xbf16>
    %444 = vector.shape_cast %443 : vector<1x8x4xbf16> to vector<8x4xbf16>
    %cst_208 = arith.constant dense<0.000000e+00> : vector<8x16xf32>
    %445 = tpu.matmul %444, %442, %cst_208 {dimension_numbers = #tpu.dot_dimension_numbers<[1], [0], [0], [1], [0, 0, 1, 1], [], []>} : vector<8x4xbf16>, vector<4x16xbf16>, vector<8x16xf32> -> vector<8x16xf32>
    %446 = arith.addf %433, %445 : vector<8x16xf32>
    %447 = vector.extract_strided_slice %0 {offsets = [7, 1, 0], sizes = [1, 1, 16], strides = [1, 1, 1]} : vector<8x4x16xi32> to vector<1x1x16xi32>
    %448 = vector.shape_cast %447 : vector<1x1x16xi32> to vector<1x16xi32>
    %449 = vector.broadcast %448 : vector<1x16xi32> to vector<16x16xi32>
    %450 = arith.cmpi eq, %1, %449 : vector<16x16xi32>
    %451 = arith.extui %450 : vector<16x16xi1> to vector<16x16xi32>
    %452 = arith.sitofp %451 : vector<16x16xi32> to vector<16x16xf32>
    %453 = arith.truncf %452 : vector<16x16xf32> to vector<16x16xbf16>
    %cst_209 = arith.constant dense<0.000000e+00> : vector<4x16xf32>
    %454 = tpu.matmul %432, %453, %cst_209 {dimension_numbers = #tpu.dot_dimension_numbers<[1], [0], [0], [1], [0, 0, 1, 1], [], []>} : vector<4x16xbf16>, vector<16x16xbf16>, vector<4x16xf32> -> vector<4x16xf32>
    %455 = arith.truncf %454 : vector<4x16xf32> to vector<4x16xbf16>
    %c1_210 = arith.constant 1 : index
    %c0_211 = arith.constant 0 : index
    %c0_212 = arith.constant 0 : index
    %456 = vector.load %arg4[%c1_210, %c0_211, %c0_212] : memref<4x8x4xbf16, #tpu.memory_space<vmem>>, vector<1x8x4xbf16>
    %457 = vector.shape_cast %456 : vector<1x8x4xbf16> to vector<8x4xbf16>
    %cst_213 = arith.constant dense<0.000000e+00> : vector<8x16xf32>
    %458 = tpu.matmul %457, %455, %cst_213 {dimension_numbers = #tpu.dot_dimension_numbers<[1], [0], [0], [1], [0, 0, 1, 1], [], []>} : vector<8x4xbf16>, vector<4x16xbf16>, vector<8x16xf32> -> vector<8x16xf32>
    %459 = arith.addf %446, %458 : vector<8x16xf32>
    %460 = vector.extract_strided_slice %0 {offsets = [7, 2, 0], sizes = [1, 1, 16], strides = [1, 1, 1]} : vector<8x4x16xi32> to vector<1x1x16xi32>
    %461 = vector.shape_cast %460 : vector<1x1x16xi32> to vector<1x16xi32>
    %462 = vector.broadcast %461 : vector<1x16xi32> to vector<16x16xi32>
    %463 = arith.cmpi eq, %1, %462 : vector<16x16xi32>
    %464 = arith.extui %463 : vector<16x16xi1> to vector<16x16xi32>
    %465 = arith.sitofp %464 : vector<16x16xi32> to vector<16x16xf32>
    %466 = arith.truncf %465 : vector<16x16xf32> to vector<16x16xbf16>
    %cst_214 = arith.constant dense<0.000000e+00> : vector<4x16xf32>
    %467 = tpu.matmul %432, %466, %cst_214 {dimension_numbers = #tpu.dot_dimension_numbers<[1], [0], [0], [1], [0, 0, 1, 1], [], []>} : vector<4x16xbf16>, vector<16x16xbf16>, vector<4x16xf32> -> vector<4x16xf32>
    %468 = arith.truncf %467 : vector<4x16xf32> to vector<4x16xbf16>
    %c2_215 = arith.constant 2 : index
    %c0_216 = arith.constant 0 : index
    %c0_217 = arith.constant 0 : index
    %469 = vector.load %arg4[%c2_215, %c0_216, %c0_217] : memref<4x8x4xbf16, #tpu.memory_space<vmem>>, vector<1x8x4xbf16>
    %470 = vector.shape_cast %469 : vector<1x8x4xbf16> to vector<8x4xbf16>
    %cst_218 = arith.constant dense<0.000000e+00> : vector<8x16xf32>
    %471 = tpu.matmul %470, %468, %cst_218 {dimension_numbers = #tpu.dot_dimension_numbers<[1], [0], [0], [1], [0, 0, 1, 1], [], []>} : vector<8x4xbf16>, vector<4x16xbf16>, vector<8x16xf32> -> vector<8x16xf32>
    %472 = arith.addf %459, %471 : vector<8x16xf32>
    %473 = vector.extract_strided_slice %0 {offsets = [7, 3, 0], sizes = [1, 1, 16], strides = [1, 1, 1]} : vector<8x4x16xi32> to vector<1x1x16xi32>
    %474 = vector.shape_cast %473 : vector<1x1x16xi32> to vector<1x16xi32>
    %475 = vector.broadcast %474 : vector<1x16xi32> to vector<16x16xi32>
    %476 = arith.cmpi eq, %1, %475 : vector<16x16xi32>
    %477 = arith.extui %476 : vector<16x16xi1> to vector<16x16xi32>
    %478 = arith.sitofp %477 : vector<16x16xi32> to vector<16x16xf32>
    %479 = arith.truncf %478 : vector<16x16xf32> to vector<16x16xbf16>
    %cst_219 = arith.constant dense<0.000000e+00> : vector<4x16xf32>
    %480 = tpu.matmul %432, %479, %cst_219 {dimension_numbers = #tpu.dot_dimension_numbers<[1], [0], [0], [1], [0, 0, 1, 1], [], []>} : vector<4x16xbf16>, vector<16x16xbf16>, vector<4x16xf32> -> vector<4x16xf32>
    %481 = arith.truncf %480 : vector<4x16xf32> to vector<4x16xbf16>
    %c3_220 = arith.constant 3 : index
    %c0_221 = arith.constant 0 : index
    %c0_222 = arith.constant 0 : index
    %482 = vector.load %arg4[%c3_220, %c0_221, %c0_222] : memref<4x8x4xbf16, #tpu.memory_space<vmem>>, vector<1x8x4xbf16>
    %483 = vector.shape_cast %482 : vector<1x8x4xbf16> to vector<8x4xbf16>
    %cst_223 = arith.constant dense<0.000000e+00> : vector<8x16xf32>
    %484 = tpu.matmul %483, %481, %cst_223 {dimension_numbers = #tpu.dot_dimension_numbers<[1], [0], [0], [1], [0, 0, 1, 1], [], []>} : vector<8x4xbf16>, vector<4x16xbf16>, vector<8x16xf32> -> vector<8x16xf32>
    %485 = arith.addf %472, %484 : vector<8x16xf32>
    %486 = vector.broadcast %2 : vector<8x1xf32> to vector<8x16xf32>
    %487 = arith.addf %485, %486 : vector<8x16xf32>
    %c0_224 = arith.constant 0 : index
    %c0_225 = arith.constant 0 : index
    %c7_226 = arith.constant 7 : index
    %c0_227 = arith.constant 0 : index
    %488 = vector.load %arg6[%c0_224, %c0_225, %c7_226, %c0_227] : memref<1x8x8x16xf32, #tpu.memory_space<vmem>>, vector<1x8x1x16xf32>
    %489 = vector.shape_cast %488 : vector<1x8x1x16xf32> to vector<8x16xf32>
    %490 = vector.shape_cast %487 : vector<8x16xf32> to vector<1x8x1x16xf32>
    tpu.vector_store %arg6[%c0_224, %c0_225, %c7_226, %c0_227], %490 {strides = array<i32>} : memref<1x8x8x16xf32, #tpu.memory_space<vmem>>, vector<1x8x1x16xf32>,
    return
  }
  func.func @transform_0(%arg0: i32, %arg1: i32) -> (i32, i32, i32, i32) {
    %c0_i32 = arith.constant 0 : i32
    %c0_i32_0 = arith.constant 0 : i32
    %c0_i32_1 = arith.constant 0 : i32
    return %arg0, %c0_i32, %arg1, %c0_i32_0 : i32, i32, i32, i32
  }
  func.func @transform_1(%arg0: i32, %arg1: i32) -> (i32, i32, i32) {
    %c0_i32 = arith.constant 0 : i32
    %c0_i32_0 = arith.constant 0 : i32
    %c0_i32_1 = arith.constant 0 : i32
    return %arg1, %c0_i32, %c0_i32_0 : i32, i32, i32
  }
  func.func @transform_2(%arg0: i32, %arg1: i32) -> (i32, i32, i32) {
    %c0_i32 = arith.constant 0 : i32
    %c0_i32_0 = arith.constant 0 : i32
    %c0_i32_1 = arith.constant 0 : i32
    %c0_i32_2 = arith.constant 0 : i32
    return %c0_i32, %c0_i32_0, %c0_i32_1 : i32, i32, i32
  }
  func.func @transform_3(%arg0: i32, %arg1: i32) -> (i32, i32) {
    %c0_i32 = arith.constant 0 : i32
    %c0_i32_0 = arith.constant 0 : i32
    %c0_i32_1 = arith.constant 0 : i32
    return %c0_i32, %c0_i32_0 : i32, i32
  }
  func.func @transform_4(%arg0: i32, %arg1: i32) -> (i32, i32, i32, i32) {
    %c0_i32 = arith.constant 0 : i32
    %c0_i32_0 = arith.constant 0 : i32
    %c0_i32_1 = arith.constant 0 : i32
    return %arg0, %c0_i32, %arg1, %c0_i32_0 : i32, i32, i32, i32
  }
}

</mosaic_0001>

<llo_original>
// kernel: tpu_custom_call.1
$region0: #{tpu_custom_call.1}
  #allocation0 [shape = 'u32[]', space=smem, size = 0x4, offset = 0x4, fixed_abs, tag = 'smem constant byte address 0x4 - core index']
  #allocation1 [shape = 'u32[144,128]{1,0:T(1,128)}', space=vmem, size = 0x12000, scoped, tag = 'internal scratch']
  %s0 = inlined_call_operand.hbm [shape: f32[2,4,16,16], index: 0, kind: input, shape index: {}]
  %s1 = inlined_call_operand.hbm [shape: s32[16,4,16], index: 1, kind: input, shape index: {}]
  %s2 = inlined_call_operand.vmem [shape: bf16[4,8,4], index: 2, kind: input, shape index: {}]
  %s3 = inlined_call_operand.vmem [shape: f32[8,1], index: 3, kind: input, shape index: {}]
  %s4 = inlined_call_operand.hbm [shape: f32[2,8,16,16], index: 4, kind: output, shape index: {}]
  %s5 = sld [smem:[#allocation0]]
  $region57: #{tpu_custom_call.1} parent=0
    _
  %s7 = ssub.s32 1, %s5
  %s8 = scalar_select 0, %s7, %s5
  $region1: #{tpu_custom_call.1} parent=0
    #allocation2 [shape = 'u8[32768]{0}', space=vmem, size = 0x8000, scoped, tag = 'input window, operand 0']
    #allocation3 [shape = 's32[2]{0}', space=sflag, size = 0x8, scoped, tag = 'scoped memory for tpu_custom_call.1']
    #allocation4 [shape = 's32[2]{0}', space=sflag, size = 0x8, scoped, tag = 'scoped memory for tpu_custom_call.1']
    #allocation5 [shape = 'u8[32768]{0}', space=vmem, size = 0x8000, scoped, tag = 'input window, operand 1']
    #allocation6 [shape = 's32[2]{0}', space=sflag, size = 0x8, scoped, tag = 'scoped memory for tpu_custom_call.1']
    #allocation7 [shape = 'u8[65536]{0}', space=vmem, size = 0x10000, scoped, tag = 'output window, operand 0']
    %9 = vsyncpa [#allocation3], 0
    %s10 = scalar_lea.sflag [#allocation3], 1
    %11 = vsyncpa %s10, 0
    %12 = vsyncpa [#allocation6], 0
    %s13 = scalar_lea.sflag [#allocation6], 1
    %14 = vsyncpa %s13, 0
    %15 = vsyncpa [#allocation4], 0
    %s16 = scalar_lea.sflag [#allocation4], 1
    %17 = vsyncpa %s16, 0
    loop: start=0, step=1, limit=6
    $region2: #{tpu_custom_call.1} parent=1 // loop_pre_header
      _
    $region3: #{tpu_custom_call.1} parent=1 // loop_header
      %s19 = sphi 0, %s23
      %p20 = scmp.ge.s32.totalorder %s19, 6
      %s26 = sphi 0, %s38
      %s27 = sphi 0, %s34
      %s28 = sphi 0, %s26
      %s29 = sphi 0, %s27
      %s30 = sphi 0, %s28
      %s31 = sphi 0, %s29
      %s43 = sphi 0, %s45
      %s46 = sphi 0, %s43
      %s47 = sphi 0, %s46
      %s63 = sphi 0, %s47
      %s69 = sphi 0, %s71
      %s72 = sphi 0, %s69
      %s73 = sphi 0, %s72
      %s89 = sphi 0, %s73
      %s93 = sphi 0, %s93
      %s95 = sphi 0, %s93
      %s96 = sphi 0, %s95
      %s110 = sphi 0, %s96
      %s114 = sphi 0, %s114
      %s116 = sphi 0, %s114
      %s117 = sphi 0, %s116
      %s131 = sphi 0, %s117
      %s139 = sphi 0, %s141
      %s142 = sphi 0, %s139
      %s143 = sphi 0, %s142
      %s159 = sphi 0, %s143
    $region4: #{tpu_custom_call.1} parent=1 // loop_header_branch
      %22 = sbr.rel (%p20) target = $region8
    $region5: #{tpu_custom_call.1} parent=1 // loop_body
      %s24 = ssub.s32 %s19, 1
      %s25 = ssub.s32 %s19, 2
      %s32 = sadd.s32 1, %s27
      %p33 = scmp.ge.s32.totalorder %s32, 2
      %s34 = scalar_select %p33, 0, %s32
      %s35 = sadd.s32 1, %s26
      %s36 = scalar_select %p33, %s35, %s26
      %p37 = scmp.ge.s32.totalorder %s36, 2
      %s38 = scalar_select %p37, 0, %s36
      %s39 = ssub.s32 %s26, %s38
      %s40 = ssub.s32 %s27, %s34
      %s41 = sor.u32 %s39, %s40
      %p42 = scmp.eq.s32.totalorder %s41, 0
      %s44 = sadd.s32 %s43, 1
      %s45 = scalar_select %p42, %s43, %s44
      %p48 = pneg %p42
      %p49 = scmp.eq.s32.totalorder %s19, 3
      %p50 = por %p48, %p49
      %p51 = scmp.ne.s32.totalorder %s43, %s46
      %p52 = scmp.eq.s32.totalorder %s19, 0
      %p53 = por %p51, %p52
      %p54 = scmp.ne.s32.totalorder %s43, %s46
      %p55 = scmp.eq.s32.totalorder %s24, 3
      %p56 = por %p54, %p55
      %p57 = scmp.ne.s32.totalorder %s46, %s47
      %p58 = scmp.eq.s32.totalorder %s24, 0
      %p59 = por %p57, %p58
      %p60 = scmp.ne.s32.totalorder %s46, %s47
      %p61 = scmp.eq.s32.totalorder %s25, 3
      %p62 = por %p60, %p61
      %p64 = scmp.ne.s32.totalorder %s47, %s63
      %p65 = scmp.eq.s32.totalorder %s25, 0
      %p66 = por %p64, %p65
      %s67 = ssub.s32 %s27, %s34
      %p68 = scmp.eq.s32.totalorder %s67, 0
      %s70 = sadd.s32 %s69, 1
      %s71 = scalar_select %p68, %s69, %s70
      %p74 = pneg %p68
      %p75 = scmp.eq.s32.totalorder %s19, 3
      %p76 = por %p74, %p75
      %p77 = scmp.ne.s32.totalorder %s69, %s72
      %p78 = scmp.eq.s32.totalorder %s19, 0
      %p79 = por %p77, %p78
      %p80 = scmp.ne.s32.totalorder %s69, %s72
      %p81 = scmp.eq.s32.totalorder %s24, 3
      %p82 = por %p80, %p81
      %p83 = scmp.ne.s32.totalorder %s72, %s73
      %p84 = scmp.eq.s32.totalorder %s24, 0
      %p85 = por %p83, %p84
      %p86 = scmp.ne.s32.totalorder %s72, %s73
      %p87 = scmp.eq.s32.totalorder %s25, 3
      %p88 = por %p86, %p87
      %p90 = scmp.ne.s32.totalorder %s73, %s89
      %p91 = scmp.eq.s32.totalorder %s25, 0
      %p92 = por %p90, %p91
      %s94 = sadd.s32 %s93, 1
      %p97 = scmp.eq.s32.totalorder %s19, 3
      %p98 = scmp.ne.s32.totalorder %s93, %s95
      %p99 = scmp.eq.s32.totalorder %s19, 0
      %p100 = por %p98, %p99
      %p101 = scmp.ne.s32.totalorder %s93, %s95
      %p102 = scmp.eq.s32.totalorder %s24, 3
      %p103 = por %p101, %p102
      %p104 = scmp.ne.s32.totalorder %s95, %s96
      %p105 = scmp.eq.s32.totalorder %s24, 0
      %p106 = por %p104, %p105
      %p107 = scmp.ne.s32.totalorder %s95, %s96
      %p108 = scmp.eq.s32.totalorder %s25, 3
      %p109 = por %p107, %p108
      %p111 = scmp.ne.s32.totalorder %s96, %s110
      %p112 = scmp.eq.s32.totalorder %s25, 0
      %p113 = por %p111, %p112
      %s115 = sadd.s32 %s114, 1
      %p118 = scmp.eq.s32.totalorder %s19, 3
      %p119 = scmp.ne.s32.totalorder %s114, %s116
      %p120 = scmp.eq.s32.totalorder %s19, 0
      %p121 = por %p119, %p120
      %p122 = scmp.ne.s32.totalorder %s114, %s116
      %p123 = scmp.eq.s32.totalorder %s24, 3
      %p124 = por %p122, %p123
      %p125 = scmp.ne.s32.totalorder %s116, %s117
      %p126 = scmp.eq.s32.totalorder %s24, 0
      %p127 = por %p125, %p126
      %p128 = scmp.ne.s32.totalorder %s116, %s117
      %p129 = scmp.eq.s32.totalorder %s25, 3
      %p130 = por %p128, %p129
      %p132 = scmp.ne.s32.totalorder %s117, %s131
      %p133 = scmp.eq.s32.totalorder %s25, 0
      %p134 = por %p132, %p133
      %s135 = ssub.s32 %s26, %s38
      %s136 = ssub.s32 %s27, %s34
      %s137 = sor.u32 %s135, %s136
      %p138 = scmp.eq.s32.totalorder %s137, 0
      %s140 = sadd.s32 %s139, 1
      %s141 = scalar_select %p138, %s139, %s140
      %p144 = pneg %p138
      %p145 = scmp.eq.s32.totalorder %s19, 3
      %p146 = por %p144, %p145
      %p147 = scmp.ne.s32.totalorder %s139, %s142
      %p148 = scmp.eq.s32.totalorder %s19, 0
      %p149 = por %p147, %p148
      %p150 = scmp.ne.s32.totalorder %s139, %s142
      %p151 = scmp.eq.s32.totalorder %s24, 3
      %p152 = por %p150, %p151
      %p153 = scmp.ne.s32.totalorder %s142, %s143
      %p154 = scmp.eq.s32.totalorder %s24, 0
      %p155 = por %p153, %p154
      %p156 = scmp.ne.s32.totalorder %s142, %s143
      %p157 = scmp.eq.s32.totalorder %s25, 3
      %p158 = por %p156, %p157
      %p160 = scmp.ne.s32.totalorder %s143, %s159
      %p161 = scmp.eq.s32.totalorder %s25, 0
      %p162 = por %p160, %p161
      %p163 = scmp.le.s32.totalorder 1, %s19
      %p164 = scmp.lt.s32.totalorder %s19, 5
      %p165 = pnand %p163, %p164
      %p166 = pneg %p165
      // Predicated region
      $region9: #{tpu_custom_call.1} parent=5 // pred_check
        _
      $region10: #{tpu_custom_call.1} parent=5 // pred_check_branch
        %168 = sbr.rel (%p165) target = $region12
      $region11: #{tpu_custom_call.1} parent=5 // pred_region
        %s169 = ssub.s32 %s19, 1
        // Predicated region
        $region13: #{tpu_custom_call.1} parent=11 // pred_check
          %p170 = pneg %p106
        $region14: #{tpu_custom_call.1} parent=11 // pred_check_branch
          %172 = sbr.rel (%p170) target = $region16
        $region15: #{tpu_custom_call.1} parent=11 // pred_region
          _
        $region16: #{tpu_custom_call.1} parent=11 // pred_fallthru
          _
        // Predicated region
        $region17: #{tpu_custom_call.1} parent=11 // pred_check
          %p173 = pneg %p127
        $region18: #{tpu_custom_call.1} parent=11 // pred_check_branch
          %175 = sbr.rel (%p173) target = $region20
        $region19: #{tpu_custom_call.1} parent=11 // pred_region
          _
        $region20: #{tpu_custom_call.1} parent=11 // pred_fallthru
          _
      $region12: #{tpu_custom_call.1} parent=5 // pred_fallthru
        _
      %p176 = scmp.lt.s32.totalorder %s19, 4
      // Predicated region
      $region21: #{tpu_custom_call.1} parent=5 // pred_check
        %p177 = pneg %p176
      $region22: #{tpu_custom_call.1} parent=5 // pred_check_branch
        %179 = sbr.rel (%p177) target = $region24
      $region23: #{tpu_custom_call.1} parent=5 // pred_region
        // Predicated region
        $region25: #{tpu_custom_call.1} parent=23 // pred_check
          %p180 = pneg %p53
        $region26: #{tpu_custom_call.1} parent=23 // pred_check_branch
          %182 = sbr.rel (%p180) target = $region28
        $region27: #{tpu_custom_call.1} parent=23 // pred_region
          %s183 = sand.u32 %s43, 1
          %s184 = scalar_lea.sflag [#allocation3], %s183
          %s185 = sand.u32 %s43, 1
          %s186 = smul.addr %s185, 32
          %s187 = scalar_lea.vmem [#allocation2], %s186
          %s189 = ssub.s32 512, 512
          %190 = vsyncadd %s184, %s189
          %s191 = smul.addr %s26, 8
          %s192 = sadd.s32 %s27, %s191
          %s193 = smul.addr %s192, 128
          %s194 = scalar_lea.hbm %s0, %s193
          %s195 = sshll.u32 %s187, 4
          %s196 = int_to_ptr.vmem [resolvable:$true] %s195
          %201 = dma.hbm_to_vmem [thread:$0]  %s194, 512, %s196, %s184, 256, 128, 8
        $region28: #{tpu_custom_call.1} parent=23 // pred_fallthru
          _
        // Predicated region
        $region29: #{tpu_custom_call.1} parent=23 // pred_check
          %p202 = pneg %p79
        $region30: #{tpu_custom_call.1} parent=23 // pred_check_branch
          %204 = sbr.rel (%p202) target = $region32
        $region31: #{tpu_custom_call.1} parent=23 // pred_region
          %s205 = sand.u32 %s69, 1
          %s206 = scalar_lea.sflag [#allocation6], %s205
          %s207 = sand.u32 %s69, 1
          %s208 = smul.addr %s207, 32
          %s209 = scalar_lea.vmem [#allocation5], %s208
          %s210 = smul.u32 8, %s27
          %s212 = ssub.s32 512, 512
          %213 = vsyncadd %s206, %s212
          %s214 = smul.addr %s210, 64
          %s215 = scalar_lea.hbm %s1, %s214
          %s216 = sshll.u32 %s209, 4
          %s217 = int_to_ptr.vmem [resolvable:$true] %s216
          %222 = dma.hbm_to_vmem [thread:$0]  %s215, 512, %s217, %s206, 64, 64, 4
        $region32: #{tpu_custom_call.1} parent=23 // pred_fallthru
          _
      $region24: #{tpu_custom_call.1} parent=5 // pred_fallthru
        _
      %p223 = scmp.le.s32.totalorder 1, %s19
      %p224 = scmp.lt.s32.totalorder %s19, 5
      %p225 = pnand %p223, %p224
      %p226 = pneg %p225
      // Predicated region
      $region33: #{tpu_custom_call.1} parent=5 // pred_check
        _
      $region34: #{tpu_custom_call.1} parent=5 // pred_check_branch
        %228 = sbr.rel (%p225) target = $region36
      $region35: #{tpu_custom_call.1} parent=5 // pred_region
        %s229 = ssub.s32 %s19, 1
        %s230 = sand.u32 %s46, 1
        %s231 = scalar_lea.sflag [#allocation3], %s230
        %s232 = sand.u32 %s46, 1
        %s233 = smul.addr %s232, 32
        %s234 = scalar_lea.vmem [#allocation2], %s233
        // Predicated region
        $region37: #{tpu_custom_call.1} parent=35 // pred_check
          %p235 = pneg %p59
        $region38: #{tpu_custom_call.1} parent=35 // pred_check_branch
          %237 = sbr.rel (%p235) target = $region40
        $region39: #{tpu_custom_call.1} parent=35 // pred_region
          %238 = dma.done %s231, 512
        $region40: #{tpu_custom_call.1} parent=35 // pred_fallthru
          _
        %s239 = sand.u32 %s72, 1
        %s240 = scalar_lea.sflag [#allocation6], %s239
        %s241 = sand.u32 %s72, 1
        %s242 = smul.addr %s241, 32
        %s243 = scalar_lea.vmem [#allocation5], %s242
        // Predicated region
        $region41: #{tpu_custom_call.1} parent=35 // pred_check
          %p244 = pneg %p85
        $region42: #{tpu_custom_call.1} parent=35 // pred_check_branch
          %246 = sbr.rel (%p244) target = $region44
        $region43: #{tpu_custom_call.1} parent=35 // pred_region
          %247 = dma.done %s240, 512
        $region44: #{tpu_custom_call.1} parent=35 // pred_fallthru
          _
        %s248 = sand.u32 %s46, 1
        %s249 = scalar_lea.sflag [#allocation3], %s248
        %s250 = sand.u32 %s46, 1
        %s251 = smul.addr %s250, 32
        %s252 = scalar_lea.vmem [#allocation2], %s251
        %p253 = pneg %p59
        %p254 = pneg %p56
        %s255 = sand.u32 %s72, 1
        %s256 = scalar_lea.sflag [#allocation6], %s255
        %s257 = sand.u32 %s72, 1
        %s258 = smul.addr %s257, 32
        %s259 = scalar_lea.vmem [#allocation5], %s258
        %p260 = pneg %p85
        %p261 = pneg %p82
        %p262 = pneg %p106
        %p263 = pneg %p103
        %p264 = pneg %p127
        %p265 = pneg %p124
        %p266 = pneg %p155
        %p267 = pneg %p152
        %s268 = sand.u32 %s142, 1
        %s269 = scalar_lea.sflag [#allocation4], %s268
        %s270 = sand.u32 %s142, 1
        %s271 = smul.addr %s270, 64
        %s272 = scalar_lea.vmem [#allocation7], %s271
        %s273 = smul.u32 8, %s29
        %v275 = vld [vmem:[%s243] sm:$0xf]
        %v276 = vld [vmem:[%s243 + $0x4] sm:$0xf]
        %v277 = vld [vmem:[%s243 + $0x8] sm:$0xf]
        %v278 = vld [vmem:[%s243 + $0xc] sm:$0xf]
        %v279 = vld [vmem:[%s243 + $0x10] sm:$0xf]
        %v280 = vld [vmem:[%s243 + $0x14] sm:$0xf]
        %v281 = vld [vmem:[%s243 + $0x18] sm:$0xf]
        %v282 = vld [vmem:[%s243 + $0x1c] sm:$0xf]
        %v283 = vlaneseq
        %v284 = vshrl.u32 %v283, 7
        %v285 = vadd.s32 %v284, 8
        %v286 = vld [vmem:[%s3] sm:$0xff]
        %v287 = vld [vmem:[%s234] sm:$0x1]
        %v288 = vld [vmem:[%s234 + $0x8] sm:$0x1]
        %v289 = vld [vmem:[%s234 + $0x10] sm:$0x1]
        %v290 = vld [vmem:[%s234 + $0x18] sm:$0x1]
        %v291 = vpack.c.bf16 %v287, %v287
        %v292 = vpack.c.bf16 %v288, %v288
        %v293 = vpack.c.bf16 %v289, %v289
        %v294 = vpack.c.bf16 %v290, %v290
        %v295 = vlaneseq
        %v296 = vshrl.u32 %v295, 7
        %v297 = vsub.s32 0, %v296
        %v298 = vrot.slane %v275, %v297
        %vm299 = vcmp.eq.s32.totalorder %v284, %v298
        %vm300 = vcmp.eq.s32.totalorder %v285, %v298
        %v301 = vsel %vm299, 1, 0
        %v302 = vsel %vm300, 1, 0
        %v303 = vcvt.s32.f32 %v301
        %v304 = vcvt.s32.f32 %v302
        %v305 = vpack.c.bf16 %v304, %v303
        %v310 = vunpack.c.l.b16 %v291
        %v311 = vunpack.c.l.b16 %v292
        %v312 = vunpack.c.l.b16 %v293
        %v313 = vunpack.c.l.b16 %v294
        %v314 = vrot.slane %v311, 7
        %vm315 = vcmask 1041409
        %v316 = vsel %vm315, %v314, %v310
        %v317 = vrot.slane %v312, 6
        %vm318 = vcmask 1042434
        %v319 = vsel %vm318, %v317, %v316
        %v320 = vrot.slane %v313, 5
        %vm321 = vcmask 1043459
        %v322 = vsel %vm321, %v320, %v319
        %v323 = vpack.c.b16 %v322, %v322
        %vm324 = vcmask 130048
        %v326 = vsel %vm324, %v323, 0
        %328 = vmatprep.subr.bf16.mxu0 0
        %329 = vmatpush1.bf16.msra.mxu0 %v305
        %330 = vmatprep.subr.bf16.mxu0 0
        %331 = vmatpush1.bf16.msra.mxu0 0
        %332 = vmatprep.subr.bf16.mxu0 0
        %333 = vmatpush1.bf16.msra.mxu0 0
        %334 = vmatprep.subr.bf16.mxu0 0
        %335 = vmatpush1.bf16.msra.mxu0 0
        %336 = vmatprep.subr.bf16.mxu0 0
        %337 = vmatpush1.bf16.msra.mxu0 0
        %338 = vmatprep.subr.bf16.mxu0 0
        %339 = vmatpush1.bf16.msra.mxu0 0
        %340 = vmatprep.subr.bf16.mxu0 0
        %341 = vmatpush1.bf16.msra.mxu0 0
        %342 = vmatprep.subr.bf16.mxu0 0
        %343 = vmatpush1.bf16.msra.mxu0 0
        %344 = vmatprep.subr.bf16.mxu0 0
        %345 = vmatpush1.bf16.msra.mxu0 0
        %346 = vmatprep.subr.bf16.mxu0 0
        %347 = vmatpush1.bf16.msra.mxu0 0
        %348 = vmatprep.subr.bf16.mxu0 0
        %349 = vmatpush1.bf16.msra.mxu0 0
        %350 = vmatprep.subr.bf16.mxu0 0
        %351 = vmatpush1.bf16.msra.mxu0 0
        %352 = vmatprep.subr.bf16.mxu0 0
        %353 = vmatpush1.bf16.msra.mxu0 0
        %354 = vmatprep.subr.bf16.mxu0 0
        %355 = vmatpush1.bf16.msra.mxu0 0
        %356 = vmatprep.subr.bf16.mxu0 0
        %357 = vmatpush1.bf16.msra.mxu0 0
        %358 = vmatprep.subr.bf16.mxu0 0
        %359 = vmatpush1.bf16.msra.mxu0 0
        %360 = vmatprep.mubr.bf16.mxu0 0
        %361 = vmatmul.mubr.bf16.gmra.mrb[0].mxu0 %v326
        %v362 = vpop.f32.mrb[0].mxu0
        %v363 = vadd.f32 0.0, %v362
        %v364 = vpop.f32.mrb[0].mxu0
        %v365 = vpop.f32.mrb[0].mxu0
        %v366 = vpop.f32.mrb[0].mxu0
        %367 = vdwg.mxu0
        %v368 = vpack.c.bf16 %v363, %v363
        %v369 = vld [vmem:[%s2] sm:$0xf]
        %v370 = vlaneseq
        %v371 = vshrl.u32 %v370, 7
        %v372 = vsub.s32 1, %v371
        %v373 = vrot.slane %v275, %v372
        %vm374 = vcmp.eq.s32.totalorder %v284, %v373
        %vm375 = vcmp.eq.s32.totalorder %v285, %v373
        %v376 = vsel %vm374, 1, 0
        %v377 = vsel %vm375, 1, 0
        %v378 = vcvt.s32.f32 %v376
        %v379 = vcvt.s32.f32 %v377
        %v380 = vpack.c.bf16 %v379, %v378
        %381 = vmatprep.subr.bf16.mxu0 0
        %382 = vmatpush1.bf16.msra.mxu0 %v380
        %383 = vmatprep.subr.bf16.mxu0 0
        %384 = vmatpush1.bf16.msra.mxu0 0
        %385 = vmatprep.subr.bf16.mxu0 0
        %386 = vmatpush1.bf16.msra.mxu0 0
        %387 = vmatprep.subr.bf16.mxu0 0
        %388 = vmatpush1.bf16.msra.mxu0 0
        %389 = vmatprep.subr.bf16.mxu0 0
        %390 = vmatpush1.bf16.msra.mxu0 0
        %391 = vmatprep.subr.bf16.mxu0 0
        %392 = vmatpush1.bf16.msra.mxu0 0
        %393 = vmatprep.subr.bf16.mxu0 0
        %394 = vmatpush1.bf16.msra.mxu0 0
        %395 = vmatprep.subr.bf16.mxu0 0
        %396 = vmatpush1.bf16.msra.mxu0 0
        %397 = vmatprep.subr.bf16.mxu0 0
        %398 = vmatpush1.bf16.msra.mxu0 0
        %399 = vmatprep.subr.bf16.mxu0 0
        %400 = vmatpush1.bf16.msra.mxu0 0
        %401 = vmatprep.subr.bf16.mxu0 0
        %402 = vmatpush1.bf16.msra.mxu0 0
        %403 = vmatprep.subr.bf16.mxu0 0
        %404 = vmatpush1.bf16.msra.mxu0 0
        %405 = vmatprep.subr.bf16.mxu0 0
        %406 = vmatpush1.bf16.msra.mxu0 0
        %407 = vmatprep.subr.bf16.mxu0 0
        %408 = vmatpush1.bf16.msra.mxu0 0
        %409 = vmatprep.subr.bf16.mxu0 0
        %410 = vmatpush1.bf16.msra.mxu0 0
        %411 = vmatprep.subr.bf16.mxu0 0
        %412 = vmatpush1.bf16.msra.mxu0 0
        %413 = vmatprep.mubr.bf16.mxu0 0
        %414 = vmatmul.mubr.bf16.gmra.mrb[0].mxu0 %v326
        %v415 = vpop.f32.mrb[0].mxu0
        %v416 = vadd.f32 0.0, %v415
        %v417 = vpop.f32.mrb[0].mxu0
        %v418 = vpop.f32.mrb[0].mxu0
        %v419 = vpop.f32.mrb[0].mxu0
        %420 = vdwg.mxu0
        %v421 = vpack.c.bf16 %v416, %v416
        %s422 = scalar_lea.vmem %s2, 4
        %v423 = vld [vmem:[%s422] sm:$0xf]
        %vm424 = vcmask 31744
        %v426 = vsel %vm424, %v423, 0
        %vm428 = vcmask 1041408
        %v430 = vsel %vm428, %v421, 0
        %432 = vmatprep.subr.bf16.mxu0 0
        %433 = vmatpush1.bf16.msra.mxu0 %v430
        %434 = vmatprep.subr.bf16.mxu0 0
        %435 = vmatpush1.bf16.msra.mxu0 0
        %436 = vmatprep.subr.bf16.mxu0 0
        %437 = vmatpush1.bf16.msra.mxu0 0
        %438 = vmatprep.subr.bf16.mxu0 0
        %439 = vmatpush1.bf16.msra.mxu0 0
        %440 = vmatprep.subr.bf16.mxu0 0
        %441 = vmatpush1.bf16.msra.mxu0 0
        %442 = vmatprep.subr.bf16.mxu0 0
        %443 = vmatpush1.bf16.msra.mxu0 0
        %444 = vmatprep.subr.bf16.mxu0 0
        %445 = vmatpush1.bf16.msra.mxu0 0
        %446 = vmatprep.subr.bf16.mxu0 0
        %447 = vmatpush1.bf16.msra.mxu0 0
        %448 = vmatprep.subr.bf16.mxu0 0
        %449 = vmatpush1.bf16.msra.mxu0 0
        %450 = vmatprep.subr.bf16.mxu0 0
        %451 = vmatpush1.bf16.msra.mxu0 0
        %452 = vmatprep.subr.bf16.mxu0 0
        %453 = vmatpush1.bf16.msra.mxu0 0
        %454 = vmatprep.subr.bf16.mxu0 0
        %455 = vmatpush1.bf16.msra.mxu0 0
        %456 = vmatprep.subr.bf16.mxu0 0
        %457 = vmatpush1.bf16.msra.mxu0 0
        %458 = vmatprep.subr.bf16.mxu0 0
        %459 = vmatpush1.bf16.msra.mxu0 0
        %460 = vmatprep.subr.bf16.mxu0 0
        %461 = vmatpush1.bf16.msra.mxu0 0
        %462 = vmatprep.subr.bf16.mxu0 0
        %463 = vmatpush1.bf16.msra.mxu0 0
        %464 = vmatprep.mubr.bf16.mxu0 0
        %465 = vmatmul.mubr.bf16.gmra.mrb[0].mxu0 %v426
        %v466 = vpop.f32.mrb[0].mxu0
        %v467 = vadd.f32 0.0, %v466
        %v468 = vpop.f32.mrb[0].mxu0
        %v469 = vpop.f32.mrb[0].mxu0
        %v470 = vpop.f32.mrb[0].mxu0
        %471 = vdwg.mxu0
        %v473 = vsel %vm424, %v369, 0
        %v476 = vsel %vm428, %v368, 0
        %478 = vmatprep.subr.bf16.mxu0 0
        %479 = vmatpush1.bf16.msra.mxu0 %v476
        %480 = vmatprep.subr.bf16.mxu0 0
        %481 = vmatpush1.bf16.msra.mxu0 0
        %482 = vmatprep.subr.bf16.mxu0 0
        %483 = vmatpush1.bf16.msra.mxu0 0
        %484 = vmatprep.subr.bf16.mxu0 0
        %485 = vmatpush1.bf16.msra.mxu0 0
        %486 = vmatprep.subr.bf16.mxu0 0
        %487 = vmatpush1.bf16.msra.mxu0 0
        %488 = vmatprep.subr.bf16.mxu0 0
        %489 = vmatpush1.bf16.msra.mxu0 0
        %490 = vmatprep.subr.bf16.mxu0 0
        %491 = vmatpush1.bf16.msra.mxu0 0
        %492 = vmatprep.subr.bf16.mxu0 0
        %493 = vmatpush1.bf16.msra.mxu0 0
        %494 = vmatprep.subr.bf16.mxu0 0
        %495 = vmatpush1.bf16.msra.mxu0 0
        %496 = vmatprep.subr.bf16.mxu0 0
        %497 = vmatpush1.bf16.msra.mxu0 0
        %498 = vmatprep.subr.bf16.mxu0 0
        %499 = vmatpush1.bf16.msra.mxu0 0
        %500 = vmatprep.subr.bf16.mxu0 0
        %501 = vmatpush1.bf16.msra.mxu0 0
        %502 = vmatprep.subr.bf16.mxu0 0
        %503 = vmatpush1.bf16.msra.mxu0 0
        %504 = vmatprep.subr.bf16.mxu0 0
        %505 = vmatpush1.bf16.msra.mxu0 0
        %506 = vmatprep.subr.bf16.mxu0 0
        %507 = vmatpush1.bf16.msra.mxu0 0
        %508 = vmatprep.subr.bf16.mxu0 0
        %509 = vmatpush1.bf16.msra.mxu0 0
        %510 = vmatprep.mubr.bf16.mxu0 0
        %511 = vmatmul.mubr.bf16.gmra.mrb[0].mxu0 %v473
        %v512 = vpop.f32.mrb[0].mxu0
        %v513 = vadd.f32 %v467, %v512
        %v514 = vpop.f32.mrb[0].mxu0
        %v515 = vpop.f32.mrb[0].mxu0
        %v516 = vpop.f32.mrb[0].mxu0
        %517 = vdwg.mxu0
        %v518 = vlaneseq
        %v519 = vshrl.u32 %v518, 7
        %v520 = vsub.s32 2, %v519
        %v521 = vrot.slane %v275, %v520
        %vm522 = vcmp.eq.s32.totalorder %v284, %v521
        %vm523 = vcmp.eq.s32.totalorder %v285, %v521
        %v524 = vsel %vm522, 1, 0
        %v525 = vsel %vm523, 1, 0
        %v526 = vcvt.s32.f32 %v524
        %v527 = vcvt.s32.f32 %v525
        %v528 = vpack.c.bf16 %v527, %v526
        %529 = vmatprep.subr.bf16.mxu0 0
        %530 = vmatpush1.bf16.msra.mxu0 %v528
        %531 = vmatprep.subr.bf16.mxu0 0
        %532 = vmatpush1.bf16.msra.mxu0 0
        %533 = vmatprep.subr.bf16.mxu0 0
        %534 = vmatpush1.bf16.msra.mxu0 0
        %535 = vmatprep.subr.bf16.mxu0 0
        %536 = vmatpush1.bf16.msra.mxu0 0
        %537 = vmatprep.subr.bf16.mxu0 0
        %538 = vmatpush1.bf16.msra.mxu0 0
        %539 = vmatprep.subr.bf16.mxu0 0
        %540 = vmatpush1.bf16.msra.mxu0 0
        %541 = vmatprep.subr.bf16.mxu0 0
        %542 = vmatpush1.bf16.msra.mxu0 0
        %543 = vmatprep.subr.bf16.mxu0 0
        %544 = vmatpush1.bf16.msra.mxu0 0
        %545 = vmatprep.subr.bf16.mxu0 0
        %546 = vmatpush1.bf16.msra.mxu0 0
        %547 = vmatprep.subr.bf16.mxu0 0
        %548 = vmatpush1.bf16.msra.mxu0 0
        %549 = vmatprep.subr.bf16.mxu0 0
        %550 = vmatpush1.bf16.msra.mxu0 0
        %551 = vmatprep.subr.bf16.mxu0 0
        %552 = vmatpush1.bf16.msra.mxu0 0
        %553 = vmatprep.subr.bf16.mxu0 0
        %554 = vmatpush1.bf16.msra.mxu0 0
        %555 = vmatprep.subr.bf16.mxu0 0
        %556 = vmatpush1.bf16.msra.mxu0 0
        %557 = vmatprep.subr.bf16.mxu0 0
        %558 = vmatpush1.bf16.msra.mxu0 0
        %559 = vmatprep.subr.bf16.mxu0 0
        %560 = vmatpush1.bf16.msra.mxu0 0
        %561 = vmatprep.mubr.bf16.mxu0 0
        %562 = vmatmul.mubr.bf16.gmra.mrb[0].mxu0 %v326
        %v563 = vpop.f32.mrb[0].mxu0
        %v564 = vadd.f32 0.0, %v563
        %v565 = vpop.f32.mrb[0].mxu0
        %v566 = vpop.f32.mrb[0].mxu0
        %v567 = vpop.f32.mrb[0].mxu0
        %568 = vdwg.mxu0
        %v569 = vpack.c.bf16 %v564, %v564
        %s570 = scalar_lea.vmem %s2, 8
        %v571 = vld [vmem:[%s570] sm:$0xf]
        %v573 = vsel %vm424, %v571, 0
        %v576 = vsel %vm428, %v569, 0
        %578 = vmatprep.subr.bf16.mxu0 0
        %579 = vmatpush1.bf16.msra.mxu0 %v576
        %580 = vmatprep.subr.bf16.mxu0 0
        %581 = vmatpush1.bf16.msra.mxu0 0
        %582 = vmatprep.subr.bf16.mxu0 0
        %583 = vmatpush1.bf16.msra.mxu0 0
        %584 = vmatprep.subr.bf16.mxu0 0
        %585 = vmatpush1.bf16.msra.mxu0 0
        %586 = vmatprep.subr.bf16.mxu0 0
        %587 = vmatpush1.bf16.msra.mxu0 0
        %588 = vmatprep.subr.bf16.mxu0 0
        %589 = vmatpush1.bf16.msra.mxu0 0
        %590 = vmatprep.subr.bf16.mxu0 0
        %591 = vmatpush1.bf16.msra.mxu0 0
        %592 = vmatprep.subr.bf16.mxu0 0
        %593 = vmatpush1.bf16.msra.mxu0 0
        %594 = vmatprep.subr.bf16.mxu0 0
        %595 = vmatpush1.bf16.msra.mxu0 0
        %596 = vmatprep.subr.bf16.mxu0 0
        %597 = vmatpush1.bf16.msra.mxu0 0
        %598 = vmatprep.subr.bf16.mxu0 0
        %599 = vmatpush1.bf16.msra.mxu0 0
        %600 = vmatprep.subr.bf16.mxu0 0
        %601 = vmatpush1.bf16.msra.mxu0 0
        %602 = vmatprep.subr.bf16.mxu0 0
        %603 = vmatpush1.bf16.msra.mxu0 0
        %604 = vmatprep.subr.bf16.mxu0 0
        %605 = vmatpush1.bf16.msra.mxu0 0
        %606 = vmatprep.subr.bf16.mxu0 0
        %607 = vmatpush1.bf16.msra.mxu0 0
        %608 = vmatprep.subr.bf16.mxu0 0
        %609 = vmatpush1.bf16.msra.mxu0 0
        %610 = vmatprep.mubr.bf16.mxu0 0
        %611 = vmatmul.mubr.bf16.gmra.mrb[0].mxu0 %v573
        %v612 = vpop.f32.mrb[0].mxu0
        %v613 = vadd.f32 0.0, %v612
        %v614 = vpop.f32.mrb[0].mxu0
        %v615 = vpop.f32.mrb[0].mxu0
        %v616 = vpop.f32.mrb[0].mxu0
        %617 = vdwg.mxu0
        %v618 = vadd.f32 %v513, %v613
        %v619 = vlaneseq
        %v620 = vshrl.u32 %v619, 7
        %v621 = vsub.s32 3, %v620
        %v622 = vrot.slane %v275, %v621
        %vm623 = vcmp.eq.s32.totalorder %v284, %v622
        %vm624 = vcmp.eq.s32.totalorder %v285, %v622
        %v625 = vsel %vm623, 1, 0
        %v626 = vsel %vm624, 1, 0
        %v627 = vcvt.s32.f32 %v625
        %v628 = vcvt.s32.f32 %v626
        %v629 = vpack.c.bf16 %v628, %v627
        %630 = vmatprep.subr.bf16.mxu0 0
        %631 = vmatpush1.bf16.msra.mxu0 %v629
        %632 = vmatprep.subr.bf16.mxu0 0
        %633 = vmatpush1.bf16.msra.mxu0 0
        %634 = vmatprep.subr.bf16.mxu0 0
        %635 = vmatpush1.bf16.msra.mxu0 0
        %636 = vmatprep.subr.bf16.mxu0 0
        %637 = vmatpush1.bf16.msra.mxu0 0
        %638 = vmatprep.subr.bf16.mxu0 0
        %639 = vmatpush1.bf16.msra.mxu0 0
        %640 = vmatprep.subr.bf16.mxu0 0
        %641 = vmatpush1.bf16.msra.mxu0 0
        %642 = vmatprep.subr.bf16.mxu0 0
        %643 = vmatpush1.bf16.msra.mxu0 0
        %644 = vmatprep.subr.bf16.mxu0 0
        %645 = vmatpush1.bf16.msra.mxu0 0
        %646 = vmatprep.subr.bf16.mxu0 0
        %647 = vmatpush1.bf16.msra.mxu0 0
        %648 = vmatprep.subr.bf16.mxu0 0
        %649 = vmatpush1.bf16.msra.mxu0 0
        %650 = vmatprep.subr.bf16.mxu0 0
        %651 = vmatpush1.bf16.msra.mxu0 0
        %652 = vmatprep.subr.bf16.mxu0 0
        %653 = vmatpush1.bf16.msra.mxu0 0
        %654 = vmatprep.subr.bf16.mxu0 0
        %655 = vmatpush1.bf16.msra.mxu0 0
        %656 = vmatprep.subr.bf16.mxu0 0
        %657 = vmatpush1.bf16.msra.mxu0 0
        %658 = vmatprep.subr.bf16.mxu0 0
        %659 = vmatpush1.bf16.msra.mxu0 0
        %660 = vmatprep.subr.bf16.mxu0 0
        %661 = vmatpush1.bf16.msra.mxu0 0
        %662 = vmatprep.mubr.bf16.mxu0 0
        %663 = vmatmul.mubr.bf16.gmra.mrb[0].mxu0 %v326
        %v664 = vpop.f32.mrb[0].mxu0
        %v665 = vadd.f32 0.0, %v664
        %v666 = vpop.f32.mrb[0].mxu0
        %v667 = vpop.f32.mrb[0].mxu0
        %v668 = vpop.f32.mrb[0].mxu0
        %669 = vdwg.mxu0
        %v670 = vpack.c.bf16 %v665, %v665
        %s671 = scalar_lea.vmem %s2, 12
        %v672 = vld [vmem:[%s671] sm:$0xf]
        %v674 = vsel %vm424, %v672, 0
        %v677 = vsel %vm428, %v670, 0
        %679 = vmatprep.subr.bf16.mxu0 0
        %680 = vmatpush1.bf16.msra.mxu0 %v677
        %681 = vmatprep.subr.bf16.mxu0 0
        %682 = vmatpush1.bf16.msra.mxu0 0
        %683 = vmatprep.subr.bf16.mxu0 0
        %684 = vmatpush1.bf16.msra.mxu0 0
        %685 = vmatprep.subr.bf16.mxu0 0
        %686 = vmatpush1.bf16.msra.mxu0 0
        %687 = vmatprep.subr.bf16.mxu0 0
        %688 = vmatpush1.bf16.msra.mxu0 0
        %689 = vmatprep.subr.bf16.mxu0 0
        %690 = vmatpush1.bf16.msra.mxu0 0
        %691 = vmatprep.subr.bf16.mxu0 0
        %692 = vmatpush1.bf16.msra.mxu0 0
        %693 = vmatprep.subr.bf16.mxu0 0
        %694 = vmatpush1.bf16.msra.mxu0 0
        %695 = vmatprep.subr.bf16.mxu0 0
        %696 = vmatpush1.bf16.msra.mxu0 0
        %697 = vmatprep.subr.bf16.mxu0 0
        %698 = vmatpush1.bf16.msra.mxu0 0
        %699 = vmatprep.subr.bf16.mxu0 0
        %700 = vmatpush1.bf16.msra.mxu0 0
        %701 = vmatprep.subr.bf16.mxu0 0
        %702 = vmatpush1.bf16.msra.mxu0 0
        %703 = vmatprep.subr.bf16.mxu0 0
        %704 = vmatpush1.bf16.msra.mxu0 0
        %705 = vmatprep.subr.bf16.mxu0 0
        %706 = vmatpush1.bf16.msra.mxu0 0
        %707 = vmatprep.subr.bf16.mxu0 0
        %708 = vmatpush1.bf16.msra.mxu0 0
        %709 = vmatprep.subr.bf16.mxu0 0
        %710 = vmatpush1.bf16.msra.mxu0 0
        %711 = vmatprep.mubr.bf16.mxu0 0
        %712 = vmatmul.mubr.bf16.gmra.mrb[0].mxu0 %v674
        %v713 = vpop.f32.mrb[0].mxu0
        %v714 = vadd.f32 0.0, %v713
        %v715 = vpop.f32.mrb[0].mxu0
        %v716 = vpop.f32.mrb[0].mxu0
        %v717 = vpop.f32.mrb[0].mxu0
        %718 = vdwg.mxu0
        %v719 = vadd.f32 %v618, %v714
        %721 = vset.pattern.permute.xlu0 0
        %722 = vperm.xlu0 %721, %v286
        %v723 = vpop.permute.xlu0 %722
        %v725 = vadd.f32 %v719, %v723
        %v727 = vcombine.high %v725, %v725
        %v729 = vunpack.c.l.s4 1966171168
        %v730 = vunpack.c.0.s8 %v729
        %v731 = vlaneseq
        %v732 = vshrl.u32 %v731, 7
        %v733 = vsub.s32 %v730, %v732
        %v734 = vrot.slane %v725, %v733
        %v736 = vunpack.c.l.s4 1966171168
        %v737 = vunpack.c.0.s8 %v736
        %v738 = vlaneseq
        %v739 = vshrl.u32 %v738, 7
        %v740 = vsub.s32 %v737, %v739
        %v741 = vrot.slane %v727, %v740
        %v742 = vcombine.high %v734, %v734
        %v743 = vcombine.high %v741, %v741
        %v745 = vunpack.c.l.s4 1966171168
        %v746 = vunpack.c.0.s8 %v745
        %v747 = vlaneseq
        %v748 = vshrl.u32 %v747, 7
        %v749 = vsub.s32 %v746, %v748
        %v750 = vrot.slane %v734, %v749
        %v752 = vunpack.c.l.s4 1966171168
        %v753 = vunpack.c.0.s8 %v752
        %v754 = vlaneseq
        %v755 = vshrl.u32 %v754, 7
        %v756 = vsub.s32 %v753, %v755
        %v757 = vrot.slane %v741, %v756
        %v759 = vunpack.c.l.s4 1966171168
        %v760 = vunpack.c.0.s8 %v759
        %v761 = vlaneseq
        %v762 = vshrl.u32 %v761, 7
        %v763 = vsub.s32 %v760, %v762
        %v764 = vrot.slane %v742, %v763
        %v766 = vunpack.c.l.s4 1966171168
        %v767 = vunpack.c.0.s8 %v766
        %v768 = vlaneseq
        %v769 = vshrl.u32 %v768, 7
        %v770 = vsub.s32 %v767, %v769
        %v771 = vrot.slane %v743, %v770
        %v772 = vcombine.high %v750, %v750
        %v773 = vcombine.high %v757, %v757
        %v774 = vcombine.high %v764, %v764
        %v775 = vcombine.high %v771, %v771
        %vm784 = vcmask 122880
        %785 = vst.msk [vmem:[%s272] sm:$0x1] %vm784, %v750
        %786 = vst.msk [vmem:[%s272 + $0x8] sm:$0x1] %vm784, %v764
        %787 = vst.msk [vmem:[%s272 + $0x10] sm:$0x1] %vm784, %v772
        %788 = vst.msk [vmem:[%s272 + $0x18] sm:$0x1] %vm784, %v774
        %789 = vst.msk [vmem:[%s272 + $0x20] sm:$0x1] %vm784, %v757
        %790 = vst.msk [vmem:[%s272 + $0x28] sm:$0x1] %vm784, %v771
        %791 = vst.msk [vmem:[%s272 + $0x30] sm:$0x1] %vm784, %v773
        %792 = vst.msk [vmem:[%s272 + $0x38] sm:$0x1] %vm784, %v775
        %v793 = vld [vmem:[%s234 + $0x1] sm:$0x1]
        %v794 = vld [vmem:[%s234 + $0x9] sm:$0x1]
        %v795 = vld [vmem:[%s234 + $0x11] sm:$0x1]
        %v796 = vld [vmem:[%s234 + $0x19] sm:$0x1]
        %v797 = vpack.c.bf16 %v793, %v793
        %v798 = vpack.c.bf16 %v794, %v794
        %v799 = vpack.c.bf16 %v795, %v795
        %v800 = vpack.c.bf16 %v796, %v796
        %v801 = vlaneseq
        %v802 = vshrl.u32 %v801, 7
        %v803 = vsub.s32 0, %v802
        %v804 = vrot.slane %v276, %v803
        %vm805 = vcmp.eq.s32.totalorder %v284, %v804
        %vm806 = vcmp.eq.s32.totalorder %v285, %v804
        %v807 = vsel %vm805, 1, 0
        %v808 = vsel %vm806, 1, 0
        %v809 = vcvt.s32.f32 %v807
        %v810 = vcvt.s32.f32 %v808
        %v811 = vpack.c.bf16 %v810, %v809
        %v816 = vunpack.c.l.b16 %v797
        %v817 = vunpack.c.l.b16 %v798
        %v818 = vunpack.c.l.b16 %v799
        %v819 = vunpack.c.l.b16 %v800
        %v820 = vrot.slane %v817, 7
        %v821 = vsel %vm315, %v820, %v816
        %v822 = vrot.slane %v818, 6
        %v823 = vsel %vm318, %v822, %v821
        %v824 = vrot.slane %v819, 5
        %v825 = vsel %vm321, %v824, %v823
        %v826 = vpack.c.b16 %v825, %v825
        %v828 = vsel %vm324, %v826, 0
        %830 = vmatprep.subr.bf16.mxu0 0
        %831 = vmatpush1.bf16.msra.mxu0 %v811
        %832 = vmatprep.subr.bf16.mxu0 0
        %833 = vmatpush1.bf16.msra.mxu0 0
        %834 = vmatprep.subr.bf16.mxu0 0
        %835 = vmatpush1.bf16.msra.mxu0 0
        %836 = vmatprep.subr.bf16.mxu0 0
        %837 = vmatpush1.bf16.msra.mxu0 0
        %838 = vmatprep.subr.bf16.mxu0 0
        %839 = vmatpush1.bf16.msra.mxu0 0
        %840 = vmatprep.subr.bf16.mxu0 0
        %841 = vmatpush1.bf16.msra.mxu0 0
        %842 = vmatprep.subr.bf16.mxu0 0
        %843 = vmatpush1.bf16.msra.mxu0 0
        %844 = vmatprep.subr.bf16.mxu0 0
        %845 = vmatpush1.bf16.msra.mxu0 0
        %846 = vmatprep.subr.bf16.mxu0 0
        %847 = vmatpush1.bf16.msra.mxu0 0
        %848 = vmatprep.subr.bf16.mxu0 0
        %849 = vmatpush1.bf16.msra.mxu0 0
        %850 = vmatprep.subr.bf16.mxu0 0
        %851 = vmatpush1.bf16.msra.mxu0 0
        %852 = vmatprep.subr.bf16.mxu0 0
        %853 = vmatpush1.bf16.msra.mxu0 0
        %854 = vmatprep.subr.bf16.mxu0 0
        %855 = vmatpush1.bf16.msra.mxu0 0
        %856 = vmatprep.subr.bf16.mxu0 0
        %857 = vmatpush1.bf16.msra.mxu0 0
        %858 = vmatprep.subr.bf16.mxu0 0
        %859 = vmatpush1.bf16.msra.mxu0 0
        %860 = vmatprep.subr.bf16.mxu0 0
        %861 = vmatpush1.bf16.msra.mxu0 0
        %862 = vmatprep.mubr.bf16.mxu0 0
        %863 = vmatmul.mubr.bf16.gmra.mrb[0].mxu0 %v828
        %v864 = vpop.f32.mrb[0].mxu0
        %v865 = vadd.f32 0.0, %v864
        %v866 = vpop.f32.mrb[0].mxu0
        %v867 = vpop.f32.mrb[0].mxu0
        %v868 = vpop.f32.mrb[0].mxu0
        %869 = vdwg.mxu0
        %v870 = vpack.c.bf16 %v865, %v865
        %v871 = vld [vmem:[%s2] sm:$0xf]
        %v872 = vlaneseq
        %v873 = vshrl.u32 %v872, 7
        %v874 = vsub.s32 1, %v873
        %v875 = vrot.slane %v276, %v874
        %vm876 = vcmp.eq.s32.totalorder %v284, %v875
        %vm877 = vcmp.eq.s32.totalorder %v285, %v875
        %v878 = vsel %vm876, 1, 0
        %v879 = vsel %vm877, 1, 0
        %v880 = vcvt.s32.f32 %v878
        %v881 = vcvt.s32.f32 %v879
        %v882 = vpack.c.bf16 %v881, %v880
        %883 = vmatprep.subr.bf16.mxu0 0
        %884 = vmatpush1.bf16.msra.mxu0 %v882
        %885 = vmatprep.subr.bf16.mxu0 0
        %886 = vmatpush1.bf16.msra.mxu0 0
        %887 = vmatprep.subr.bf16.mxu0 0
        %888 = vmatpush1.bf16.msra.mxu0 0
        %889 = vmatprep.subr.bf16.mxu0 0
        %890 = vmatpush1.bf16.msra.mxu0 0
        %891 = vmatprep.subr.bf16.mxu0 0
        %892 = vmatpush1.bf16.msra.mxu0 0
        %893 = vmatprep.subr.bf16.mxu0 0
        %894 = vmatpush1.bf16.msra.mxu0 0
        %895 = vmatprep.subr.bf16.mxu0 0
        %896 = vmatpush1.bf16.msra.mxu0 0
        %897 = vmatprep.subr.bf16.mxu0 0
        %898 = vmatpush1.bf16.msra.mxu0 0
        %899 = vmatprep.subr.bf16.mxu0 0
        %900 = vmatpush1.bf16.msra.mxu0 0
        %901 = vmatprep.subr.bf16.mxu0 0
        %902 = vmatpush1.bf16.msra.mxu0 0
        %903 = vmatprep.subr.bf16.mxu0 0
        %904 = vmatpush1.bf16.msra.mxu0 0
        %905 = vmatprep.subr.bf16.mxu0 0
        %906 = vmatpush1.bf16.msra.mxu0 0
        %907 = vmatprep.subr.bf16.mxu0 0
        %908 = vmatpush1.bf16.msra.mxu0 0
        %909 = vmatprep.subr.bf16.mxu0 0
        %910 = vmatpush1.bf16.msra.mxu0 0
        %911 = vmatprep.subr.bf16.mxu0 0
        %912 = vmatpush1.bf16.msra.mxu0 0
        %913 = vmatprep.subr.bf16.mxu0 0
        %914 = vmatpush1.bf16.msra.mxu0 0
        %915 = vmatprep.mubr.bf16.mxu0 0
        %916 = vmatmul.mubr.bf16.gmra.mrb[0].mxu0 %v828
        %v917 = vpop.f32.mrb[0].mxu0
        %v918 = vadd.f32 0.0, %v917
        %v919 = vpop.f32.mrb[0].mxu0
        %v920 = vpop.f32.mrb[0].mxu0
        %v921 = vpop.f32.mrb[0].mxu0
        %922 = vdwg.mxu0
        %v923 = vpack.c.bf16 %v918, %v918
        %v924 = vld [vmem:[%s422] sm:$0xf]
        %v926 = vsel %vm424, %v924, 0
        %v929 = vsel %vm428, %v923, 0
        %931 = vmatprep.subr.bf16.mxu0 0
        %932 = vmatpush1.bf16.msra.mxu0 %v929
        %933 = vmatprep.subr.bf16.mxu0 0
        %934 = vmatpush1.bf16.msra.mxu0 0
        %935 = vmatprep.subr.bf16.mxu0 0
        %936 = vmatpush1.bf16.msra.mxu0 0
        %937 = vmatprep.subr.bf16.mxu0 0
        %938 = vmatpush1.bf16.msra.mxu0 0
        %939 = vmatprep.subr.bf16.mxu0 0
        %940 = vmatpush1.bf16.msra.mxu0 0
        %941 = vmatprep.subr.bf16.mxu0 0
        %942 = vmatpush1.bf16.msra.mxu0 0
        %943 = vmatprep.subr.bf16.mxu0 0
        %944 = vmatpush1.bf16.msra.mxu0 0
        %945 = vmatprep.subr.bf16.mxu0 0
        %946 = vmatpush1.bf16.msra.mxu0 0
        %947 = vmatprep.subr.bf16.mxu0 0
        %948 = vmatpush1.bf16.msra.mxu0 0
        %949 = vmatprep.subr.bf16.mxu0 0
        %950 = vmatpush1.bf16.msra.mxu0 0
        %951 = vmatprep.subr.bf16.mxu0 0
        %952 = vmatpush1.bf16.msra.mxu0 0
        %953 = vmatprep.subr.bf16.mxu0 0
        %954 = vmatpush1.bf16.msra.mxu0 0
        %955 = vmatprep.subr.bf16.mxu0 0
        %956 = vmatpush1.bf16.msra.mxu0 0
        %957 = vmatprep.subr.bf16.mxu0 0
        %958 = vmatpush1.bf16.msra.mxu0 0
        %959 = vmatprep.subr.bf16.mxu0 0
        %960 = vmatpush1.bf16.msra.mxu0 0
        %961 = vmatprep.subr.bf16.mxu0 0
        %962 = vmatpush1.bf16.msra.mxu0 0
        %963 = vmatprep.mubr.bf16.mxu0 0
        %964 = vmatmul.mubr.bf16.gmra.mrb[0].mxu0 %v926
        %v965 = vpop.f32.mrb[0].mxu0
        %v966 = vadd.f32 0.0, %v965
        %v967 = vpop.f32.mrb[0].mxu0
        %v968 = vpop.f32.mrb[0].mxu0
        %v969 = vpop.f32.mrb[0].mxu0
        %970 = vdwg.mxu0
        %v972 = vsel %vm424, %v871, 0
        %v975 = vsel %vm428, %v870, 0
        %977 = vmatprep.subr.bf16.mxu0 0
        %978 = vmatpush1.bf16.msra.mxu0 %v975
        %979 = vmatprep.subr.bf16.mxu0 0
        %980 = vmatpush1.bf16.msra.mxu0 0
        %981 = vmatprep.subr.bf16.mxu0 0
        %982 = vmatpush1.bf16.msra.mxu0 0
        %983 = vmatprep.subr.bf16.mxu0 0
        %984 = vmatpush1.bf16.msra.mxu0 0
        %985 = vmatprep.subr.bf16.mxu0 0
        %986 = vmatpush1.bf16.msra.mxu0 0
        %987 = vmatprep.subr.bf16.mxu0 0
        %988 = vmatpush1.bf16.msra.mxu0 0
        %989 = vmatprep.subr.bf16.mxu0 0
        %990 = vmatpush1.bf16.msra.mxu0 0
        %991 = vmatprep.subr.bf16.mxu0 0
        %992 = vmatpush1.bf16.msra.mxu0 0
        %993 = vmatprep.subr.bf16.mxu0 0
        %994 = vmatpush1.bf16.msra.mxu0 0
        %995 = vmatprep.subr.bf16.mxu0 0
        %996 = vmatpush1.bf16.msra.mxu0 0
        %997 = vmatprep.subr.bf16.mxu0 0
        %998 = vmatpush1.bf16.msra.mxu0 0
        %999 = vmatprep.subr.bf16.mxu0 0
        %1000 = vmatpush1.bf16.msra.mxu0 0
        %1001 = vmatprep.subr.bf16.mxu0 0
        %1002 = vmatpush1.bf16.msra.mxu0 0
        %1003 = vmatprep.subr.bf16.mxu0 0
        %1004 = vmatpush1.bf16.msra.mxu0 0
        %1005 = vmatprep.subr.bf16.mxu0 0
        %1006 = vmatpush1.bf16.msra.mxu0 0
        %1007 = vmatprep.subr.bf16.mxu0 0
        %1008 = vmatpush1.bf16.msra.mxu0 0
        %1009 = vmatprep.mubr.bf16.mxu0 0
        %1010 = vmatmul.mubr.bf16.gmra.mrb[0].mxu0 %v972
        %v1011 = vpop.f32.mrb[0].mxu0
        %v1012 = vadd.f32 %v966, %v1011
        %v1013 = vpop.f32.mrb[0].mxu0
        %v1014 = vpop.f32.mrb[0].mxu0
        %v1015 = vpop.f32.mrb[0].mxu0
        %1016 = vdwg.mxu0
        %v1017 = vlaneseq
        %v1018 = vshrl.u32 %v1017, 7
        %v1019 = vsub.s32 2, %v1018
        %v1020 = vrot.slane %v276, %v1019
        %vm1021 = vcmp.eq.s32.totalorder %v284, %v1020
        %vm1022 = vcmp.eq.s32.totalorder %v285, %v1020
        %v1023 = vsel %vm1021, 1, 0
        %v1024 = vsel %vm1022, 1, 0
        %v1025 = vcvt.s32.f32 %v1023
        %v1026 = vcvt.s32.f32 %v1024
        %v1027 = vpack.c.bf16 %v1026, %v1025
        %1028 = vmatprep.subr.bf16.mxu0 0
        %1029 = vmatpush1.bf16.msra.mxu0 %v1027
        %1030 = vmatprep.subr.bf16.mxu0 0
        %1031 = vmatpush1.bf16.msra.mxu0 0
        %1032 = vmatprep.subr.bf16.mxu0 0
        %1033 = vmatpush1.bf16.msra.mxu0 0
        %1034 = vmatprep.subr.bf16.mxu0 0
        %1035 = vmatpush1.bf16.msra.mxu0 0
        %1036 = vmatprep.subr.bf16.mxu0 0
        %1037 = vmatpush1.bf16.msra.mxu0 0
        %1038 = vmatprep.subr.bf16.mxu0 0
        %1039 = vmatpush1.bf16.msra.mxu0 0
        %1040 = vmatprep.subr.bf16.mxu0 0
        %1041 = vmatpush1.bf16.msra.mxu0 0
        %1042 = vmatprep.subr.bf16.mxu0 0
        %1043 = vmatpush1.bf16.msra.mxu0 0
        %1044 = vmatprep.subr.bf16.mxu0 0
        %1045 = vmatpush1.bf16.msra.mxu0 0
        %1046 = vmatprep.subr.bf16.mxu0 0
        %1047 = vmatpush1.bf16.msra.mxu0 0
        %1048 = vmatprep.subr.bf16.mxu0 0
        %1049 = vmatpush1.bf16.msra.mxu0 0
        %1050 = vmatprep.subr.bf16.mxu0 0
        %1051 = vmatpush1.bf16.msra.mxu0 0
        %1052 = vmatprep.subr.bf16.mxu0 0
        %1053 = vmatpush1.bf16.msra.mxu0 0
        %1054 = vmatprep.subr.bf16.mxu0 0
        %1055 = vmatpush1.bf16.msra.mxu0 0
        %1056 = vmatprep.subr.bf16.mxu0 0
        %1057 = vmatpush1.bf16.msra.mxu0 0
        %1058 = vmatprep.subr.bf16.mxu0 0
        %1059 = vmatpush1.bf16.msra.mxu0 0
        %1060 = vmatprep.mubr.bf16.mxu0 0
        %1061 = vmatmul.mubr.bf16.gmra.mrb[0].mxu0 %v828
        %v1062 = vpop.f32.mrb[0].mxu0
        %v1063 = vadd.f32 0.0, %v1062
        %v1064 = vpop.f32.mrb[0].mxu0
        %v1065 = vpop.f32.mrb[0].mxu0
        %v1066 = vpop.f32.mrb[0].mxu0
        %1067 = vdwg.mxu0
        %v1068 = vpack.c.bf16 %v1063, %v1063
        %v1069 = vld [vmem:[%s570] sm:$0xf]
        %v1071 = vsel %vm424, %v1069, 0
        %v1074 = vsel %vm428, %v1068, 0
        %1076 = vmatprep.subr.bf16.mxu0 0
        %1077 = vmatpush1.bf16.msra.mxu0 %v1074
        %1078 = vmatprep.subr.bf16.mxu0 0
        %1079 = vmatpush1.bf16.msra.mxu0 0
        %1080 = vmatprep.subr.bf16.mxu0 0
        %1081 = vmatpush1.bf16.msra.mxu0 0
        %1082 = vmatprep.subr.bf16.mxu0 0
        %1083 = vmatpush1.bf16.msra.mxu0 0
        %1084 = vmatprep.subr.bf16.mxu0 0
        %1085 = vmatpush1.bf16.msra.mxu0 0
        %1086 = vmatprep.subr.bf16.mxu0 0
        %1087 = vmatpush1.bf16.msra.mxu0 0
        %1088 = vmatprep.subr.bf16.mxu0 0
        %1089 = vmatpush1.bf16.msra.mxu0 0
        %1090 = vmatprep.subr.bf16.mxu0 0
        %1091 = vmatpush1.bf16.msra.mxu0 0
        %1092 = vmatprep.subr.bf16.mxu0 0
        %1093 = vmatpush1.bf16.msra.mxu0 0
        %1094 = vmatprep.subr.bf16.mxu0 0
        %1095 = vmatpush1.bf16.msra.mxu0 0
        %1096 = vmatprep.subr.bf16.mxu0 0
        %1097 = vmatpush1.bf16.msra.mxu0 0
        %1098 = vmatprep.subr.bf16.mxu0 0
        %1099 = vmatpush1.bf16.msra.mxu0 0
        %1100 = vmatprep.subr.bf16.mxu0 0
        %1101 = vmatpush1.bf16.msra.mxu0 0
        %1102 = vmatprep.subr.bf16.mxu0 0
        %1103 = vmatpush1.bf16.msra.mxu0 0
        %1104 = vmatprep.subr.bf16.mxu0 0
        %1105 = vmatpush1.bf16.msra.mxu0 0
        %1106 = vmatprep.subr.bf16.mxu0 0
        %1107 = vmatpush1.bf16.msra.mxu0 0
        %1108 = vmatprep.mubr.bf16.mxu0 0
        %1109 = vmatmul.mubr.bf16.gmra.mrb[0].mxu0 %v1071
        %v1110 = vpop.f32.mrb[0].mxu0
        %v1111 = vadd.f32 0.0, %v1110
        %v1112 = vpop.f32.mrb[0].mxu0
        %v1113 = vpop.f32.mrb[0].mxu0
        %v1114 = vpop.f32.mrb[0].mxu0
        %1115 = vdwg.mxu0
        %v1116 = vadd.f32 %v1012, %v1111
        %v1117 = vlaneseq
        %v1118 = vshrl.u32 %v1117, 7
        %v1119 = vsub.s32 3, %v1118
        %v1120 = vrot.slane %v276, %v1119
        %vm1121 = vcmp.eq.s32.totalorder %v284, %v1120
        %vm1122 = vcmp.eq.s32.totalorder %v285, %v1120
        %v1123 = vsel %vm1121, 1, 0
        %v1124 = vsel %vm1122, 1, 0
        %v1125 = vcvt.s32.f32 %v1123
        %v1126 = vcvt.s32.f32 %v1124
        %v1127 = vpack.c.bf16 %v1126, %v1125
        %1128 = vmatprep.subr.bf16.mxu0 0
        %1129 = vmatpush1.bf16.msra.mxu0 %v1127
        %1130 = vmatprep.subr.bf16.mxu0 0
        %1131 = vmatpush1.bf16.msra.mxu0 0
        %1132 = vmatprep.subr.bf16.mxu0 0
        %1133 = vmatpush1.bf16.msra.mxu0 0
        %1134 = vmatprep.subr.bf16.mxu0 0
        %1135 = vmatpush1.bf16.msra.mxu0 0
        %1136 = vmatprep.subr.bf16.mxu0 0
        %1137 = vmatpush1.bf16.msra.mxu0 0
        %1138 = vmatprep.subr.bf16.mxu0 0
        %1139 = vmatpush1.bf16.msra.mxu0 0
        %1140 = vmatprep.subr.bf16.mxu0 0
        %1141 = vmatpush1.bf16.msra.mxu0 0
        %1142 = vmatprep.subr.bf16.mxu0 0
        %1143 = vmatpush1.bf16.msra.mxu0 0
        %1144 = vmatprep.subr.bf16.mxu0 0
        %1145 = vmatpush1.bf16.msra.mxu0 0
        %1146 = vmatprep.subr.bf16.mxu0 0
        %1147 = vmatpush1.bf16.msra.mxu0 0
        %1148 = vmatprep.subr.bf16.mxu0 0
        %1149 = vmatpush1.bf16.msra.mxu0 0
        %1150 = vmatprep.subr.bf16.mxu0 0
        %1151 = vmatpush1.bf16.msra.mxu0 0
        %1152 = vmatprep.subr.bf16.mxu0 0
        %1153 = vmatpush1.bf16.msra.mxu0 0
        %1154 = vmatprep.subr.bf16.mxu0 0
        %1155 = vmatpush1.bf16.msra.mxu0 0
        %1156 = vmatprep.subr.bf16.mxu0 0
        %1157 = vmatpush1.bf16.msra.mxu0 0
        %1158 = vmatprep.subr.bf16.mxu0 0
        %1159 = vmatpush1.bf16.msra.mxu0 0
        %1160 = vmatprep.mubr.bf16.mxu0 0
        %1161 = vmatmul.mubr.bf16.gmra.mrb[0].mxu0 %v828
        %v1162 = vpop.f32.mrb[0].mxu0
        %v1163 = vadd.f32 0.0, %v1162
        %v1164 = vpop.f32.mrb[0].mxu0
        %v1165 = vpop.f32.mrb[0].mxu0
        %v1166 = vpop.f32.mrb[0].mxu0
        %1167 = vdwg.mxu0
        %v1168 = vpack.c.bf16 %v1163, %v1163
        %v1169 = vld [vmem:[%s671] sm:$0xf]
        %v1171 = vsel %vm424, %v1169, 0
        %v1174 = vsel %vm428, %v1168, 0
        %1176 = vmatprep.subr.bf16.mxu0 0
        %1177 = vmatpush1.bf16.msra.mxu0 %v1174
        %1178 = vmatprep.subr.bf16.mxu0 0
        %1179 = vmatpush1.bf16.msra.mxu0 0
        %1180 = vmatprep.subr.bf16.mxu0 0
        %1181 = vmatpush1.bf16.msra.mxu0 0
        %1182 = vmatprep.subr.bf16.mxu0 0
        %1183 = vmatpush1.bf16.msra.mxu0 0
        %1184 = vmatprep.subr.bf16.mxu0 0
        %1185 = vmatpush1.bf16.msra.mxu0 0
        %1186 = vmatprep.subr.bf16.mxu0 0
        %1187 = vmatpush1.bf16.msra.mxu0 0
        %1188 = vmatprep.subr.bf16.mxu0 0
        %1189 = vmatpush1.bf16.msra.mxu0 0
        %1190 = vmatprep.subr.bf16.mxu0 0
        %1191 = vmatpush1.bf16.msra.mxu0 0
        %1192 = vmatprep.subr.bf16.mxu0 0
        %1193 = vmatpush1.bf16.msra.mxu0 0
        %1194 = vmatprep.subr.bf16.mxu0 0
        %1195 = vmatpush1.bf16.msra.mxu0 0
        %1196 = vmatprep.subr.bf16.mxu0 0
        %1197 = vmatpush1.bf16.msra.mxu0 0
        %1198 = vmatprep.subr.bf16.mxu0 0
        %1199 = vmatpush1.bf16.msra.mxu0 0
        %1200 = vmatprep.subr.bf16.mxu0 0
        %1201 = vmatpush1.bf16.msra.mxu0 0
        %1202 = vmatprep.subr.bf16.mxu0 0
        %1203 = vmatpush1.bf16.msra.mxu0 0
        %1204 = vmatprep.subr.bf16.mxu0 0
        %1205 = vmatpush1.bf16.msra.mxu0 0
        %1206 = vmatprep.subr.bf16.mxu0 0
        %1207 = vmatpush1.bf16.msra.mxu0 0
        %1208 = vmatprep.mubr.bf16.mxu0 0
        %1209 = vmatmul.mubr.bf16.gmra.mrb[0].mxu0 %v1171
        %v1210 = vpop.f32.mrb[0].mxu0
        %v1211 = vadd.f32 0.0, %v1210
        %v1212 = vpop.f32.mrb[0].mxu0
        %v1213 = vpop.f32.mrb[0].mxu0
        %v1214 = vpop.f32.mrb[0].mxu0
        %1215 = vdwg.mxu0
        %v1216 = vadd.f32 %v1116, %v1211
        %v1217 = vadd.f32 %v1216, %v723
        %v1219 = vcombine.high %v1217, %v1217
        %v1221 = vunpack.c.l.s4 1966171168
        %v1222 = vunpack.c.0.s8 %v1221
        %v1223 = vlaneseq
        %v1224 = vshrl.u32 %v1223, 7
        %v1225 = vsub.s32 %v1222, %v1224
        %v1226 = vrot.slane %v1217, %v1225
        %v1228 = vunpack.c.l.s4 1966171168
        %v1229 = vunpack.c.0.s8 %v1228
        %v1230 = vlaneseq
        %v1231 = vshrl.u32 %v1230, 7
        %v1232 = vsub.s32 %v1229, %v1231
        %v1233 = vrot.slane %v1219, %v1232
        %v1234 = vcombine.high %v1226, %v1226
        %v1235 = vcombine.high %v1233, %v1233
        %v1237 = vunpack.c.l.s4 1966171168
        %v1238 = vunpack.c.0.s8 %v1237
        %v1239 = vlaneseq
        %v1240 = vshrl.u32 %v1239, 7
        %v1241 = vsub.s32 %v1238, %v1240
        %v1242 = vrot.slane %v1226, %v1241
        %v1244 = vunpack.c.l.s4 1966171168
        %v1245 = vunpack.c.0.s8 %v1244
        %v1246 = vlaneseq
        %v1247 = vshrl.u32 %v1246, 7
        %v1248 = vsub.s32 %v1245, %v1247
        %v1249 = vrot.slane %v1233, %v1248
        %v1251 = vunpack.c.l.s4 1966171168
        %v1252 = vunpack.c.0.s8 %v1251
        %v1253 = vlaneseq
        %v1254 = vshrl.u32 %v1253, 7
        %v1255 = vsub.s32 %v1252, %v1254
        %v1256 = vrot.slane %v1234, %v1255
        %v1258 = vunpack.c.l.s4 1966171168
        %v1259 = vunpack.c.0.s8 %v1258
        %v1260 = vlaneseq
        %v1261 = vshrl.u32 %v1260, 7
        %v1262 = vsub.s32 %v1259, %v1261
        %v1263 = vrot.slane %v1235, %v1262
        %v1264 = vcombine.high %v1242, %v1242
        %v1265 = vcombine.high %v1249, %v1249
        %v1266 = vcombine.high %v1256, %v1256
        %v1267 = vcombine.high %v1263, %v1263
        %1276 = vst.msk [vmem:[%s272 + $0x1] sm:$0x1] %vm784, %v1242
        %1277 = vst.msk [vmem:[%s272 + $0x9] sm:$0x1] %vm784, %v1256
        %1278 = vst.msk [vmem:[%s272 + $0x11] sm:$0x1] %vm784, %v1264
        %1279 = vst.msk [vmem:[%s272 + $0x19] sm:$0x1] %vm784, %v1266
        %1280 = vst.msk [vmem:[%s272 + $0x21] sm:$0x1] %vm784, %v1249
        %1281 = vst.msk [vmem:[%s272 + $0x29] sm:$0x1] %vm784, %v1263
        %1282 = vst.msk [vmem:[%s272 + $0x31] sm:$0x1] %vm784, %v1265
        %1283 = vst.msk [vmem:[%s272 + $0x39] sm:$0x1] %vm784, %v1267
        %v1284 = vld [vmem:[%s234 + $0x2] sm:$0x1]
        %v1285 = vld [vmem:[%s234 + $0xa] sm:$0x1]
        %v1286 = vld [vmem:[%s234 + $0x12] sm:$0x1]
        %v1287 = vld [vmem:[%s234 + $0x1a] sm:$0x1]
        %v1288 = vpack.c.bf16 %v1284, %v1284
        %v1289 = vpack.c.bf16 %v1285, %v1285
        %v1290 = vpack.c.bf16 %v1286, %v1286
        %v1291 = vpack.c.bf16 %v1287, %v1287
        %v1292 = vlaneseq
        %v1293 = vshrl.u32 %v1292, 7
        %v1294 = vsub.s32 0, %v1293
        %v1295 = vrot.slane %v277, %v1294
        %vm1296 = vcmp.eq.s32.totalorder %v284, %v1295
        %vm1297 = vcmp.eq.s32.totalorder %v285, %v1295
        %v1298 = vsel %vm1296, 1, 0
        %v1299 = vsel %vm1297, 1, 0
        %v1300 = vcvt.s32.f32 %v1298
        %v1301 = vcvt.s32.f32 %v1299
        %v1302 = vpack.c.bf16 %v1301, %v1300
        %v1307 = vunpack.c.l.b16 %v1288
        %v1308 = vunpack.c.l.b16 %v1289
        %v1309 = vunpack.c.l.b16 %v1290
        %v1310 = vunpack.c.l.b16 %v1291
        %v1311 = vrot.slane %v1308, 7
        %v1312 = vsel %vm315, %v1311, %v1307
        %v1313 = vrot.slane %v1309, 6
        %v1314 = vsel %vm318, %v1313, %v1312
        %v1315 = vrot.slane %v1310, 5
        %v1316 = vsel %vm321, %v1315, %v1314
        %v1317 = vpack.c.b16 %v1316, %v1316
        %v1319 = vsel %vm324, %v1317, 0
        %1321 = vmatprep.subr.bf16.mxu0 0
        %1322 = vmatpush1.bf16.msra.mxu0 %v1302
        %1323 = vmatprep.subr.bf16.mxu0 0
        %1324 = vmatpush1.bf16.msra.mxu0 0
        %1325 = vmatprep.subr.bf16.mxu0 0
        %1326 = vmatpush1.bf16.msra.mxu0 0
        %1327 = vmatprep.subr.bf16.mxu0 0
        %1328 = vmatpush1.bf16.msra.mxu0 0
        %1329 = vmatprep.subr.bf16.mxu0 0
        %1330 = vmatpush1.bf16.msra.mxu0 0
        %1331 = vmatprep.subr.bf16.mxu0 0
        %1332 = vmatpush1.bf16.msra.mxu0 0
        %1333 = vmatprep.subr.bf16.mxu0 0
        %1334 = vmatpush1.bf16.msra.mxu0 0
        %1335 = vmatprep.subr.bf16.mxu0 0
        %1336 = vmatpush1.bf16.msra.mxu0 0
        %1337 = vmatprep.subr.bf16.mxu0 0
        %1338 = vmatpush1.bf16.msra.mxu0 0
        %1339 = vmatprep.subr.bf16.mxu0 0
        %1340 = vmatpush1.bf16.msra.mxu0 0
        %1341 = vmatprep.subr.bf16.mxu0 0
        %1342 = vmatpush1.bf16.msra.mxu0 0
        %1343 = vmatprep.subr.bf16.mxu0 0
        %1344 = vmatpush1.bf16.msra.mxu0 0
        %1345 = vmatprep.subr.bf16.mxu0 0
        %1346 = vmatpush1.bf16.msra.mxu0 0
        %1347 = vmatprep.subr.bf16.mxu0 0
        %1348 = vmatpush1.bf16.msra.mxu0 0
        %1349 = vmatprep.subr.bf16.mxu0 0
        %1350 = vmatpush1.bf16.msra.mxu0 0
        %1351 = vmatprep.subr.bf16.mxu0 0
        %1352 = vmatpush1.bf16.msra.mxu0 0
        %1353 = vmatprep.mubr.bf16.mxu0 0
        %1354 = vmatmul.mubr.bf16.gmra.mrb[0].mxu0 %v1319
        %v1355 = vpop.f32.mrb[0].mxu0
        %v1356 = vadd.f32 0.0, %v1355
        %v1357 = vpop.f32.mrb[0].mxu0
        %v1358 = vpop.f32.mrb[0].mxu0
        %v1359 = vpop.f32.mrb[0].mxu0
        %1360 = vdwg.mxu0
        %v1361 = vpack.c.bf16 %v1356, %v1356
        %v1362 = vld [vmem:[%s2] sm:$0xf]
        %v1363 = vlaneseq
        %v1364 = vshrl.u32 %v1363, 7
        %v1365 = vsub.s32 1, %v1364
        %v1366 = vrot.slane %v277, %v1365
        %vm1367 = vcmp.eq.s32.totalorder %v284, %v1366
        %vm1368 = vcmp.eq.s32.totalorder %v285, %v1366
        %v1369 = vsel %vm1367, 1, 0
        %v1370 = vsel %vm1368, 1, 0
        %v1371 = vcvt.s32.f32 %v1369
        %v1372 = vcvt.s32.f32 %v1370
        %v1373 = vpack.c.bf16 %v1372, %v1371
        %1374 = vmatprep.subr.bf16.mxu0 0
        %1375 = vmatpush1.bf16.msra.mxu0 %v1373
        %1376 = vmatprep.subr.bf16.mxu0 0
        %1377 = vmatpush1.bf16.msra.mxu0 0
        %1378 = vmatprep.subr.bf16.mxu0 0
        %1379 = vmatpush1.bf16.msra.mxu0 0
        %1380 = vmatprep.subr.bf16.mxu0 0
        %1381 = vmatpush1.bf16.msra.mxu0 0
        %1382 = vmatprep.subr.bf16.mxu0 0
        %1383 = vmatpush1.bf16.msra.mxu0 0
        %1384 = vmatprep.subr.bf16.mxu0 0
        %1385 = vmatpush1.bf16.msra.mxu0 0
        %1386 = vmatprep.subr.bf16.mxu0 0
        %1387 = vmatpush1.bf16.msra.mxu0 0
        %1388 = vmatprep.subr.bf16.mxu0 0
        %1389 = vmatpush1.bf16.msra.mxu0 0
        %1390 = vmatprep.subr.bf16.mxu0 0
        %1391 = vmatpush1.bf16.msra.mxu0 0
        %1392 = vmatprep.subr.bf16.mxu0 0
        %1393 = vmatpush1.bf16.msra.mxu0 0
        %1394 = vmatprep.subr.bf16.mxu0 0
        %1395 = vmatpush1.bf16.msra.mxu0 0
        %1396 = vmatprep.subr.bf16.mxu0 0
        %1397 = vmatpush1.bf16.msra.mxu0 0
        %1398 = vmatprep.subr.bf16.mxu0 0
        %1399 = vmatpush1.bf16.msra.mxu0 0
        %1400 = vmatprep.subr.bf16.mxu0 0
        %1401 = vmatpush1.bf16.msra.mxu0 0
        %1402 = vmatprep.subr.bf16.mxu0 0
        %1403 = vmatpush1.bf16.msra.mxu0 0
        %1404 = vmatprep.subr.bf16.mxu0 0
        %1405 = vmatpush1.bf16.msra.mxu0 0
        %1406 = vmatprep.mubr.bf16.mxu0 0
        %1407 = vmatmul.mubr.bf16.gmra.mrb[0].mxu0 %v1319
        %v1408 = vpop.f32.mrb[0].mxu0
        %v1409 = vadd.f32 0.0, %v1408
        %v1410 = vpop.f32.mrb[0].mxu0
        %v1411 = vpop.f32.mrb[0].mxu0
        %v1412 = vpop.f32.mrb[0].mxu0
        %1413 = vdwg.mxu0
        %v1414 = vpack.c.bf16 %v1409, %v1409
        %v1415 = vld [vmem:[%s422] sm:$0xf]
        %v1417 = vsel %vm424, %v1415, 0
        %v1420 = vsel %vm428, %v1414, 0
        %1422 = vmatprep.subr.bf16.mxu0 0
        %1423 = vmatpush1.bf16.msra.mxu0 %v1420
        %1424 = vmatprep.subr.bf16.mxu0 0
        %1425 = vmatpush1.bf16.msra.mxu0 0
        %1426 = vmatprep.subr.bf16.mxu0 0
        %1427 = vmatpush1.bf16.msra.mxu0 0
        %1428 = vmatprep.subr.bf16.mxu0 0
        %1429 = vmatpush1.bf16.msra.mxu0 0
        %1430 = vmatprep.subr.bf16.mxu0 0
        %1431 = vmatpush1.bf16.msra.mxu0 0
        %1432 = vmatprep.subr.bf16.mxu0 0
        %1433 = vmatpush1.bf16.msra.mxu0 0
        %1434 = vmatprep.subr.bf16.mxu0 0
        %1435 = vmatpush1.bf16.msra.mxu0 0
        %1436 = vmatprep.subr.bf16.mxu0 0
        %1437 = vmatpush1.bf16.msra.mxu0 0
        %1438 = vmatprep.subr.bf16.mxu0 0
        %1439 = vmatpush1.bf16.msra.mxu0 0
        %1440 = vmatprep.subr.bf16.mxu0 0
        %1441 = vmatpush1.bf16.msra.mxu0 0
        %1442 = vmatprep.subr.bf16.mxu0 0
        %1443 = vmatpush1.bf16.msra.mxu0 0
        %1444 = vmatprep.subr.bf16.mxu0 0
        %1445 = vmatpush1.bf16.msra.mxu0 0
        %1446 = vmatprep.subr.bf16.mxu0 0
        %1447 = vmatpush1.bf16.msra.mxu0 0
        %1448 = vmatprep.subr.bf16.mxu0 0
        %1449 = vmatpush1.bf16.msra.mxu0 0
        %1450 = vmatprep.subr.bf16.mxu0 0
        %1451 = vmatpush1.bf16.msra.mxu0 0
        %1452 = vmatprep.subr.bf16.mxu0 0
        %1453 = vmatpush1.bf16.msra.mxu0 0
        %1454 = vmatprep.mubr.bf16.mxu0 0
        %1455 = vmatmul.mubr.bf16.gmra.mrb[0].mxu0 %v1417
        %v1456 = vpop.f32.mrb[0].mxu0
        %v1457 = vadd.f32 0.0, %v1456
        %v1458 = vpop.f32.mrb[0].mxu0
        %v1459 = vpop.f32.mrb[0].mxu0
        %v1460 = vpop.f32.mrb[0].mxu0
        %1461 = vdwg.mxu0
        %v1463 = vsel %vm424, %v1362, 0
        %v1466 = vsel %vm428, %v1361, 0
        %1468 = vmatprep.subr.bf16.mxu0 0
        %1469 = vmatpush1.bf16.msra.mxu0 %v1466
        %1470 = vmatprep.subr.bf16.mxu0 0
        %1471 = vmatpush1.bf16.msra.mxu0 0
        %1472 = vmatprep.subr.bf16.mxu0 0
        %1473 = vmatpush1.bf16.msra.mxu0 0
        %1474 = vmatprep.subr.bf16.mxu0 0
        %1475 = vmatpush1.bf16.msra.mxu0 0
        %1476 = vmatprep.subr.bf16.mxu0 0
        %1477 = vmatpush1.bf16.msra.mxu0 0
        %1478 = vmatprep.subr.bf16.mxu0 0
        %1479 = vmatpush1.bf16.msra.mxu0 0
        %1480 = vmatprep.subr.bf16.mxu0 0
        %1481 = vmatpush1.bf16.msra.mxu0 0
        %1482 = vmatprep.subr.bf16.mxu0 0
        %1483 = vmatpush1.bf16.msra.mxu0 0
        %1484 = vmatprep.subr.bf16.mxu0 0
        %1485 = vmatpush1.bf16.msra.mxu0 0
        %1486 = vmatprep.subr.bf16.mxu0 0
        %1487 = vmatpush1.bf16.msra.mxu0 0
        %1488 = vmatprep.subr.bf16.mxu0 0
        %1489 = vmatpush1.bf16.msra.mxu0 0
        %1490 = vmatprep.subr.bf16.mxu0 0
        %1491 = vmatpush1.bf16.msra.mxu0 0
        %1492 = vmatprep.subr.bf16.mxu0 0
        %1493 = vmatpush1.bf16.msra.mxu0 0
        %1494 = vmatprep.subr.bf16.mxu0 0
        %1495 = vmatpush1.bf16.msra.mxu0 0
        %1496 = vmatprep.subr.bf16.mxu0 0
        %1497 = vmatpush1.bf16.msra.mxu0 0
        %1498 = vmatprep.subr.bf16.mxu0 0
        %1499 = vmatpush1.bf16.msra.mxu0 0
        %1500 = vmatprep.mubr.bf16.mxu0 0
        %1501 = vmatmul.mubr.bf16.gmra.mrb[0].mxu0 %v1463
        %v1502 = vpop.f32.mrb[0].mxu0
        %v1503 = vadd.f32 %v1457, %v1502
        %v1504 = vpop.f32.mrb[0].mxu0
        %v1505 = vpop.f32.mrb[0].mxu0
        %v1506 = vpop.f32.mrb[0].mxu0
        %1507 = vdwg.mxu0
        %v1508 = vlaneseq
        %v1509 = vshrl.u32 %v1508, 7
        %v1510 = vsub.s32 2, %v1509
        %v1511 = vrot.slane %v277, %v1510
        %vm1512 = vcmp.eq.s32.totalorder %v284, %v1511
        %vm1513 = vcmp.eq.s32.totalorder %v285, %v1511
        %v1514 = vsel %vm1512, 1, 0
        %v1515 = vsel %vm1513, 1, 0
        %v1516 = vcvt.s32.f32 %v1514
        %v1517 = vcvt.s32.f32 %v1515
        %v1518 = vpack.c.bf16 %v1517, %v1516
        %1519 = vmatprep.subr.bf16.mxu0 0
        %1520 = vmatpush1.bf16.msra.mxu0 %v1518
        %1521 = vmatprep.subr.bf16.mxu0 0
        %1522 = vmatpush1.bf16.msra.mxu0 0
        %1523 = vmatprep.subr.bf16.mxu0 0
        %1524 = vmatpush1.bf16.msra.mxu0 0
        %1525 = vmatprep.subr.bf16.mxu0 0
        %1526 = vmatpush1.bf16.msra.mxu0 0
        %1527 = vmatprep.subr.bf16.mxu0 0
        %1528 = vmatpush1.bf16.msra.mxu0 0
        %1529 = vmatprep.subr.bf16.mxu0 0
        %1530 = vmatpush1.bf16.msra.mxu0 0
        %1531 = vmatprep.subr.bf16.mxu0 0
        %1532 = vmatpush1.bf16.msra.mxu0 0
        %1533 = vmatprep.subr.bf16.mxu0 0
        %1534 = vmatpush1.bf16.msra.mxu0 0
        %1535 = vmatprep.subr.bf16.mxu0 0
        %1536 = vmatpush1.bf16.msra.mxu0 0
        %1537 = vmatprep.subr.bf16.mxu0 0
        %1538 = vmatpush1.bf16.msra.mxu0 0
        %1539 = vmatprep.subr.bf16.mxu0 0
        %1540 = vmatpush1.bf16.msra.mxu0 0
        %1541 = vmatprep.subr.bf16.mxu0 0
        %1542 = vmatpush1.bf16.msra.mxu0 0
        %1543 = vmatprep.subr.bf16.mxu0 0
        %1544 = vmatpush1.bf16.msra.mxu0 0
        %1545 = vmatprep.subr.bf16.mxu0 0
        %1546 = vmatpush1.bf16.msra.mxu0 0
        %1547 = vmatprep.subr.bf16.mxu0 0
        %1548 = vmatpush1.bf16.msra.mxu0 0
        %1549 = vmatprep.subr.bf16.mxu0 0
        %1550 = vmatpush1.bf16.msra.mxu0 0
        %1551 = vmatprep.mubr.bf16.mxu0 0
        %1552 = vmatmul.mubr.bf16.gmra.mrb[0].mxu0 %v1319
        %v1553 = vpop.f32.mrb[0].mxu0
        %v1554 = vadd.f32 0.0, %v1553
        %v1555 = vpop.f32.mrb[0].mxu0
        %v1556 = vpop.f32.mrb[0].mxu0
        %v1557 = vpop.f32.mrb[0].mxu0
        %1558 = vdwg.mxu0
        %v1559 = vpack.c.bf16 %v1554, %v1554
        %v1560 = vld [vmem:[%s570] sm:$0xf]
        %v1562 = vsel %vm424, %v1560, 0
        %v1565 = vsel %vm428, %v1559, 0
        %1567 = vmatprep.subr.bf16.mxu0 0
        %1568 = vmatpush1.bf16.msra.mxu0 %v1565
        %1569 = vmatprep.subr.bf16.mxu0 0
        %1570 = vmatpush1.bf16.msra.mxu0 0
        %1571 = vmatprep.subr.bf16.mxu0 0
        %1572 = vmatpush1.bf16.msra.mxu0 0
        %1573 = vmatprep.subr.bf16.mxu0 0
        %1574 = vmatpush1.bf16.msra.mxu0 0
        %1575 = vmatprep.subr.bf16.mxu0 0
        %1576 = vmatpush1.bf16.msra.mxu0 0
        %1577 = vmatprep.subr.bf16.mxu0 0
        %1578 = vmatpush1.bf16.msra.mxu0 0
        %1579 = vmatprep.subr.bf16.mxu0 0
        %1580 = vmatpush1.bf16.msra.mxu0 0
        %1581 = vmatprep.subr.bf16.mxu0 0
        %1582 = vmatpush1.bf16.msra.mxu0 0
        %1583 = vmatprep.subr.bf16.mxu0 0
        %1584 = vmatpush1.bf16.msra.mxu0 0
        %1585 = vmatprep.subr.bf16.mxu0 0
        %1586 = vmatpush1.bf16.msra.mxu0 0
        %1587 = vmatprep.subr.bf16.mxu0 0
        %1588 = vmatpush1.bf16.msra.mxu0 0
        %1589 = vmatprep.subr.bf16.mxu0 0
        %1590 = vmatpush1.bf16.msra.mxu0 0
        %1591 = vmatprep.subr.bf16.mxu0 0
        %1592 = vmatpush1.bf16.msra.mxu0 0
        %1593 = vmatprep.subr.bf16.mxu0 0
        %1594 = vmatpush1.bf16.msra.mxu0 0
        %1595 = vmatprep.subr.bf16.mxu0 0
        %1596 = vmatpush1.bf16.msra.mxu0 0
        %1597 = vmatprep.subr.bf16.mxu0 0
        %1598 = vmatpush1.bf16.msra.mxu0 0
        %1599 = vmatprep.mubr.bf16.mxu0 0
        %1600 = vmatmul.mubr.bf16.gmra.mrb[0].mxu0 %v1562
        %v1601 = vpop.f32.mrb[0].mxu0
        %v1602 = vadd.f32 0.0, %v1601
        %v1603 = vpop.f32.mrb[0].mxu0
        %v1604 = vpop.f32.mrb[0].mxu0
        %v1605 = vpop.f32.mrb[0].mxu0
        %1606 = vdwg.mxu0
        %v1607 = vadd.f32 %v1503, %v1602
        %v1608 = vlaneseq
        %v1609 = vshrl.u32 %v1608, 7
        %v1610 = vsub.s32 3, %v1609
        %v1611 = vrot.slane %v277, %v1610
        %vm1612 = vcmp.eq.s32.totalorder %v284, %v1611
        %vm1613 = vcmp.eq.s32.totalorder %v285, %v1611
        %v1614 = vsel %vm1612, 1, 0
        %v1615 = vsel %vm1613, 1, 0
        %v1616 = vcvt.s32.f32 %v1614
        %v1617 = vcvt.s32.f32 %v1615
        %v1618 = vpack.c.bf16 %v1617, %v1616
        %1619 = vmatprep.subr.bf16.mxu0 0
        %1620 = vmatpush1.bf16.msra.mxu0 %v1618
        %1621 = vmatprep.subr.bf16.mxu0 0
        %1622 = vmatpush1.bf16.msra.mxu0 0
        %1623 = vmatprep.subr.bf16.mxu0 0
        %1624 = vmatpush1.bf16.msra.mxu0 0
        %1625 = vmatprep.subr.bf16.mxu0 0
        %1626 = vmatpush1.bf16.msra.mxu0 0
        %1627 = vmatprep.subr.bf16.mxu0 0
        %1628 = vmatpush1.bf16.msra.mxu0 0
        %1629 = vmatprep.subr.bf16.mxu0 0
        %1630 = vmatpush1.bf16.msra.mxu0 0
        %1631 = vmatprep.subr.bf16.mxu0 0
        %1632 = vmatpush1.bf16.msra.mxu0 0
        %1633 = vmatprep.subr.bf16.mxu0 0
        %1634 = vmatpush1.bf16.msra.mxu0 0
        %1635 = vmatprep.subr.bf16.mxu0 0
        %1636 = vmatpush1.bf16.msra.mxu0 0
        %1637 = vmatprep.subr.bf16.mxu0 0
        %1638 = vmatpush1.bf16.msra.mxu0 0
        %1639 = vmatprep.subr.bf16.mxu0 0
        %1640 = vmatpush1.bf16.msra.mxu0 0
        %1641 = vmatprep.subr.bf16.mxu0 0
        %1642 = vmatpush1.bf16.msra.mxu0 0
        %1643 = vmatprep.subr.bf16.mxu0 0
        %1644 = vmatpush1.bf16.msra.mxu0 0
        %1645 = vmatprep.subr.bf16.mxu0 0
        %1646 = vmatpush1.bf16.msra.mxu0 0
        %1647 = vmatprep.subr.bf16.mxu0 0
        %1648 = vmatpush1.bf16.msra.mxu0 0
        %1649 = vmatprep.subr.bf16.mxu0 0
        %1650 = vmatpush1.bf16.msra.mxu0 0
        %1651 = vmatprep.mubr.bf16.mxu0 0
        %1652 = vmatmul.mubr.bf16.gmra.mrb[0].mxu0 %v1319
        %v1653 = vpop.f32.mrb[0].mxu0
        %v1654 = vadd.f32 0.0, %v1653
        %v1655 = vpop.f32.mrb[0].mxu0
        %v1656 = vpop.f32.mrb[0].mxu0
        %v1657 = vpop.f32.mrb[0].mxu0
        %1658 = vdwg.mxu0
        %v1659 = vpack.c.bf16 %v1654, %v1654
        %v1660 = vld [vmem:[%s671] sm:$0xf]
        %v1662 = vsel %vm424, %v1660, 0
        %v1665 = vsel %vm428, %v1659, 0
        %1667 = vmatprep.subr.bf16.mxu0 0
        %1668 = vmatpush1.bf16.msra.mxu0 %v1665
        %1669 = vmatprep.subr.bf16.mxu0 0
        %1670 = vmatpush1.bf16.msra.mxu0 0
        %1671 = vmatprep.subr.bf16.mxu0 0
        %1672 = vmatpush1.bf16.msra.mxu0 0
        %1673 = vmatprep.subr.bf16.mxu0 0
        %1674 = vmatpush1.bf16.msra.mxu0 0
        %1675 = vmatprep.subr.bf16.mxu0 0
        %1676 = vmatpush1.bf16.msra.mxu0 0
        %1677 = vmatprep.subr.bf16.mxu0 0
        %1678 = vmatpush1.bf16.msra.mxu0 0
        %1679 = vmatprep.subr.bf16.mxu0 0
        %1680 = vmatpush1.bf16.msra.mxu0 0
        %1681 = vmatprep.subr.bf16.mxu0 0
        %1682 = vmatpush1.bf16.msra.mxu0 0
        %1683 = vmatprep.subr.bf16.mxu0 0
        %1684 = vmatpush1.bf16.msra.mxu0 0
        %1685 = vmatprep.subr.bf16.mxu0 0
        %1686 = vmatpush1.bf16.msra.mxu0 0
        %1687 = vmatprep.subr.bf16.mxu0 0
        %1688 = vmatpush1.bf16.msra.mxu0 0
        %1689 = vmatprep.subr.bf16.mxu0 0
        %1690 = vmatpush1.bf16.msra.mxu0 0
        %1691 = vmatprep.subr.bf16.mxu0 0
        %1692 = vmatpush1.bf16.msra.mxu0 0
        %1693 = vmatprep.subr.bf16.mxu0 0
        %1694 = vmatpush1.bf16.msra.mxu0 0
        %1695 = vmatprep.subr.bf16.mxu0 0
        %1696 = vmatpush1.bf16.msra.mxu0 0
        %1697 = vmatprep.subr.bf16.mxu0 0
        %1698 = vmatpush1.bf16.msra.mxu0 0
        %1699 = vmatprep.mubr.bf16.mxu0 0
        %1700 = vmatmul.mubr.bf16.gmra.mrb[0].mxu0 %v1662
        %v1701 = vpop.f32.mrb[0].mxu0
        %v1702 = vadd.f32 0.0, %v1701
        %v1703 = vpop.f32.mrb[0].mxu0
        %v1704 = vpop.f32.mrb[0].mxu0
        %v1705 = vpop.f32.mrb[0].mxu0
        %1706 = vdwg.mxu0
        %v1707 = vadd.f32 %v1607, %v1702
        %v1708 = vadd.f32 %v1707, %v723
        %v1710 = vcombine.high %v1708, %v1708
        %v1712 = vunpack.c.l.s4 1966171168
        %v1713 = vunpack.c.0.s8 %v1712
        %v1714 = vlaneseq
        %v1715 = vshrl.u32 %v1714, 7
        %v1716 = vsub.s32 %v1713, %v1715
        %v1717 = vrot.slane %v1708, %v1716
        %v1719 = vunpack.c.l.s4 1966171168
        %v1720 = vunpack.c.0.s8 %v1719
        %v1721 = vlaneseq
        %v1722 = vshrl.u32 %v1721, 7
        %v1723 = vsub.s32 %v1720, %v1722
        %v1724 = vrot.slane %v1710, %v1723
        %v1725 = vcombine.high %v1717, %v1717
        %v1726 = vcombine.high %v1724, %v1724
        %v1728 = vunpack.c.l.s4 1966171168
        %v1729 = vunpack.c.0.s8 %v1728
        %v1730 = vlaneseq
        %v1731 = vshrl.u32 %v1730, 7
        %v1732 = vsub.s32 %v1729, %v1731
        %v1733 = vrot.slane %v1717, %v1732
        %v1735 = vunpack.c.l.s4 1966171168
        %v1736 = vunpack.c.0.s8 %v1735
        %v1737 = vlaneseq
        %v1738 = vshrl.u32 %v1737, 7
        %v1739 = vsub.s32 %v1736, %v1738
        %v1740 = vrot.slane %v1724, %v1739
        %v1742 = vunpack.c.l.s4 1966171168
        %v1743 = vunpack.c.0.s8 %v1742
        %v1744 = vlaneseq
        %v1745 = vshrl.u32 %v1744, 7
        %v1746 = vsub.s32 %v1743, %v1745
        %v1747 = vrot.slane %v1725, %v1746
        %v1749 = vunpack.c.l.s4 1966171168
        %v1750 = vunpack.c.0.s8 %v1749
        %v1751 = vlaneseq
        %v1752 = vshrl.u32 %v1751, 7
        %v1753 = vsub.s32 %v1750, %v1752
        %v1754 = vrot.slane %v1726, %v1753
        %v1755 = vcombine.high %v1733, %v1733
        %v1756 = vcombine.high %v1740, %v1740
        %v1757 = vcombine.high %v1747, %v1747
        %v1758 = vcombine.high %v1754, %v1754
        %1767 = vst.msk [vmem:[%s272 + $0x2] sm:$0x1] %vm784, %v1733
        %1768 = vst.msk [vmem:[%s272 + $0xa] sm:$0x1] %vm784, %v1747
        %1769 = vst.msk [vmem:[%s272 + $0x12] sm:$0x1] %vm784, %v1755
        %1770 = vst.msk [vmem:[%s272 + $0x1a] sm:$0x1] %vm784, %v1757
        %1771 = vst.msk [vmem:[%s272 + $0x22] sm:$0x1] %vm784, %v1740
        %1772 = vst.msk [vmem:[%s272 + $0x2a] sm:$0x1] %vm784, %v1754
        %1773 = vst.msk [vmem:[%s272 + $0x32] sm:$0x1] %vm784, %v1756
        %1774 = vst.msk [vmem:[%s272 + $0x3a] sm:$0x1] %vm784, %v1758
        %v1775 = vld [vmem:[%s234 + $0x3] sm:$0x1]
        %v1776 = vld [vmem:[%s234 + $0xb] sm:$0x1]
        %v1777 = vld [vmem:[%s234 + $0x13] sm:$0x1]
        %v1778 = vld [vmem:[%s234 + $0x1b] sm:$0x1]
        %v1779 = vpack.c.bf16 %v1775, %v1775
        %v1780 = vpack.c.bf16 %v1776, %v1776
        %v1781 = vpack.c.bf16 %v1777, %v1777
        %v1782 = vpack.c.bf16 %v1778, %v1778
        %v1783 = vlaneseq
        %v1784 = vshrl.u32 %v1783, 7
        %v1785 = vsub.s32 0, %v1784
        %v1786 = vrot.slane %v278, %v1785
        %vm1787 = vcmp.eq.s32.totalorder %v284, %v1786
        %vm1788 = vcmp.eq.s32.totalorder %v285, %v1786
        %v1789 = vsel %vm1787, 1, 0
        %v1790 = vsel %vm1788, 1, 0
        %v1791 = vcvt.s32.f32 %v1789
        %v1792 = vcvt.s32.f32 %v1790
        %v1793 = vpack.c.bf16 %v1792, %v1791
        %v1798 = vunpack.c.l.b16 %v1779
        %v1799 = vunpack.c.l.b16 %v1780
        %v1800 = vunpack.c.l.b16 %v1781
        %v1801 = vunpack.c.l.b16 %v1782
        %v1802 = vrot.slane %v1799, 7
        %v1803 = vsel %vm315, %v1802, %v1798
        %v1804 = vrot.slane %v1800, 6
        %v1805 = vsel %vm318, %v1804, %v1803
        %v1806 = vrot.slane %v1801, 5
        %v1807 = vsel %vm321, %v1806, %v1805
        %v1808 = vpack.c.b16 %v1807, %v1807
        %v1810 = vsel %vm324, %v1808, 0
        %1812 = vmatprep.subr.bf16.mxu0 0
        %1813 = vmatpush1.bf16.msra.mxu0 %v1793
        %1814 = vmatprep.subr.bf16.mxu0 0
        %1815 = vmatpush1.bf16.msra.mxu0 0
        %1816 = vmatprep.subr.bf16.mxu0 0
        %1817 = vmatpush1.bf16.msra.mxu0 0
        %1818 = vmatprep.subr.bf16.mxu0 0
        %1819 = vmatpush1.bf16.msra.mxu0 0
        %1820 = vmatprep.subr.bf16.mxu0 0
        %1821 = vmatpush1.bf16.msra.mxu0 0
        %1822 = vmatprep.subr.bf16.mxu0 0
        %1823 = vmatpush1.bf16.msra.mxu0 0
        %1824 = vmatprep.subr.bf16.mxu0 0
        %1825 = vmatpush1.bf16.msra.mxu0 0
        %1826 = vmatprep.subr.bf16.mxu0 0
        %1827 = vmatpush1.bf16.msra.mxu0 0
        %1828 = vmatprep.subr.bf16.mxu0 0
        %1829 = vmatpush1.bf16.msra.mxu0 0
        %1830 = vmatprep.subr.bf16.mxu0 0
        %1831 = vmatpush1.bf16.msra.mxu0 0
        %1832 = vmatprep.subr.bf16.mxu0 0
        %1833 = vmatpush1.bf16.msra.mxu0 0
        %1834 = vmatprep.subr.bf16.mxu0 0
        %1835 = vmatpush1.bf16.msra.mxu0 0
        %1836 = vmatprep.subr.bf16.mxu0 0
        %1837 = vmatpush1.bf16.msra.mxu0 0
        %1838 = vmatprep.subr.bf16.mxu0 0
        %1839 = vmatpush1.bf16.msra.mxu0 0
        %1840 = vmatprep.subr.bf16.mxu0 0
        %1841 = vmatpush1.bf16.msra.mxu0 0
        %1842 = vmatprep.subr.bf16.mxu0 0
        %1843 = vmatpush1.bf16.msra.mxu0 0
        %1844 = vmatprep.mubr.bf16.mxu0 0
        %1845 = vmatmul.mubr.bf16.gmra.mrb[0].mxu0 %v1810
        %v1846 = vpop.f32.mrb[0].mxu0
        %v1847 = vadd.f32 0.0, %v1846
        %v1848 = vpop.f32.mrb[0].mxu0
        %v1849 = vpop.f32.mrb[0].mxu0
        %v1850 = vpop.f32.mrb[0].mxu0
        %1851 = vdwg.mxu0
        %v1852 = vpack.c.bf16 %v1847, %v1847
        %v1853 = vld [vmem:[%s2] sm:$0xf]
        %v1854 = vlaneseq
        %v1855 = vshrl.u32 %v1854, 7
        %v1856 = vsub.s32 1, %v1855
        %v1857 = vrot.slane %v278, %v1856
        %vm1858 = vcmp.eq.s32.totalorder %v284, %v1857
        %vm1859 = vcmp.eq.s32.totalorder %v285, %v1857
        %v1860 = vsel %vm1858, 1, 0
        %v1861 = vsel %vm1859, 1, 0
        %v1862 = vcvt.s32.f32 %v1860
        %v1863 = vcvt.s32.f32 %v1861
        %v1864 = vpack.c.bf16 %v1863, %v1862
        %1865 = vmatprep.subr.bf16.mxu0 0
        %1866 = vmatpush1.bf16.msra.mxu0 %v1864
        %1867 = vmatprep.subr.bf16.mxu0 0
        %1868 = vmatpush1.bf16.msra.mxu0 0
        %1869 = vmatprep.subr.bf16.mxu0 0
        %1870 = vmatpush1.bf16.msra.mxu0 0
        %1871 = vmatprep.subr.bf16.mxu0 0
        %1872 = vmatpush1.bf16.msra.mxu0 0
        %1873 = vmatprep.subr.bf16.mxu0 0
        %1874 = vmatpush1.bf16.msra.mxu0 0
        %1875 = vmatprep.subr.bf16.mxu0 0
        %1876 = vmatpush1.bf16.msra.mxu0 0
        %1877 = vmatprep.subr.bf16.mxu0 0
        %1878 = vmatpush1.bf16.msra.mxu0 0
        %1879 = vmatprep.subr.bf16.mxu0 0
        %1880 = vmatpush1.bf16.msra.mxu0 0
        %1881 = vmatprep.subr.bf16.mxu0 0
        %1882 = vmatpush1.bf16.msra.mxu0 0
        %1883 = vmatprep.subr.bf16.mxu0 0
        %1884 = vmatpush1.bf16.msra.mxu0 0
        %1885 = vmatprep.subr.bf16.mxu0 0
        %1886 = vmatpush1.bf16.msra.mxu0 0
        %1887 = vmatprep.subr.bf16.mxu0 0
        %1888 = vmatpush1.bf16.msra.mxu0 0
        %1889 = vmatprep.subr.bf16.mxu0 0
        %1890 = vmatpush1.bf16.msra.mxu0 0
        %1891 = vmatprep.subr.bf16.mxu0 0
        %1892 = vmatpush1.bf16.msra.mxu0 0
        %1893 = vmatprep.subr.bf16.mxu0 0
        %1894 = vmatpush1.bf16.msra.mxu0 0
        %1895 = vmatprep.subr.bf16.mxu0 0
        %1896 = vmatpush1.bf16.msra.mxu0 0
        %1897 = vmatprep.mubr.bf16.mxu0 0
        %1898 = vmatmul.mubr.bf16.gmra.mrb[0].mxu0 %v1810
        %v1899 = vpop.f32.mrb[0].mxu0
        %v1900 = vadd.f32 0.0, %v1899
        %v1901 = vpop.f32.mrb[0].mxu0
        %v1902 = vpop.f32.mrb[0].mxu0
        %v1903 = vpop.f32.mrb[0].mxu0
        %1904 = vdwg.mxu0
        %v1905 = vpack.c.bf16 %v1900, %v1900
        %v1906 = vld [vmem:[%s422] sm:$0xf]
        %v1908 = vsel %vm424, %v1906, 0
        %v1911 = vsel %vm428, %v1905, 0
        %1913 = vmatprep.subr.bf16.mxu0 0
        %1914 = vmatpush1.bf16.msra.mxu0 %v1911
        %1915 = vmatprep.subr.bf16.mxu0 0
        %1916 = vmatpush1.bf16.msra.mxu0 0
        %1917 = vmatprep.subr.bf16.mxu0 0
        %1918 = vmatpush1.bf16.msra.mxu0 0
        %1919 = vmatprep.subr.bf16.mxu0 0
        %1920 = vmatpush1.bf16.msra.mxu0 0
        %1921 = vmatprep.subr.bf16.mxu0 0
        %1922 = vmatpush1.bf16.msra.mxu0 0
        %1923 = vmatprep.subr.bf16.mxu0 0
        %1924 = vmatpush1.bf16.msra.mxu0 0
        %1925 = vmatprep.subr.bf16.mxu0 0
        %1926 = vmatpush1.bf16.msra.mxu0 0
        %1927 = vmatprep.subr.bf16.mxu0 0
        %1928 = vmatpush1.bf16.msra.mxu0 0
        %1929 = vmatprep.subr.bf16.mxu0 0
        %1930 = vmatpush1.bf16.msra.mxu0 0
        %1931 = vmatprep.subr.bf16.mxu0 0
        %1932 = vmatpush1.bf16.msra.mxu0 0
        %1933 = vmatprep.subr.bf16.mxu0 0
        %1934 = vmatpush1.bf16.msra.mxu0 0
        %1935 = vmatprep.subr.bf16.mxu0 0
        %1936 = vmatpush1.bf16.msra.mxu0 0
        %1937 = vmatprep.subr.bf16.mxu0 0
        %1938 = vmatpush1.bf16.msra.mxu0 0
        %1939 = vmatprep.subr.bf16.mxu0 0
        %1940 = vmatpush1.bf16.msra.mxu0 0
        %1941 = vmatprep.subr.bf16.mxu0 0
        %1942 = vmatpush1.bf16.msra.mxu0 0
        %1943 = vmatprep.subr.bf16.mxu0 0
        %1944 = vmatpush1.bf16.msra.mxu0 0
        %1945 = vmatprep.mubr.bf16.mxu0 0
        %1946 = vmatmul.mubr.bf16.gmra.mrb[0].mxu0 %v1908
        %v1947 = vpop.f32.mrb[0].mxu0
        %v1948 = vadd.f32 0.0, %v1947
        %v1949 = vpop.f32.mrb[0].mxu0
        %v1950 = vpop.f32.mrb[0].mxu0
        %v1951 = vpop.f32.mrb[0].mxu0
        %1952 = vdwg.mxu0
        %v1954 = vsel %vm424, %v1853, 0
        %v1957 = vsel %vm428, %v1852, 0
        %1959 = vmatprep.subr.bf16.mxu0 0
        %1960 = vmatpush1.bf16.msra.mxu0 %v1957
        %1961 = vmatprep.subr.bf16.mxu0 0
        %1962 = vmatpush1.bf16.msra.mxu0 0
        %1963 = vmatprep.subr.bf16.mxu0 0
        %1964 = vmatpush1.bf16.msra.mxu0 0
        %1965 = vmatprep.subr.bf16.mxu0 0
        %1966 = vmatpush1.bf16.msra.mxu0 0
        %1967 = vmatprep.subr.bf16.mxu0 0
        %1968 = vmatpush1.bf16.msra.mxu0 0
        %1969 = vmatprep.subr.bf16.mxu0 0
        %1970 = vmatpush1.bf16.msra.mxu0 0
        %1971 = vmatprep.subr.bf16.mxu0 0
        %1972 = vmatpush1.bf16.msra.mxu0 0
        %1973 = vmatprep.subr.bf16.mxu0 0
        %1974 = vmatpush1.bf16.msra.mxu0 0
        %1975 = vmatprep.subr.bf16.mxu0 0
        %1976 = vmatpush1.bf16.msra.mxu0 0
        %1977 = vmatprep.subr.bf16.mxu0 0
        %1978 = vmatpush1.bf16.msra.mxu0 0
        %1979 = vmatprep.subr.bf16.mxu0 0
        %1980 = vmatpush1.bf16.msra.mxu0 0
        %1981 = vmatprep.subr.bf16.mxu0 0
        %1982 = vmatpush1.bf16.msra.mxu0 0
        %1983 = vmatprep.subr.bf16.mxu0 0
        %1984 = vmatpush1.bf16.msra.mxu0 0
        %1985 = vmatprep.subr.bf16.mxu0 0
        %1986 = vmatpush1.bf16.msra.mxu0 0
        %1987 = vmatprep.subr.bf16.mxu0 0
        %1988 = vmatpush1.bf16.msra.mxu0 0
        %1989 = vmatprep.subr.bf16.mxu0 0
        %1990 = vmatpush1.bf16.msra.mxu0 0
        %1991 = vmatprep.mubr.bf16.mxu0 0
        %1992 = vmatmul.mubr.bf16.gmra.mrb[0].mxu0 %v1954
        %v1993 = vpop.f32.mrb[0].mxu0
        %v1994 = vadd.f32 %v1948, %v1993
        %v1995 = vpop.f32.mrb[0].mxu0
        %v1996 = vpop.f32.mrb[0].mxu0
        %v1997 = vpop.f32.mrb[0].mxu0
        %1998 = vdwg.mxu0
        %v1999 = vlaneseq
        %v2000 = vshrl.u32 %v1999, 7
        %v2001 = vsub.s32 2, %v2000
        %v2002 = vrot.slane %v278, %v2001
        %vm2003 = vcmp.eq.s32.totalorder %v284, %v2002
        %vm2004 = vcmp.eq.s32.totalorder %v285, %v2002
        %v2005 = vsel %vm2003, 1, 0
        %v2006 = vsel %vm2004, 1, 0
        %v2007 = vcvt.s32.f32 %v2005
        %v2008 = vcvt.s32.f32 %v2006
        %v2009 = vpack.c.bf16 %v2008, %v2007
        %2010 = vmatprep.subr.bf16.mxu0 0
        %2011 = vmatpush1.bf16.msra.mxu0 %v2009
        %2012 = vmatprep.subr.bf16.mxu0 0
        %2013 = vmatpush1.bf16.msra.mxu0 0
        %2014 = vmatprep.subr.bf16.mxu0 0
        %2015 = vmatpush1.bf16.msra.mxu0 0
        %2016 = vmatprep.subr.bf16.mxu0 0
        %2017 = vmatpush1.bf16.msra.mxu0 0
        %2018 = vmatprep.subr.bf16.mxu0 0
        %2019 = vmatpush1.bf16.msra.mxu0 0
        %2020 = vmatprep.subr.bf16.mxu0 0
        %2021 = vmatpush1.bf16.msra.mxu0 0
        %2022 = vmatprep.subr.bf16.mxu0 0
        %2023 = vmatpush1.bf16.msra.mxu0 0
        %2024 = vmatprep.subr.bf16.mxu0 0
        %2025 = vmatpush1.bf16.msra.mxu0 0
        %2026 = vmatprep.subr.bf16.mxu0 0
        %2027 = vmatpush1.bf16.msra.mxu0 0
        %2028 = vmatprep.subr.bf16.mxu0 0
        %2029 = vmatpush1.bf16.msra.mxu0 0
        %2030 = vmatprep.subr.bf16.mxu0 0
        %2031 = vmatpush1.bf16.msra.mxu0 0
        %2032 = vmatprep.subr.bf16.mxu0 0
        %2033 = vmatpush1.bf16.msra.mxu0 0
        %2034 = vmatprep.subr.bf16.mxu0 0
        %2035 = vmatpush1.bf16.msra.mxu0 0
        %2036 = vmatprep.subr.bf16.mxu0 0
        %2037 = vmatpush1.bf16.msra.mxu0 0
        %2038 = vmatprep.subr.bf16.mxu0 0
        %2039 = vmatpush1.bf16.msra.mxu0 0
        %2040 = vmatprep.subr.bf16.mxu0 0
        %2041 = vmatpush1.bf16.msra.mxu0 0
        %2042 = vmatprep.mubr.bf16.mxu0 0
        %2043 = vmatmul.mubr.bf16.gmra.mrb[0].mxu0 %v1810
        %v2044 = vpop.f32.mrb[0].mxu0
        %v2045 = vadd.f32 0.0, %v2044
        %v2046 = vpop.f32.mrb[0].mxu0
        %v2047 = vpop.f32.mrb[0].mxu0
        %v2048 = vpop.f32.mrb[0].mxu0
        %2049 = vdwg.mxu0
        %v2050 = vpack.c.bf16 %v2045, %v2045
        %v2051 = vld [vmem:[%s570] sm:$0xf]
        %v2053 = vsel %vm424, %v2051, 0
        %v2056 = vsel %vm428, %v2050, 0
        %2058 = vmatprep.subr.bf16.mxu0 0
        %2059 = vmatpush1.bf16.msra.mxu0 %v2056
        %2060 = vmatprep.subr.bf16.mxu0 0
        %2061 = vmatpush1.bf16.msra.mxu0 0
        %2062 = vmatprep.subr.bf16.mxu0 0
        %2063 = vmatpush1.bf16.msra.mxu0 0
        %2064 = vmatprep.subr.bf16.mxu0 0
        %2065 = vmatpush1.bf16.msra.mxu0 0
        %2066 = vmatprep.subr.bf16.mxu0 0
        %2067 = vmatpush1.bf16.msra.mxu0 0
        %2068 = vmatprep.subr.bf16.mxu0 0
        %2069 = vmatpush1.bf16.msra.mxu0 0
        %2070 = vmatprep.subr.bf16.mxu0 0
        %2071 = vmatpush1.bf16.msra.mxu0 0
        %2072 = vmatprep.subr.bf16.mxu0 0
        %2073 = vmatpush1.bf16.msra.mxu0 0
        %2074 = vmatprep.subr.bf16.mxu0 0
        %2075 = vmatpush1.bf16.msra.mxu0 0
        %2076 = vmatprep.subr.bf16.mxu0 0
        %2077 = vmatpush1.bf16.msra.mxu0 0
        %2078 = vmatprep.subr.bf16.mxu0 0
        %2079 = vmatpush1.bf16.msra.mxu0 0
        %2080 = vmatprep.subr.bf16.mxu0 0
        %2081 = vmatpush1.bf16.msra.mxu0 0
        %2082 = vmatprep.subr.bf16.mxu0 0
        %2083 = vmatpush1.bf16.msra.mxu0 0
        %2084 = vmatprep.subr.bf16.mxu0 0
        %2085 = vmatpush1.bf16.msra.mxu0 0
        %2086 = vmatprep.subr.bf16.mxu0 0
        %2087 = vmatpush1.bf16.msra.mxu0 0
        %2088 = vmatprep.subr.bf16.mxu0 0
        %2089 = vmatpush1.bf16.msra.mxu0 0
        %2090 = vmatprep.mubr.bf16.mxu0 0
        %2091 = vmatmul.mubr.bf16.gmra.mrb[0].mxu0 %v2053
        %v2092 = vpop.f32.mrb[0].mxu0
        %v2093 = vadd.f32 0.0, %v2092
        %v2094 = vpop.f32.mrb[0].mxu0
        %v2095 = vpop.f32.mrb[0].mxu0
        %v2096 = vpop.f32.mrb[0].mxu0
        %2097 = vdwg.mxu0
        %v2098 = vadd.f32 %v1994, %v2093
        %v2099 = vlaneseq
        %v2100 = vshrl.u32 %v2099, 7
        %v2101 = vsub.s32 3, %v2100
        %v2102 = vrot.slane %v278, %v2101
        %vm2103 = vcmp.eq.s32.totalorder %v284, %v2102
        %vm2104 = vcmp.eq.s32.totalorder %v285, %v2102
        %v2105 = vsel %vm2103, 1, 0
        %v2106 = vsel %vm2104, 1, 0
        %v2107 = vcvt.s32.f32 %v2105
        %v2108 = vcvt.s32.f32 %v2106
        %v2109 = vpack.c.bf16 %v2108, %v2107
        %2110 = vmatprep.subr.bf16.mxu0 0
        %2111 = vmatpush1.bf16.msra.mxu0 %v2109
        %2112 = vmatprep.subr.bf16.mxu0 0
        %2113 = vmatpush1.bf16.msra.mxu0 0
        %2114 = vmatprep.subr.bf16.mxu0 0
        %2115 = vmatpush1.bf16.msra.mxu0 0
        %2116 = vmatprep.subr.bf16.mxu0 0
        %2117 = vmatpush1.bf16.msra.mxu0 0
        %2118 = vmatprep.subr.bf16.mxu0 0
        %2119 = vmatpush1.bf16.msra.mxu0 0
        %2120 = vmatprep.subr.bf16.mxu0 0
        %2121 = vmatpush1.bf16.msra.mxu0 0
        %2122 = vmatprep.subr.bf16.mxu0 0
        %2123 = vmatpush1.bf16.msra.mxu0 0
        %2124 = vmatprep.subr.bf16.mxu0 0
        %2125 = vmatpush1.bf16.msra.mxu0 0
        %2126 = vmatprep.subr.bf16.mxu0 0
        %2127 = vmatpush1.bf16.msra.mxu0 0
        %2128 = vmatprep.subr.bf16.mxu0 0
        %2129 = vmatpush1.bf16.msra.mxu0 0
        %2130 = vmatprep.subr.bf16.mxu0 0
        %2131 = vmatpush1.bf16.msra.mxu0 0
        %2132 = vmatprep.subr.bf16.mxu0 0
        %2133 = vmatpush1.bf16.msra.mxu0 0
        %2134 = vmatprep.subr.bf16.mxu0 0
        %2135 = vmatpush1.bf16.msra.mxu0 0
        %2136 = vmatprep.subr.bf16.mxu0 0
        %2137 = vmatpush1.bf16.msra.mxu0 0
        %2138 = vmatprep.subr.bf16.mxu0 0
        %2139 = vmatpush1.bf16.msra.mxu0 0
        %2140 = vmatprep.subr.bf16.mxu0 0
        %2141 = vmatpush1.bf16.msra.mxu0 0
        %2142 = vmatprep.mubr.bf16.mxu0 0
        %2143 = vmatmul.mubr.bf16.gmra.mrb[0].mxu0 %v1810
        %v2144 = vpop.f32.mrb[0].mxu0
        %v2145 = vadd.f32 0.0, %v2144
        %v2146 = vpop.f32.mrb[0].mxu0
        %v2147 = vpop.f32.mrb[0].mxu0
        %v2148 = vpop.f32.mrb[0].mxu0
        %2149 = vdwg.mxu0
        %v2150 = vpack.c.bf16 %v2145, %v2145
        %v2151 = vld [vmem:[%s671] sm:$0xf]
        %v2153 = vsel %vm424, %v2151, 0
        %v2156 = vsel %vm428, %v2150, 0
        %2158 = vmatprep.subr.bf16.mxu0 0
        %2159 = vmatpush1.bf16.msra.mxu0 %v2156
        %2160 = vmatprep.subr.bf16.mxu0 0
        %2161 = vmatpush1.bf16.msra.mxu0 0
        %2162 = vmatprep.subr.bf16.mxu0 0
        %2163 = vmatpush1.bf16.msra.mxu0 0
        %2164 = vmatprep.subr.bf16.mxu0 0
        %2165 = vmatpush1.bf16.msra.mxu0 0
        %2166 = vmatprep.subr.bf16.mxu0 0
        %2167 = vmatpush1.bf16.msra.mxu0 0
        %2168 = vmatprep.subr.bf16.mxu0 0
        %2169 = vmatpush1.bf16.msra.mxu0 0
        %2170 = vmatprep.subr.bf16.mxu0 0
        %2171 = vmatpush1.bf16.msra.mxu0 0
        %2172 = vmatprep.subr.bf16.mxu0 0
        %2173 = vmatpush1.bf16.msra.mxu0 0
        %2174 = vmatprep.subr.bf16.mxu0 0
        %2175 = vmatpush1.bf16.msra.mxu0 0
        %2176 = vmatprep.subr.bf16.mxu0 0
        %2177 = vmatpush1.bf16.msra.mxu0 0
        %2178 = vmatprep.subr.bf16.mxu0 0
        %2179 = vmatpush1.bf16.msra.mxu0 0
        %2180 = vmatprep.subr.bf16.mxu0 0
        %2181 = vmatpush1.bf16.msra.mxu0 0
        %2182 = vmatprep.subr.bf16.mxu0 0
        %2183 = vmatpush1.bf16.msra.mxu0 0
        %2184 = vmatprep.subr.bf16.mxu0 0
        %2185 = vmatpush1.bf16.msra.mxu0 0
        %2186 = vmatprep.subr.bf16.mxu0 0
        %2187 = vmatpush1.bf16.msra.mxu0 0
        %2188 = vmatprep.subr.bf16.mxu0 0
        %2189 = vmatpush1.bf16.msra.mxu0 0
        %2190 = vmatprep.mubr.bf16.mxu0 0
        %2191 = vmatmul.mubr.bf16.gmra.mrb[0].mxu0 %v2153
        %v2192 = vpop.f32.mrb[0].mxu0
        %v2193 = vadd.f32 0.0, %v2192
        %v2194 = vpop.f32.mrb[0].mxu0
        %v2195 = vpop.f32.mrb[0].mxu0
        %v2196 = vpop.f32.mrb[0].mxu0
        %2197 = vdwg.mxu0
        %v2198 = vadd.f32 %v2098, %v2193
        %v2199 = vadd.f32 %v2198, %v723
        %v2201 = vcombine.high %v2199, %v2199
        %v2203 = vunpack.c.l.s4 1966171168
        %v2204 = vunpack.c.0.s8 %v2203
        %v2205 = vlaneseq
        %v2206 = vshrl.u32 %v2205, 7
        %v2207 = vsub.s32 %v2204, %v2206
        %v2208 = vrot.slane %v2199, %v2207
        %v2210 = vunpack.c.l.s4 1966171168
        %v2211 = vunpack.c.0.s8 %v2210
        %v2212 = vlaneseq
        %v2213 = vshrl.u32 %v2212, 7
        %v2214 = vsub.s32 %v2211, %v2213
        %v2215 = vrot.slane %v2201, %v2214
        %v2216 = vcombine.high %v2208, %v2208
        %v2217 = vcombine.high %v2215, %v2215
        %v2219 = vunpack.c.l.s4 1966171168
        %v2220 = vunpack.c.0.s8 %v2219
        %v2221 = vlaneseq
        %v2222 = vshrl.u32 %v2221, 7
        %v2223 = vsub.s32 %v2220, %v2222
        %v2224 = vrot.slane %v2208, %v2223
        %v2226 = vunpack.c.l.s4 1966171168
        %v2227 = vunpack.c.0.s8 %v2226
        %v2228 = vlaneseq
        %v2229 = vshrl.u32 %v2228, 7
        %v2230 = vsub.s32 %v2227, %v2229
        %v2231 = vrot.slane %v2215, %v2230
        %v2233 = vunpack.c.l.s4 1966171168
        %v2234 = vunpack.c.0.s8 %v2233
        %v2235 = vlaneseq
        %v2236 = vshrl.u32 %v2235, 7
        %v2237 = vsub.s32 %v2234, %v2236
        %v2238 = vrot.slane %v2216, %v2237
        %v2240 = vunpack.c.l.s4 1966171168
        %v2241 = vunpack.c.0.s8 %v2240
        %v2242 = vlaneseq
        %v2243 = vshrl.u32 %v2242, 7
        %v2244 = vsub.s32 %v2241, %v2243
        %v2245 = vrot.slane %v2217, %v2244
        %v2246 = vcombine.high %v2224, %v2224
        %v2247 = vcombine.high %v2231, %v2231
        %v2248 = vcombine.high %v2238, %v2238
        %v2249 = vcombine.high %v2245, %v2245
        %2258 = vst.msk [vmem:[%s272 + $0x3] sm:$0x1] %vm784, %v2224
        %2259 = vst.msk [vmem:[%s272 + $0xb] sm:$0x1] %vm784, %v2238
        %2260 = vst.msk [vmem:[%s272 + $0x13] sm:$0x1] %vm784, %v2246
        %2261 = vst.msk [vmem:[%s272 + $0x1b] sm:$0x1] %vm784, %v2248
        %2262 = vst.msk [vmem:[%s272 + $0x23] sm:$0x1] %vm784, %v2231
        %2263 = vst.msk [vmem:[%s272 + $0x2b] sm:$0x1] %vm784, %v2245
        %2264 = vst.msk [vmem:[%s272 + $0x33] sm:$0x1] %vm784, %v2247
        %2265 = vst.msk [vmem:[%s272 + $0x3b] sm:$0x1] %vm784, %v2249
        %v2266 = vld [vmem:[%s234 + $0x4] sm:$0x1]
        %v2267 = vld [vmem:[%s234 + $0xc] sm:$0x1]
        %v2268 = vld [vmem:[%s234 + $0x14] sm:$0x1]
        %v2269 = vld [vmem:[%s234 + $0x1c] sm:$0x1]
        %v2270 = vpack.c.bf16 %v2266, %v2266
        %v2271 = vpack.c.bf16 %v2267, %v2267
        %v2272 = vpack.c.bf16 %v2268, %v2268
        %v2273 = vpack.c.bf16 %v2269, %v2269
        %v2274 = vlaneseq
        %v2275 = vshrl.u32 %v2274, 7
        %v2276 = vsub.s32 0, %v2275
        %v2277 = vrot.slane %v279, %v2276
        %vm2278 = vcmp.eq.s32.totalorder %v284, %v2277
        %vm2279 = vcmp.eq.s32.totalorder %v285, %v2277
        %v2280 = vsel %vm2278, 1, 0
        %v2281 = vsel %vm2279, 1, 0
        %v2282 = vcvt.s32.f32 %v2280
        %v2283 = vcvt.s32.f32 %v2281
        %v2284 = vpack.c.bf16 %v2283, %v2282
        %v2289 = vunpack.c.l.b16 %v2270
        %v2290 = vunpack.c.l.b16 %v2271
        %v2291 = vunpack.c.l.b16 %v2272
        %v2292 = vunpack.c.l.b16 %v2273
        %v2293 = vrot.slane %v2290, 7
        %v2294 = vsel %vm315, %v2293, %v2289
        %v2295 = vrot.slane %v2291, 6
        %v2296 = vsel %vm318, %v2295, %v2294
        %v2297 = vrot.slane %v2292, 5
        %v2298 = vsel %vm321, %v2297, %v2296
        %v2299 = vpack.c.b16 %v2298, %v2298
        %v2301 = vsel %vm324, %v2299, 0
        %2303 = vmatprep.subr.bf16.mxu0 0
        %2304 = vmatpush1.bf16.msra.mxu0 %v2284
        %2305 = vmatprep.subr.bf16.mxu0 0
        %2306 = vmatpush1.bf16.msra.mxu0 0
        %2307 = vmatprep.subr.bf16.mxu0 0
        %2308 = vmatpush1.bf16.msra.mxu0 0
        %2309 = vmatprep.subr.bf16.mxu0 0
        %2310 = vmatpush1.bf16.msra.mxu0 0
        %2311 = vmatprep.subr.bf16.mxu0 0
        %2312 = vmatpush1.bf16.msra.mxu0 0
        %2313 = vmatprep.subr.bf16.mxu0 0
        %2314 = vmatpush1.bf16.msra.mxu0 0
        %2315 = vmatprep.subr.bf16.mxu0 0
        %2316 = vmatpush1.bf16.msra.mxu0 0
        %2317 = vmatprep.subr.bf16.mxu0 0
        %2318 = vmatpush1.bf16.msra.mxu0 0
        %2319 = vmatprep.subr.bf16.mxu0 0
        %2320 = vmatpush1.bf16.msra.mxu0 0
        %2321 = vmatprep.subr.bf16.mxu0 0
        %2322 = vmatpush1.bf16.msra.mxu0 0
        %2323 = vmatprep.subr.bf16.mxu0 0
        %2324 = vmatpush1.bf16.msra.mxu0 0
        %2325 = vmatprep.subr.bf16.mxu0 0
        %2326 = vmatpush1.bf16.msra.mxu0 0
        %2327 = vmatprep.subr.bf16.mxu0 0
        %2328 = vmatpush1.bf16.msra.mxu0 0
        %2329 = vmatprep.subr.bf16.mxu0 0
        %2330 = vmatpush1.bf16.msra.mxu0 0
        %2331 = vmatprep.subr.bf16.mxu0 0
        %2332 = vmatpush1.bf16.msra.mxu0 0
        %2333 = vmatprep.subr.bf16.mxu0 0
        %2334 = vmatpush1.bf16.msra.mxu0 0
        %2335 = vmatprep.mubr.bf16.mxu0 0
        %2336 = vmatmul.mubr.bf16.gmra.mrb[0].mxu0 %v2301
        %v2337 = vpop.f32.mrb[0].mxu0
        %v2338 = vadd.f32 0.0, %v2337
        %v2339 = vpop.f32.mrb[0].mxu0
        %v2340 = vpop.f32.mrb[0].mxu0
        %v2341 = vpop.f32.mrb[0].mxu0
        %2342 = vdwg.mxu0
        %v2343 = vpack.c.bf16 %v2338, %v2338
        %v2344 = vld [vmem:[%s2] sm:$0xf]
        %v2345 = vlaneseq
        %v2346 = vshrl.u32 %v2345, 7
        %v2347 = vsub.s32 1, %v2346
        %v2348 = vrot.slane %v279, %v2347
        %vm2349 = vcmp.eq.s32.totalorder %v284, %v2348
        %vm2350 = vcmp.eq.s32.totalorder %v285, %v2348
        %v2351 = vsel %vm2349, 1, 0
        %v2352 = vsel %vm2350, 1, 0
        %v2353 = vcvt.s32.f32 %v2351
        %v2354 = vcvt.s32.f32 %v2352
        %v2355 = vpack.c.bf16 %v2354, %v2353
        %2356 = vmatprep.subr.bf16.mxu0 0
        %2357 = vmatpush1.bf16.msra.mxu0 %v2355
        %2358 = vmatprep.subr.bf16.mxu0 0
        %2359 = vmatpush1.bf16.msra.mxu0 0
        %2360 = vmatprep.subr.bf16.mxu0 0
        %2361 = vmatpush1.bf16.msra.mxu0 0
        %2362 = vmatprep.subr.bf16.mxu0 0
        %2363 = vmatpush1.bf16.msra.mxu0 0
        %2364 = vmatprep.subr.bf16.mxu0 0
        %2365 = vmatpush1.bf16.msra.mxu0 0
        %2366 = vmatprep.subr.bf16.mxu0 0
        %2367 = vmatpush1.bf16.msra.mxu0 0
        %2368 = vmatprep.subr.bf16.mxu0 0
        %2369 = vmatpush1.bf16.msra.mxu0 0
        %2370 = vmatprep.subr.bf16.mxu0 0
        %2371 = vmatpush1.bf16.msra.mxu0 0
        %2372 = vmatprep.subr.bf16.mxu0 0
        %2373 = vmatpush1.bf16.msra.mxu0 0
        %2374 = vmatprep.subr.bf16.mxu0 0
        %2375 = vmatpush1.bf16.msra.mxu0 0
        %2376 = vmatprep.subr.bf16.mxu0 0
        %2377 = vmatpush1.bf16.msra.mxu0 0
        %2378 = vmatprep.subr.bf16.mxu0 0
        %2379 = vmatpush1.bf16.msra.mxu0 0
        %2380 = vmatprep.subr.bf16.mxu0 0
        %2381 = vmatpush1.bf16.msra.mxu0 0
        %2382 = vmatprep.subr.bf16.mxu0 0
        %2383 = vmatpush1.bf16.msra.mxu0 0
        %2384 = vmatprep.subr.bf16.mxu0 0
        %2385 = vmatpush1.bf16.msra.mxu0 0
        %2386 = vmatprep.subr.bf16.mxu0 0
        %2387 = vmatpush1.bf16.msra.mxu0 0
        %2388 = vmatprep.mubr.bf16.mxu0 0
        %2389 = vmatmul.mubr.bf16.gmra.mrb[0].mxu0 %v2301
        %v2390 = vpop.f32.mrb[0].mxu0
        %v2391 = vadd.f32 0.0, %v2390
        %v2392 = vpop.f32.mrb[0].mxu0
        %v2393 = vpop.f32.mrb[0].mxu0
        %v2394 = vpop.f32.mrb[0].mxu0
        %2395 = vdwg.mxu0
        %v2396 = vpack.c.bf16 %v2391, %v2391
        %v2397 = vld [vmem:[%s422] sm:$0xf]
        %v2399 = vsel %vm424, %v2397, 0
        %v2402 = vsel %vm428, %v2396, 0
        %2404 = vmatprep.subr.bf16.mxu0 0
        %2405 = vmatpush1.bf16.msra.mxu0 %v2402
        %2406 = vmatprep.subr.bf16.mxu0 0
        %2407 = vmatpush1.bf16.msra.mxu0 0
        %2408 = vmatprep.subr.bf16.mxu0 0
        %2409 = vmatpush1.bf16.msra.mxu0 0
        %2410 = vmatprep.subr.bf16.mxu0 0
        %2411 = vmatpush1.bf16.msra.mxu0 0
        %2412 = vmatprep.subr.bf16.mxu0 0
        %2413 = vmatpush1.bf16.msra.mxu0 0
        %2414 = vmatprep.subr.bf16.mxu0 0
        %2415 = vmatpush1.bf16.msra.mxu0 0
        %2416 = vmatprep.subr.bf16.mxu0 0
        %2417 = vmatpush1.bf16.msra.mxu0 0
        %2418 = vmatprep.subr.bf16.mxu0 0
        %2419 = vmatpush1.bf16.msra.mxu0 0
        %2420 = vmatprep.subr.bf16.mxu0 0
        %2421 = vmatpush1.bf16.msra.mxu0 0
        %2422 = vmatprep.subr.bf16.mxu0 0
        %2423 = vmatpush1.bf16.msra.mxu0 0
        %2424 = vmatprep.subr.bf16.mxu0 0
        %2425 = vmatpush1.bf16.msra.mxu0 0
        %2426 = vmatprep.subr.bf16.mxu0 0
        %2427 = vmatpush1.bf16.msra.mxu0 0
        %2428 = vmatprep.subr.bf16.mxu0 0
        %2429 = vmatpush1.bf16.msra.mxu0 0
        %2430 = vmatprep.subr.bf16.mxu0 0
        %2431 = vmatpush1.bf16.msra.mxu0 0
        %2432 = vmatprep.subr.bf16.mxu0 0
        %2433 = vmatpush1.bf16.msra.mxu0 0
        %2434 = vmatprep.subr.bf16.mxu0 0
        %2435 = vmatpush1.bf16.msra.mxu0 0
        %2436 = vmatprep.mubr.bf16.mxu0 0
        %2437 = vmatmul.mubr.bf16.gmra.mrb[0].mxu0 %v2399
        %v2438 = vpop.f32.mrb[0].mxu0
        %v2439 = vadd.f32 0.0, %v2438
        %v2440 = vpop.f32.mrb[0].mxu0
        %v2441 = vpop.f32.mrb[0].mxu0
        %v2442 = vpop.f32.mrb[0].mxu0
        %2443 = vdwg.mxu0
        %v2445 = vsel %vm424, %v2344, 0
        %v2448 = vsel %vm428, %v2343, 0
        %2450 = vmatprep.subr.bf16.mxu0 0
        %2451 = vmatpush1.bf16.msra.mxu0 %v2448
        %2452 = vmatprep.subr.bf16.mxu0 0
        %2453 = vmatpush1.bf16.msra.mxu0 0
        %2454 = vmatprep.subr.bf16.mxu0 0
        %2455 = vmatpush1.bf16.msra.mxu0 0
        %2456 = vmatprep.subr.bf16.mxu0 0
        %2457 = vmatpush1.bf16.msra.mxu0 0
        %2458 = vmatprep.subr.bf16.mxu0 0
        %2459 = vmatpush1.bf16.msra.mxu0 0
        %2460 = vmatprep.subr.bf16.mxu0 0
        %2461 = vmatpush1.bf16.msra.mxu0 0
        %2462 = vmatprep.subr.bf16.mxu0 0
        %2463 = vmatpush1.bf16.msra.mxu0 0
        %2464 = vmatprep.subr.bf16.mxu0 0
        %2465 = vmatpush1.bf16.msra.mxu0 0
        %2466 = vmatprep.subr.bf16.mxu0 0
        %2467 = vmatpush1.bf16.msra.mxu0 0
        %2468 = vmatprep.subr.bf16.mxu0 0
        %2469 = vmatpush1.bf16.msra.mxu0 0
        %2470 = vmatprep.subr.bf16.mxu0 0
        %2471 = vmatpush1.bf16.msra.mxu0 0
        %2472 = vmatprep.subr.bf16.mxu0 0
        %2473 = vmatpush1.bf16.msra.mxu0 0
        %2474 = vmatprep.subr.bf16.mxu0 0
        %2475 = vmatpush1.bf16.msra.mxu0 0
        %2476 = vmatprep.subr.bf16.mxu0 0
        %2477 = vmatpush1.bf16.msra.mxu0 0
        %2478 = vmatprep.subr.bf16.mxu0 0
        %2479 = vmatpush1.bf16.msra.mxu0 0
        %2480 = vmatprep.subr.bf16.mxu0 0
        %2481 = vmatpush1.bf16.msra.mxu0 0
        %2482 = vmatprep.mubr.bf16.mxu0 0
        %2483 = vmatmul.mubr.bf16.gmra.mrb[0].mxu0 %v2445
        %v2484 = vpop.f32.mrb[0].mxu0
        %v2485 = vadd.f32 %v2439, %v2484
        %v2486 = vpop.f32.mrb[0].mxu0
        %v2487 = vpop.f32.mrb[0].mxu0
        %v2488 = vpop.f32.mrb[0].mxu0
        %2489 = vdwg.mxu0
        %v2490 = vlaneseq
        %v2491 = vshrl.u32 %v2490, 7
        %v2492 = vsub.s32 2, %v2491
        %v2493 = vrot.slane %v279, %v2492
        %vm2494 = vcmp.eq.s32.totalorder %v284, %v2493
        %vm2495 = vcmp.eq.s32.totalorder %v285, %v2493
        %v2496 = vsel %vm2494, 1, 0
        %v2497 = vsel %vm2495, 1, 0
        %v2498 = vcvt.s32.f32 %v2496
        %v2499 = vcvt.s32.f32 %v2497
        %v2500 = vpack.c.bf16 %v2499, %v2498
        %2501 = vmatprep.subr.bf16.mxu0 0
        %2502 = vmatpush1.bf16.msra.mxu0 %v2500
        %2503 = vmatprep.subr.bf16.mxu0 0
        %2504 = vmatpush1.bf16.msra.mxu0 0
        %2505 = vmatprep.subr.bf16.mxu0 0
        %2506 = vmatpush1.bf16.msra.mxu0 0
        %2507 = vmatprep.subr.bf16.mxu0 0
        %2508 = vmatpush1.bf16.msra.mxu0 0
        %2509 = vmatprep.subr.bf16.mxu0 0
        %2510 = vmatpush1.bf16.msra.mxu0 0
        %2511 = vmatprep.subr.bf16.mxu0 0
        %2512 = vmatpush1.bf16.msra.mxu0 0
        %2513 = vmatprep.subr.bf16.mxu0 0
        %2514 = vmatpush1.bf16.msra.mxu0 0
        %2515 = vmatprep.subr.bf16.mxu0 0
        %2516 = vmatpush1.bf16.msra.mxu0 0
        %2517 = vmatprep.subr.bf16.mxu0 0
        %2518 = vmatpush1.bf16.msra.mxu0 0
        %2519 = vmatprep.subr.bf16.mxu0 0
        %2520 = vmatpush1.bf16.msra.mxu0 0
        %2521 = vmatprep.subr.bf16.mxu0 0
        %2522 = vmatpush1.bf16.msra.mxu0 0
        %2523 = vmatprep.subr.bf16.mxu0 0
        %2524 = vmatpush1.bf16.msra.mxu0 0
        %2525 = vmatprep.subr.bf16.mxu0 0
        %2526 = vmatpush1.bf16.msra.mxu0 0
        %2527 = vmatprep.subr.bf16.mxu0 0
        %2528 = vmatpush1.bf16.msra.mxu0 0
        %2529 = vmatprep.subr.bf16.mxu0 0
        %2530 = vmatpush1.bf16.msra.mxu0 0
        %2531 = vmatprep.subr.bf16.mxu0 0
        %2532 = vmatpush1.bf16.msra.mxu0 0
        %2533 = vmatprep.mubr.bf16.mxu0 0
        %2534 = vmatmul.mubr.bf16.gmra.mrb[0].mxu0 %v2301
        %v2535 = vpop.f32.mrb[0].mxu0
        %v2536 = vadd.f32 0.0, %v2535
        %v2537 = vpop.f32.mrb[0].mxu0
        %v2538 = vpop.f32.mrb[0].mxu0
        %v2539 = vpop.f32.mrb[0].mxu0
        %2540 = vdwg.mxu0
        %v2541 = vpack.c.bf16 %v2536, %v2536
        %v2542 = vld [vmem:[%s570] sm:$0xf]
        %v2544 = vsel %vm424, %v2542, 0
        %v2547 = vsel %vm428, %v2541, 0
        %2549 = vmatprep.subr.bf16.mxu0 0
        %2550 = vmatpush1.bf16.msra.mxu0 %v2547
        %2551 = vmatprep.subr.bf16.mxu0 0
        %2552 = vmatpush1.bf16.msra.mxu0 0
        %2553 = vmatprep.subr.bf16.mxu0 0
        %2554 = vmatpush1.bf16.msra.mxu0 0
        %2555 = vmatprep.subr.bf16.mxu0 0
        %2556 = vmatpush1.bf16.msra.mxu0 0
        %2557 = vmatprep.subr.bf16.mxu0 0
        %2558 = vmatpush1.bf16.msra.mxu0 0
        %2559 = vmatprep.subr.bf16.mxu0 0
        %2560 = vmatpush1.bf16.msra.mxu0 0
        %2561 = vmatprep.subr.bf16.mxu0 0
        %2562 = vmatpush1.bf16.msra.mxu0 0
        %2563 = vmatprep.subr.bf16.mxu0 0
        %2564 = vmatpush1.bf16.msra.mxu0 0
        %2565 = vmatprep.subr.bf16.mxu0 0
        %2566 = vmatpush1.bf16.msra.mxu0 0
        %2567 = vmatprep.subr.bf16.mxu0 0
        %2568 = vmatpush1.bf16.msra.mxu0 0
        %2569 = vmatprep.subr.bf16.mxu0 0
        %2570 = vmatpush1.bf16.msra.mxu0 0
        %2571 = vmatprep.subr.bf16.mxu0 0
        %2572 = vmatpush1.bf16.msra.mxu0 0
        %2573 = vmatprep.subr.bf16.mxu0 0
        %2574 = vmatpush1.bf16.msra.mxu0 0
        %2575 = vmatprep.subr.bf16.mxu0 0
        %2576 = vmatpush1.bf16.msra.mxu0 0
        %2577 = vmatprep.subr.bf16.mxu0 0
        %2578 = vmatpush1.bf16.msra.mxu0 0
        %2579 = vmatprep.subr.bf16.mxu0 0
        %2580 = vmatpush1.bf16.msra.mxu0 0
        %2581 = vmatprep.mubr.bf16.mxu0 0
        %2582 = vmatmul.mubr.bf16.gmra.mrb[0].mxu0 %v2544
        %v2583 = vpop.f32.mrb[0].mxu0
        %v2584 = vadd.f32 0.0, %v2583
        %v2585 = vpop.f32.mrb[0].mxu0
        %v2586 = vpop.f32.mrb[0].mxu0
        %v2587 = vpop.f32.mrb[0].mxu0
        %2588 = vdwg.mxu0
        %v2589 = vadd.f32 %v2485, %v2584
        %v2590 = vlaneseq
        %v2591 = vshrl.u32 %v2590, 7
        %v2592 = vsub.s32 3, %v2591
        %v2593 = vrot.slane %v279, %v2592
        %vm2594 = vcmp.eq.s32.totalorder %v284, %v2593
        %vm2595 = vcmp.eq.s32.totalorder %v285, %v2593
        %v2596 = vsel %vm2594, 1, 0
        %v2597 = vsel %vm2595, 1, 0
        %v2598 = vcvt.s32.f32 %v2596
        %v2599 = vcvt.s32.f32 %v2597
        %v2600 = vpack.c.bf16 %v2599, %v2598
        %2601 = vmatprep.subr.bf16.mxu0 0
        %2602 = vmatpush1.bf16.msra.mxu0 %v2600
        %2603 = vmatprep.subr.bf16.mxu0 0
        %2604 = vmatpush1.bf16.msra.mxu0 0
        %2605 = vmatprep.subr.bf16.mxu0 0
        %2606 = vmatpush1.bf16.msra.mxu0 0
        %2607 = vmatprep.subr.bf16.mxu0 0
        %2608 = vmatpush1.bf16.msra.mxu0 0
        %2609 = vmatprep.subr.bf16.mxu0 0
        %2610 = vmatpush1.bf16.msra.mxu0 0
        %2611 = vmatprep.subr.bf16.mxu0 0
        %2612 = vmatpush1.bf16.msra.mxu0 0
        %2613 = vmatprep.subr.bf16.mxu0 0
        %2614 = vmatpush1.bf16.msra.mxu0 0
        %2615 = vmatprep.subr.bf16.mxu0 0
        %2616 = vmatpush1.bf16.msra.mxu0 0
        %2617 = vmatprep.subr.bf16.mxu0 0
        %2618 = vmatpush1.bf16.msra.mxu0 0
        %2619 = vmatprep.subr.bf16.mxu0 0
        %2620 = vmatpush1.bf16.msra.mxu0 0
        %2621 = vmatprep.subr.bf16.mxu0 0
        %2622 = vmatpush1.bf16.msra.mxu0 0
        %2623 = vmatprep.subr.bf16.mxu0 0
        %2624 = vmatpush1.bf16.msra.mxu0 0
        %2625 = vmatprep.subr.bf16.mxu0 0
        %2626 = vmatpush1.bf16.msra.mxu0 0
        %2627 = vmatprep.subr.bf16.mxu0 0
        %2628 = vmatpush1.bf16.msra.mxu0 0
        %2629 = vmatprep.subr.bf16.mxu0 0
        %2630 = vmatpush1.bf16.msra.mxu0 0
        %2631 = vmatprep.subr.bf16.mxu0 0
        %2632 = vmatpush1.bf16.msra.mxu0 0
        %2633 = vmatprep.mubr.bf16.mxu0 0
        %2634 = vmatmul.mubr.bf16.gmra.mrb[0].mxu0 %v2301
        %v2635 = vpop.f32.mrb[0].mxu0
        %v2636 = vadd.f32 0.0, %v2635
        %v2637 = vpop.f32.mrb[0].mxu0
        %v2638 = vpop.f32.mrb[0].mxu0
        %v2639 = vpop.f32.mrb[0].mxu0
        %2640 = vdwg.mxu0
        %v2641 = vpack.c.bf16 %v2636, %v2636
        %v2642 = vld [vmem:[%s671] sm:$0xf]
        %v2644 = vsel %vm424, %v2642, 0
        %v2647 = vsel %vm428, %v2641, 0
        %2649 = vmatprep.subr.bf16.mxu0 0
        %2650 = vmatpush1.bf16.msra.mxu0 %v2647
        %2651 = vmatprep.subr.bf16.mxu0 0
        %2652 = vmatpush1.bf16.msra.mxu0 0
        %2653 = vmatprep.subr.bf16.mxu0 0
        %2654 = vmatpush1.bf16.msra.mxu0 0
        %2655 = vmatprep.subr.bf16.mxu0 0
        %2656 = vmatpush1.bf16.msra.mxu0 0
        %2657 = vmatprep.subr.bf16.mxu0 0
        %2658 = vmatpush1.bf16.msra.mxu0 0
        %2659 = vmatprep.subr.bf16.mxu0 0
        %2660 = vmatpush1.bf16.msra.mxu0 0
        %2661 = vmatprep.subr.bf16.mxu0 0
        %2662 = vmatpush1.bf16.msra.mxu0 0
        %2663 = vmatprep.subr.bf16.mxu0 0
        %2664 = vmatpush1.bf16.msra.mxu0 0
        %2665 = vmatprep.subr.bf16.mxu0 0
        %2666 = vmatpush1.bf16.msra.mxu0 0
        %2667 = vmatprep.subr.bf16.mxu0 0
        %2668 = vmatpush1.bf16.msra.mxu0 0
        %2669 = vmatprep.subr.bf16.mxu0 0
        %2670 = vmatpush1.bf16.msra.mxu0 0
        %2671 = vmatprep.subr.bf16.mxu0 0
        %2672 = vmatpush1.bf16.msra.mxu0 0
        %2673 = vmatprep.subr.bf16.mxu0 0
        %2674 = vmatpush1.bf16.msra.mxu0 0
        %2675 = vmatprep.subr.bf16.mxu0 0
        %2676 = vmatpush1.bf16.msra.mxu0 0
        %2677 = vmatprep.subr.bf16.mxu0 0
        %2678 = vmatpush1.bf16.msra.mxu0 0
        %2679 = vmatprep.subr.bf16.mxu0 0
        %2680 = vmatpush1.bf16.msra.mxu0 0
        %2681 = vmatprep.mubr.bf16.mxu0 0
        %2682 = vmatmul.mubr.bf16.gmra.mrb[0].mxu0 %v2644
        %v2683 = vpop.f32.mrb[0].mxu0
        %v2684 = vadd.f32 0.0, %v2683
        %v2685 = vpop.f32.mrb[0].mxu0
        %v2686 = vpop.f32.mrb[0].mxu0
        %v2687 = vpop.f32.mrb[0].mxu0
        %2688 = vdwg.mxu0
        %v2689 = vadd.f32 %v2589, %v2684
        %v2690 = vadd.f32 %v2689, %v723
        %v2692 = vcombine.high %v2690, %v2690
        %v2694 = vunpack.c.l.s4 1966171168
        %v2695 = vunpack.c.0.s8 %v2694
        %v2696 = vlaneseq
        %v2697 = vshrl.u32 %v2696, 7
        %v2698 = vsub.s32 %v2695, %v2697
        %v2699 = vrot.slane %v2690, %v2698
        %v2701 = vunpack.c.l.s4 1966171168
        %v2702 = vunpack.c.0.s8 %v2701
        %v2703 = vlaneseq
        %v2704 = vshrl.u32 %v2703, 7
        %v2705 = vsub.s32 %v2702, %v2704
        %v2706 = vrot.slane %v2692, %v2705
        %v2707 = vcombine.high %v2699, %v2699
        %v2708 = vcombine.high %v2706, %v2706
        %v2710 = vunpack.c.l.s4 1966171168
        %v2711 = vunpack.c.0.s8 %v2710
        %v2712 = vlaneseq
        %v2713 = vshrl.u32 %v2712, 7
        %v2714 = vsub.s32 %v2711, %v2713
        %v2715 = vrot.slane %v2699, %v2714
        %v2717 = vunpack.c.l.s4 1966171168
        %v2718 = vunpack.c.0.s8 %v2717
        %v2719 = vlaneseq
        %v2720 = vshrl.u32 %v2719, 7
        %v2721 = vsub.s32 %v2718, %v2720
        %v2722 = vrot.slane %v2706, %v2721
        %v2724 = vunpack.c.l.s4 1966171168
        %v2725 = vunpack.c.0.s8 %v2724
        %v2726 = vlaneseq
        %v2727 = vshrl.u32 %v2726, 7
        %v2728 = vsub.s32 %v2725, %v2727
        %v2729 = vrot.slane %v2707, %v2728
        %v2731 = vunpack.c.l.s4 1966171168
        %v2732 = vunpack.c.0.s8 %v2731
        %v2733 = vlaneseq
        %v2734 = vshrl.u32 %v2733, 7
        %v2735 = vsub.s32 %v2732, %v2734
        %v2736 = vrot.slane %v2708, %v2735
        %v2737 = vcombine.high %v2715, %v2715
        %v2738 = vcombine.high %v2722, %v2722
        %v2739 = vcombine.high %v2729, %v2729
        %v2740 = vcombine.high %v2736, %v2736
        %2749 = vst.msk [vmem:[%s272 + $0x4] sm:$0x1] %vm784, %v2715
        %2750 = vst.msk [vmem:[%s272 + $0xc] sm:$0x1] %vm784, %v2729
        %2751 = vst.msk [vmem:[%s272 + $0x14] sm:$0x1] %vm784, %v2737
        %2752 = vst.msk [vmem:[%s272 + $0x1c] sm:$0x1] %vm784, %v2739
        %2753 = vst.msk [vmem:[%s272 + $0x24] sm:$0x1] %vm784, %v2722
        %2754 = vst.msk [vmem:[%s272 + $0x2c] sm:$0x1] %vm784, %v2736
        %2755 = vst.msk [vmem:[%s272 + $0x34] sm:$0x1] %vm784, %v2738
        %2756 = vst.msk [vmem:[%s272 + $0x3c] sm:$0x1] %vm784, %v2740
        %v2757 = vld [vmem:[%s234 + $0x5] sm:$0x1]
        %v2758 = vld [vmem:[%s234 + $0xd] sm:$0x1]
        %v2759 = vld [vmem:[%s234 + $0x15] sm:$0x1]
        %v2760 = vld [vmem:[%s234 + $0x1d] sm:$0x1]
        %v2761 = vpack.c.bf16 %v2757, %v2757
        %v2762 = vpack.c.bf16 %v2758, %v2758
        %v2763 = vpack.c.bf16 %v2759, %v2759
        %v2764 = vpack.c.bf16 %v2760, %v2760
        %v2765 = vlaneseq
        %v2766 = vshrl.u32 %v2765, 7
        %v2767 = vsub.s32 0, %v2766
        %v2768 = vrot.slane %v280, %v2767
        %vm2769 = vcmp.eq.s32.totalorder %v284, %v2768
        %vm2770 = vcmp.eq.s32.totalorder %v285, %v2768
        %v2771 = vsel %vm2769, 1, 0
        %v2772 = vsel %vm2770, 1, 0
        %v2773 = vcvt.s32.f32 %v2771
        %v2774 = vcvt.s32.f32 %v2772
        %v2775 = vpack.c.bf16 %v2774, %v2773
        %v2780 = vunpack.c.l.b16 %v2761
        %v2781 = vunpack.c.l.b16 %v2762
        %v2782 = vunpack.c.l.b16 %v2763
        %v2783 = vunpack.c.l.b16 %v2764
        %v2784 = vrot.slane %v2781, 7
        %v2785 = vsel %vm315, %v2784, %v2780
        %v2786 = vrot.slane %v2782, 6
        %v2787 = vsel %vm318, %v2786, %v2785
        %v2788 = vrot.slane %v2783, 5
        %v2789 = vsel %vm321, %v2788, %v2787
        %v2790 = vpack.c.b16 %v2789, %v2789
        %v2792 = vsel %vm324, %v2790, 0
        %2794 = vmatprep.subr.bf16.mxu0 0
        %2795 = vmatpush1.bf16.msra.mxu0 %v2775
        %2796 = vmatprep.subr.bf16.mxu0 0
        %2797 = vmatpush1.bf16.msra.mxu0 0
        %2798 = vmatprep.subr.bf16.mxu0 0
        %2799 = vmatpush1.bf16.msra.mxu0 0
        %2800 = vmatprep.subr.bf16.mxu0 0
        %2801 = vmatpush1.bf16.msra.mxu0 0
        %2802 = vmatprep.subr.bf16.mxu0 0
        %2803 = vmatpush1.bf16.msra.mxu0 0
        %2804 = vmatprep.subr.bf16.mxu0 0
        %2805 = vmatpush1.bf16.msra.mxu0 0
        %2806 = vmatprep.subr.bf16.mxu0 0
        %2807 = vmatpush1.bf16.msra.mxu0 0
        %2808 = vmatprep.subr.bf16.mxu0 0
        %2809 = vmatpush1.bf16.msra.mxu0 0
        %2810 = vmatprep.subr.bf16.mxu0 0
        %2811 = vmatpush1.bf16.msra.mxu0 0
        %2812 = vmatprep.subr.bf16.mxu0 0
        %2813 = vmatpush1.bf16.msra.mxu0 0
        %2814 = vmatprep.subr.bf16.mxu0 0
        %2815 = vmatpush1.bf16.msra.mxu0 0
        %2816 = vmatprep.subr.bf16.mxu0 0
        %2817 = vmatpush1.bf16.msra.mxu0 0
        %2818 = vmatprep.subr.bf16.mxu0 0
        %2819 = vmatpush1.bf16.msra.mxu0 0
        %2820 = vmatprep.subr.bf16.mxu0 0
        %2821 = vmatpush1.bf16.msra.mxu0 0
        %2822 = vmatprep.subr.bf16.mxu0 0
        %2823 = vmatpush1.bf16.msra.mxu0 0
        %2824 = vmatprep.subr.bf16.mxu0 0
        %2825 = vmatpush1.bf16.msra.mxu0 0
        %2826 = vmatprep.mubr.bf16.mxu0 0
        %2827 = vmatmul.mubr.bf16.gmra.mrb[0].mxu0 %v2792
        %v2828 = vpop.f32.mrb[0].mxu0
        %v2829 = vadd.f32 0.0, %v2828
        %v2830 = vpop.f32.mrb[0].mxu0
        %v2831 = vpop.f32.mrb[0].mxu0
        %v2832 = vpop.f32.mrb[0].mxu0
        %2833 = vdwg.mxu0
        %v2834 = vpack.c.bf16 %v2829, %v2829
        %v2835 = vld [vmem:[%s2] sm:$0xf]
        %v2836 = vlaneseq
        %v2837 = vshrl.u32 %v2836, 7
        %v2838 = vsub.s32 1, %v2837
        %v2839 = vrot.slane %v280, %v2838
        %vm2840 = vcmp.eq.s32.totalorder %v284, %v2839
        %vm2841 = vcmp.eq.s32.totalorder %v285, %v2839
        %v2842 = vsel %vm2840, 1, 0
        %v2843 = vsel %vm2841, 1, 0
        %v2844 = vcvt.s32.f32 %v2842
        %v2845 = vcvt.s32.f32 %v2843
        %v2846 = vpack.c.bf16 %v2845, %v2844
        %2847 = vmatprep.subr.bf16.mxu0 0
        %2848 = vmatpush1.bf16.msra.mxu0 %v2846
        %2849 = vmatprep.subr.bf16.mxu0 0
        %2850 = vmatpush1.bf16.msra.mxu0 0
        %2851 = vmatprep.subr.bf16.mxu0 0
        %2852 = vmatpush1.bf16.msra.mxu0 0
        %2853 = vmatprep.subr.bf16.mxu0 0
        %2854 = vmatpush1.bf16.msra.mxu0 0
        %2855 = vmatprep.subr.bf16.mxu0 0
        %2856 = vmatpush1.bf16.msra.mxu0 0
        %2857 = vmatprep.subr.bf16.mxu0 0
        %2858 = vmatpush1.bf16.msra.mxu0 0
        %2859 = vmatprep.subr.bf16.mxu0 0
        %2860 = vmatpush1.bf16.msra.mxu0 0
        %2861 = vmatprep.subr.bf16.mxu0 0
        %2862 = vmatpush1.bf16.msra.mxu0 0
        %2863 = vmatprep.subr.bf16.mxu0 0
        %2864 = vmatpush1.bf16.msra.mxu0 0
        %2865 = vmatprep.subr.bf16.mxu0 0
        %2866 = vmatpush1.bf16.msra.mxu0 0
        %2867 = vmatprep.subr.bf16.mxu0 0
        %2868 = vmatpush1.bf16.msra.mxu0 0
        %2869 = vmatprep.subr.bf16.mxu0 0
        %2870 = vmatpush1.bf16.msra.mxu0 0
        %2871 = vmatprep.subr.bf16.mxu0 0
        %2872 = vmatpush1.bf16.msra.mxu0 0
        %2873 = vmatprep.subr.bf16.mxu0 0
        %2874 = vmatpush1.bf16.msra.mxu0 0
        %2875 = vmatprep.subr.bf16.mxu0 0
        %2876 = vmatpush1.bf16.msra.mxu0 0
        %2877 = vmatprep.subr.bf16.mxu0 0
        %2878 = vmatpush1.bf16.msra.mxu0 0
        %2879 = vmatprep.mubr.bf16.mxu0 0
        %2880 = vmatmul.mubr.bf16.gmra.mrb[0].mxu0 %v2792
        %v2881 = vpop.f32.mrb[0].mxu0
        %v2882 = vadd.f32 0.0, %v2881
        %v2883 = vpop.f32.mrb[0].mxu0
        %v2884 = vpop.f32.mrb[0].mxu0
        %v2885 = vpop.f32.mrb[0].mxu0
        %2886 = vdwg.mxu0
        %v2887 = vpack.c.bf16 %v2882, %v2882
        %v2888 = vld [vmem:[%s422] sm:$0xf]
        %v2890 = vsel %vm424, %v2888, 0
        %v2893 = vsel %vm428, %v2887, 0
        %2895 = vmatprep.subr.bf16.mxu0 0
        %2896 = vmatpush1.bf16.msra.mxu0 %v2893
        %2897 = vmatprep.subr.bf16.mxu0 0
        %2898 = vmatpush1.bf16.msra.mxu0 0
        %2899 = vmatprep.subr.bf16.mxu0 0
        %2900 = vmatpush1.bf16.msra.mxu0 0
        %2901 = vmatprep.subr.bf16.mxu0 0
        %2902 = vmatpush1.bf16.msra.mxu0 0
        %2903 = vmatprep.subr.bf16.mxu0 0
        %2904 = vmatpush1.bf16.msra.mxu0 0
        %2905 = vmatprep.subr.bf16.mxu0 0
        %2906 = vmatpush1.bf16.msra.mxu0 0
        %2907 = vmatprep.subr.bf16.mxu0 0
        %2908 = vmatpush1.bf16.msra.mxu0 0
        %2909 = vmatprep.subr.bf16.mxu0 0
        %2910 = vmatpush1.bf16.msra.mxu0 0
        %2911 = vmatprep.subr.bf16.mxu0 0
        %2912 = vmatpush1.bf16.msra.mxu0 0
        %2913 = vmatprep.subr.bf16.mxu0 0
        %2914 = vmatpush1.bf16.msra.mxu0 0
        %2915 = vmatprep.subr.bf16.mxu0 0
        %2916 = vmatpush1.bf16.msra.mxu0 0
        %2917 = vmatprep.subr.bf16.mxu0 0
        %2918 = vmatpush1.bf16.msra.mxu0 0
        %2919 = vmatprep.subr.bf16.mxu0 0
        %2920 = vmatpush1.bf16.msra.mxu0 0
        %2921 = vmatprep.subr.bf16.mxu0 0
        %2922 = vmatpush1.bf16.msra.mxu0 0
        %2923 = vmatprep.subr.bf16.mxu0 0
        %2924 = vmatpush1.bf16.msra.mxu0 0
        %2925 = vmatprep.subr.bf16.mxu0 0
        %2926 = vmatpush1.bf16.msra.mxu0 0
        %2927 = vmatprep.mubr.bf16.mxu0 0
        %2928 = vmatmul.mubr.bf16.gmra.mrb[0].mxu0 %v2890
        %v2929 = vpop.f32.mrb[0].mxu0
        %v2930 = vadd.f32 0.0, %v2929
        %v2931 = vpop.f32.mrb[0].mxu0
        %v2932 = vpop.f32.mrb[0].mxu0
        %v2933 = vpop.f32.mrb[0].mxu0
        %2934 = vdwg.mxu0
        %v2936 = vsel %vm424, %v2835, 0
        %v2939 = vsel %vm428, %v2834, 0
        %2941 = vmatprep.subr.bf16.mxu0 0
        %2942 = vmatpush1.bf16.msra.mxu0 %v2939
        %2943 = vmatprep.subr.bf16.mxu0 0
        %2944 = vmatpush1.bf16.msra.mxu0 0
        %2945 = vmatprep.subr.bf16.mxu0 0
        %2946 = vmatpush1.bf16.msra.mxu0 0
        %2947 = vmatprep.subr.bf16.mxu0 0
        %2948 = vmatpush1.bf16.msra.mxu0 0
        %2949 = vmatprep.subr.bf16.mxu0 0
        %2950 = vmatpush1.bf16.msra.mxu0 0
        %2951 = vmatprep.subr.bf16.mxu0 0
        %2952 = vmatpush1.bf16.msra.mxu0 0
        %2953 = vmatprep.subr.bf16.mxu0 0
        %2954 = vmatpush1.bf16.msra.mxu0 0
        %2955 = vmatprep.subr.bf16.mxu0 0
        %2956 = vmatpush1.bf16.msra.mxu0 0
        %2957 = vmatprep.subr.bf16.mxu0 0
        %2958 = vmatpush1.bf16.msra.mxu0 0
        %2959 = vmatprep.subr.bf16.mxu0 0
        %2960 = vmatpush1.bf16.msra.mxu0 0
        %2961 = vmatprep.subr.bf16.mxu0 0
        %2962 = vmatpush1.bf16.msra.mxu0 0
        %2963 = vmatprep.subr.bf16.mxu0 0
        %2964 = vmatpush1.bf16.msra.mxu0 0
        %2965 = vmatprep.subr.bf16.mxu0 0
        %2966 = vmatpush1.bf16.msra.mxu0 0
        %2967 = vmatprep.subr.bf16.mxu0 0
        %2968 = vmatpush1.bf16.msra.mxu0 0
        %2969 = vmatprep.subr.bf16.mxu0 0
        %2970 = vmatpush1.bf16.msra.mxu0 0
        %2971 = vmatprep.subr.bf16.mxu0 0
        %2972 = vmatpush1.bf16.msra.mxu0 0
        %2973 = vmatprep.mubr.bf16.mxu0 0
        %2974 = vmatmul.mubr.bf16.gmra.mrb[0].mxu0 %v2936
        %v2975 = vpop.f32.mrb[0].mxu0
        %v2976 = vadd.f32 %v2930, %v2975
        %v2977 = vpop.f32.mrb[0].mxu0
        %v2978 = vpop.f32.mrb[0].mxu0
        %v2979 = vpop.f32.mrb[0].mxu0
        %2980 = vdwg.mxu0
        %v2981 = vlaneseq
        %v2982 = vshrl.u32 %v2981, 7
        %v2983 = vsub.s32 2, %v2982
        %v2984 = vrot.slane %v280, %v2983
        %vm2985 = vcmp.eq.s32.totalorder %v284, %v2984
        %vm2986 = vcmp.eq.s32.totalorder %v285, %v2984
        %v2987 = vsel %vm2985, 1, 0
        %v2988 = vsel %vm2986, 1, 0
        %v2989 = vcvt.s32.f32 %v2987
        %v2990 = vcvt.s32.f32 %v2988
        %v2991 = vpack.c.bf16 %v2990, %v2989
        %2992 = vmatprep.subr.bf16.mxu0 0
        %2993 = vmatpush1.bf16.msra.mxu0 %v2991
        %2994 = vmatprep.subr.bf16.mxu0 0
        %2995 = vmatpush1.bf16.msra.mxu0 0
        %2996 = vmatprep.subr.bf16.mxu0 0
        %2997 = vmatpush1.bf16.msra.mxu0 0
        %2998 = vmatprep.subr.bf16.mxu0 0
        %2999 = vmatpush1.bf16.msra.mxu0 0
        %3000 = vmatprep.subr.bf16.mxu0 0
        %3001 = vmatpush1.bf16.msra.mxu0 0
        %3002 = vmatprep.subr.bf16.mxu0 0
        %3003 = vmatpush1.bf16.msra.mxu0 0
        %3004 = vmatprep.subr.bf16.mxu0 0
        %3005 = vmatpush1.bf16.msra.mxu0 0
        %3006 = vmatprep.subr.bf16.mxu0 0
        %3007 = vmatpush1.bf16.msra.mxu0 0
        %3008 = vmatprep.subr.bf16.mxu0 0
        %3009 = vmatpush1.bf16.msra.mxu0 0
        %3010 = vmatprep.subr.bf16.mxu0 0
        %3011 = vmatpush1.bf16.msra.mxu0 0
        %3012 = vmatprep.subr.bf16.mxu0 0
        %3013 = vmatpush1.bf16.msra.mxu0 0
        %3014 = vmatprep.subr.bf16.mxu0 0
        %3015 = vmatpush1.bf16.msra.mxu0 0
        %3016 = vmatprep.subr.bf16.mxu0 0
        %3017 = vmatpush1.bf16.msra.mxu0 0
        %3018 = vmatprep.subr.bf16.mxu0 0
        %3019 = vmatpush1.bf16.msra.mxu0 0
        %3020 = vmatprep.subr.bf16.mxu0 0
        %3021 = vmatpush1.bf16.msra.mxu0 0
        %3022 = vmatprep.subr.bf16.mxu0 0
        %3023 = vmatpush1.bf16.msra.mxu0 0
        %3024 = vmatprep.mubr.bf16.mxu0 0
        %3025 = vmatmul.mubr.bf16.gmra.mrb[0].mxu0 %v2792
        %v3026 = vpop.f32.mrb[0].mxu0
        %v3027 = vadd.f32 0.0, %v3026
        %v3028 = vpop.f32.mrb[0].mxu0
        %v3029 = vpop.f32.mrb[0].mxu0
        %v3030 = vpop.f32.mrb[0].mxu0
        %3031 = vdwg.mxu0
        %v3032 = vpack.c.bf16 %v3027, %v3027
        %v3033 = vld [vmem:[%s570] sm:$0xf]
        %v3035 = vsel %vm424, %v3033, 0
        %v3038 = vsel %vm428, %v3032, 0
        %3040 = vmatprep.subr.bf16.mxu0 0
        %3041 = vmatpush1.bf16.msra.mxu0 %v3038
        %3042 = vmatprep.subr.bf16.mxu0 0
        %3043 = vmatpush1.bf16.msra.mxu0 0
        %3044 = vmatprep.subr.bf16.mxu0 0
        %3045 = vmatpush1.bf16.msra.mxu0 0
        %3046 = vmatprep.subr.bf16.mxu0 0
        %3047 = vmatpush1.bf16.msra.mxu0 0
        %3048 = vmatprep.subr.bf16.mxu0 0
        %3049 = vmatpush1.bf16.msra.mxu0 0
        %3050 = vmatprep.subr.bf16.mxu0 0
        %3051 = vmatpush1.bf16.msra.mxu0 0
        %3052 = vmatprep.subr.bf16.mxu0 0
        %3053 = vmatpush1.bf16.msra.mxu0 0
        %3054 = vmatprep.subr.bf16.mxu0 0
        %3055 = vmatpush1.bf16.msra.mxu0 0
        %3056 = vmatprep.subr.bf16.mxu0 0
        %3057 = vmatpush1.bf16.msra.mxu0 0
        %3058 = vmatprep.subr.bf16.mxu0 0
        %3059 = vmatpush1.bf16.msra.mxu0 0
        %3060 = vmatprep.subr.bf16.mxu0 0
        %3061 = vmatpush1.bf16.msra.mxu0 0
        %3062 = vmatprep.subr.bf16.mxu0 0
        %3063 = vmatpush1.bf16.msra.mxu0 0
        %3064 = vmatprep.subr.bf16.mxu0 0
        %3065 = vmatpush1.bf16.msra.mxu0 0
        %3066 = vmatprep.subr.bf16.mxu0 0
        %3067 = vmatpush1.bf16.msra.mxu0 0
        %3068 = vmatprep.subr.bf16.mxu0 0
        %3069 = vmatpush1.bf16.msra.mxu0 0
        %3070 = vmatprep.subr.bf16.mxu0 0
        %3071 = vmatpush1.bf16.msra.mxu0 0
        %3072 = vmatprep.mubr.bf16.mxu0 0
        %3073 = vmatmul.mubr.bf16.gmra.mrb[0].mxu0 %v3035
        %v3074 = vpop.f32.mrb[0].mxu0
        %v3075 = vadd.f32 0.0, %v3074
        %v3076 = vpop.f32.mrb[0].mxu0
        %v3077 = vpop.f32.mrb[0].mxu0
        %v3078 = vpop.f32.mrb[0].mxu0
        %3079 = vdwg.mxu0
        %v3080 = vadd.f32 %v2976, %v3075
        %v3081 = vlaneseq
        %v3082 = vshrl.u32 %v3081, 7
        %v3083 = vsub.s32 3, %v3082
        %v3084 = vrot.slane %v280, %v3083
        %vm3085 = vcmp.eq.s32.totalorder %v284, %v3084
        %vm3086 = vcmp.eq.s32.totalorder %v285, %v3084
        %v3087 = vsel %vm3085, 1, 0
        %v3088 = vsel %vm3086, 1, 0
        %v3089 = vcvt.s32.f32 %v3087
        %v3090 = vcvt.s32.f32 %v3088
        %v3091 = vpack.c.bf16 %v3090, %v3089
        %3092 = vmatprep.subr.bf16.mxu0 0
        %3093 = vmatpush1.bf16.msra.mxu0 %v3091
        %3094 = vmatprep.subr.bf16.mxu0 0
        %3095 = vmatpush1.bf16.msra.mxu0 0
        %3096 = vmatprep.subr.bf16.mxu0 0
        %3097 = vmatpush1.bf16.msra.mxu0 0
        %3098 = vmatprep.subr.bf16.mxu0 0
        %3099 = vmatpush1.bf16.msra.mxu0 0
        %3100 = vmatprep.subr.bf16.mxu0 0
        %3101 = vmatpush1.bf16.msra.mxu0 0
        %3102 = vmatprep.subr.bf16.mxu0 0
        %3103 = vmatpush1.bf16.msra.mxu0 0
        %3104 = vmatprep.subr.bf16.mxu0 0
        %3105 = vmatpush1.bf16.msra.mxu0 0
        %3106 = vmatprep.subr.bf16.mxu0 0
        %3107 = vmatpush1.bf16.msra.mxu0 0
        %3108 = vmatprep.subr.bf16.mxu0 0
        %3109 = vmatpush1.bf16.msra.mxu0 0
        %3110 = vmatprep.subr.bf16.mxu0 0
        %3111 = vmatpush1.bf16.msra.mxu0 0
        %3112 = vmatprep.subr.bf16.mxu0 0
        %3113 = vmatpush1.bf16.msra.mxu0 0
        %3114 = vmatprep.subr.bf16.mxu0 0
        %3115 = vmatpush1.bf16.msra.mxu0 0
        %3116 = vmatprep.subr.bf16.mxu0 0
        %3117 = vmatpush1.bf16.msra.mxu0 0
        %3118 = vmatprep.subr.bf16.mxu0 0
        %3119 = vmatpush1.bf16.msra.mxu0 0
        %3120 = vmatprep.subr.bf16.mxu0 0
        %3121 = vmatpush1.bf16.msra.mxu0 0
        %3122 = vmatprep.subr.bf16.mxu0 0
        %3123 = vmatpush1.bf16.msra.mxu0 0
        %3124 = vmatprep.mubr.bf16.mxu0 0
        %3125 = vmatmul.mubr.bf16.gmra.mrb[0].mxu0 %v2792
        %v3126 = vpop.f32.mrb[0].mxu0
        %v3127 = vadd.f32 0.0, %v3126
        %v3128 = vpop.f32.mrb[0].mxu0
        %v3129 = vpop.f32.mrb[0].mxu0
        %v3130 = vpop.f32.mrb[0].mxu0
        %3131 = vdwg.mxu0
        %v3132 = vpack.c.bf16 %v3127, %v3127
        %v3133 = vld [vmem:[%s671] sm:$0xf]
        %v3135 = vsel %vm424, %v3133, 0
        %v3138 = vsel %vm428, %v3132, 0
        %3140 = vmatprep.subr.bf16.mxu0 0
        %3141 = vmatpush1.bf16.msra.mxu0 %v3138
        %3142 = vmatprep.subr.bf16.mxu0 0
        %3143 = vmatpush1.bf16.msra.mxu0 0
        %3144 = vmatprep.subr.bf16.mxu0 0
        %3145 = vmatpush1.bf16.msra.mxu0 0
        %3146 = vmatprep.subr.bf16.mxu0 0
        %3147 = vmatpush1.bf16.msra.mxu0 0
        %3148 = vmatprep.subr.bf16.mxu0 0
        %3149 = vmatpush1.bf16.msra.mxu0 0
        %3150 = vmatprep.subr.bf16.mxu0 0
        %3151 = vmatpush1.bf16.msra.mxu0 0
        %3152 = vmatprep.subr.bf16.mxu0 0
        %3153 = vmatpush1.bf16.msra.mxu0 0
        %3154 = vmatprep.subr.bf16.mxu0 0
        %3155 = vmatpush1.bf16.msra.mxu0 0
        %3156 = vmatprep.subr.bf16.mxu0 0
        %3157 = vmatpush1.bf16.msra.mxu0 0
        %3158 = vmatprep.subr.bf16.mxu0 0
        %3159 = vmatpush1.bf16.msra.mxu0 0
        %3160 = vmatprep.subr.bf16.mxu0 0
        %3161 = vmatpush1.bf16.msra.mxu0 0
        %3162 = vmatprep.subr.bf16.mxu0 0
        %3163 = vmatpush1.bf16.msra.mxu0 0
        %3164 = vmatprep.subr.bf16.mxu0 0
        %3165 = vmatpush1.bf16.msra.mxu0 0
        %3166 = vmatprep.subr.bf16.mxu0 0
        %3167 = vmatpush1.bf16.msra.mxu0 0
        %3168 = vmatprep.subr.bf16.mxu0 0
        %3169 = vmatpush1.bf16.msra.mxu0 0
        %3170 = vmatprep.subr.bf16.mxu0 0
        %3171 = vmatpush1.bf16.msra.mxu0 0
        %3172 = vmatprep.mubr.bf16.mxu0 0
        %3173 = vmatmul.mubr.bf16.gmra.mrb[0].mxu0 %v3135
        %v3174 = vpop.f32.mrb[0].mxu0
        %v3175 = vadd.f32 0.0, %v3174
        %v3176 = vpop.f32.mrb[0].mxu0
        %v3177 = vpop.f32.mrb[0].mxu0
        %v3178 = vpop.f32.mrb[0].mxu0
        %3179 = vdwg.mxu0
        %v3180 = vadd.f32 %v3080, %v3175
        %v3181 = vadd.f32 %v3180, %v723
        %v3183 = vcombine.high %v3181, %v3181
        %v3185 = vunpack.c.l.s4 1966171168
        %v3186 = vunpack.c.0.s8 %v3185
        %v3187 = vlaneseq
        %v3188 = vshrl.u32 %v3187, 7
        %v3189 = vsub.s32 %v3186, %v3188
        %v3190 = vrot.slane %v3181, %v3189
        %v3192 = vunpack.c.l.s4 1966171168
        %v3193 = vunpack.c.0.s8 %v3192
        %v3194 = vlaneseq
        %v3195 = vshrl.u32 %v3194, 7
        %v3196 = vsub.s32 %v3193, %v3195
        %v3197 = vrot.slane %v3183, %v3196
        %v3198 = vcombine.high %v3190, %v3190
        %v3199 = vcombine.high %v3197, %v3197
        %v3201 = vunpack.c.l.s4 1966171168
        %v3202 = vunpack.c.0.s8 %v3201
        %v3203 = vlaneseq
        %v3204 = vshrl.u32 %v3203, 7
        %v3205 = vsub.s32 %v3202, %v3204
        %v3206 = vrot.slane %v3190, %v3205
        %v3208 = vunpack.c.l.s4 1966171168
        %v3209 = vunpack.c.0.s8 %v3208
        %v3210 = vlaneseq
        %v3211 = vshrl.u32 %v3210, 7
        %v3212 = vsub.s32 %v3209, %v3211
        %v3213 = vrot.slane %v3197, %v3212
        %v3215 = vunpack.c.l.s4 1966171168
        %v3216 = vunpack.c.0.s8 %v3215
        %v3217 = vlaneseq
        %v3218 = vshrl.u32 %v3217, 7
        %v3219 = vsub.s32 %v3216, %v3218
        %v3220 = vrot.slane %v3198, %v3219
        %v3222 = vunpack.c.l.s4 1966171168
        %v3223 = vunpack.c.0.s8 %v3222
        %v3224 = vlaneseq
        %v3225 = vshrl.u32 %v3224, 7
        %v3226 = vsub.s32 %v3223, %v3225
        %v3227 = vrot.slane %v3199, %v3226
        %v3228 = vcombine.high %v3206, %v3206
        %v3229 = vcombine.high %v3213, %v3213
        %v3230 = vcombine.high %v3220, %v3220
        %v3231 = vcombine.high %v3227, %v3227
        %3240 = vst.msk [vmem:[%s272 + $0x5] sm:$0x1] %vm784, %v3206
        %3241 = vst.msk [vmem:[%s272 + $0xd] sm:$0x1] %vm784, %v3220
        %3242 = vst.msk [vmem:[%s272 + $0x15] sm:$0x1] %vm784, %v3228
        %3243 = vst.msk [vmem:[%s272 + $0x1d] sm:$0x1] %vm784, %v3230
        %3244 = vst.msk [vmem:[%s272 + $0x25] sm:$0x1] %vm784, %v3213
        %3245 = vst.msk [vmem:[%s272 + $0x2d] sm:$0x1] %vm784, %v3227
        %3246 = vst.msk [vmem:[%s272 + $0x35] sm:$0x1] %vm784, %v3229
        %3247 = vst.msk [vmem:[%s272 + $0x3d] sm:$0x1] %vm784, %v3231
        %v3248 = vld [vmem:[%s234 + $0x6] sm:$0x1]
        %v3249 = vld [vmem:[%s234 + $0xe] sm:$0x1]
        %v3250 = vld [vmem:[%s234 + $0x16] sm:$0x1]
        %v3251 = vld [vmem:[%s234 + $0x1e] sm:$0x1]
        %v3252 = vpack.c.bf16 %v3248, %v3248
        %v3253 = vpack.c.bf16 %v3249, %v3249
        %v3254 = vpack.c.bf16 %v3250, %v3250
        %v3255 = vpack.c.bf16 %v3251, %v3251
        %v3256 = vlaneseq
        %v3257 = vshrl.u32 %v3256, 7
        %v3258 = vsub.s32 0, %v3257
        %v3259 = vrot.slane %v281, %v3258
        %vm3260 = vcmp.eq.s32.totalorder %v284, %v3259
        %vm3261 = vcmp.eq.s32.totalorder %v285, %v3259
        %v3262 = vsel %vm3260, 1, 0
        %v3263 = vsel %vm3261, 1, 0
        %v3264 = vcvt.s32.f32 %v3262
        %v3265 = vcvt.s32.f32 %v3263
        %v3266 = vpack.c.bf16 %v3265, %v3264
        %v3271 = vunpack.c.l.b16 %v3252
        %v3272 = vunpack.c.l.b16 %v3253
        %v3273 = vunpack.c.l.b16 %v3254
        %v3274 = vunpack.c.l.b16 %v3255
        %v3275 = vrot.slane %v3272, 7
        %v3276 = vsel %vm315, %v3275, %v3271
        %v3277 = vrot.slane %v3273, 6
        %v3278 = vsel %vm318, %v3277, %v3276
        %v3279 = vrot.slane %v3274, 5
        %v3280 = vsel %vm321, %v3279, %v3278
        %v3281 = vpack.c.b16 %v3280, %v3280
        %v3283 = vsel %vm324, %v3281, 0
        %3285 = vmatprep.subr.bf16.mxu0 0
        %3286 = vmatpush1.bf16.msra.mxu0 %v3266
        %3287 = vmatprep.subr.bf16.mxu0 0
        %3288 = vmatpush1.bf16.msra.mxu0 0
        %3289 = vmatprep.subr.bf16.mxu0 0
        %3290 = vmatpush1.bf16.msra.mxu0 0
        %3291 = vmatprep.subr.bf16.mxu0 0
        %3292 = vmatpush1.bf16.msra.mxu0 0
        %3293 = vmatprep.subr.bf16.mxu0 0
        %3294 = vmatpush1.bf16.msra.mxu0 0
        %3295 = vmatprep.subr.bf16.mxu0 0
        %3296 = vmatpush1.bf16.msra.mxu0 0
        %3297 = vmatprep.subr.bf16.mxu0 0
        %3298 = vmatpush1.bf16.msra.mxu0 0
        %3299 = vmatprep.subr.bf16.mxu0 0
        %3300 = vmatpush1.bf16.msra.mxu0 0
        %3301 = vmatprep.subr.bf16.mxu0 0
        %3302 = vmatpush1.bf16.msra.mxu0 0
        %3303 = vmatprep.subr.bf16.mxu0 0
        %3304 = vmatpush1.bf16.msra.mxu0 0
        %3305 = vmatprep.subr.bf16.mxu0 0
        %3306 = vmatpush1.bf16.msra.mxu0 0
        %3307 = vmatprep.subr.bf16.mxu0 0
        %3308 = vmatpush1.bf16.msra.mxu0 0
        %3309 = vmatprep.subr.bf16.mxu0 0
        %3310 = vmatpush1.bf16.msra.mxu0 0
        %3311 = vmatprep.subr.bf16.mxu0 0
        %3312 = vmatpush1.bf16.msra.mxu0 0
        %3313 = vmatprep.subr.bf16.mxu0 0
        %3314 = vmatpush1.bf16.msra.mxu0 0
        %3315 = vmatprep.subr.bf16.mxu0 0
        %3316 = vmatpush1.bf16.msra.mxu0 0
        %3317 = vmatprep.mubr.bf16.mxu0 0
        %3318 = vmatmul.mubr.bf16.gmra.mrb[0].mxu0 %v3283
        %v3319 = vpop.f32.mrb[0].mxu0
        %v3320 = vadd.f32 0.0, %v3319
        %v3321 = vpop.f32.mrb[0].mxu0
        %v3322 = vpop.f32.mrb[0].mxu0
        %v3323 = vpop.f32.mrb[0].mxu0
        %3324 = vdwg.mxu0
        %v3325 = vpack.c.bf16 %v3320, %v3320
        %v3326 = vld [vmem:[%s2] sm:$0xf]
        %v3327 = vlaneseq
        %v3328 = vshrl.u32 %v3327, 7
        %v3329 = vsub.s32 1, %v3328
        %v3330 = vrot.slane %v281, %v3329
        %vm3331 = vcmp.eq.s32.totalorder %v284, %v3330
        %vm3332 = vcmp.eq.s32.totalorder %v285, %v3330
        %v3333 = vsel %vm3331, 1, 0
        %v3334 = vsel %vm3332, 1, 0
        %v3335 = vcvt.s32.f32 %v3333
        %v3336 = vcvt.s32.f32 %v3334
        %v3337 = vpack.c.bf16 %v3336, %v3335
        %3338 = vmatprep.subr.bf16.mxu0 0
        %3339 = vmatpush1.bf16.msra.mxu0 %v3337
        %3340 = vmatprep.subr.bf16.mxu0 0
        %3341 = vmatpush1.bf16.msra.mxu0 0
        %3342 = vmatprep.subr.bf16.mxu0 0
        %3343 = vmatpush1.bf16.msra.mxu0 0
        %3344 = vmatprep.subr.bf16.mxu0 0
        %3345 = vmatpush1.bf16.msra.mxu0 0
        %3346 = vmatprep.subr.bf16.mxu0 0
        %3347 = vmatpush1.bf16.msra.mxu0 0
        %3348 = vmatprep.subr.bf16.mxu0 0
        %3349 = vmatpush1.bf16.msra.mxu0 0
        %3350 = vmatprep.subr.bf16.mxu0 0
        %3351 = vmatpush1.bf16.msra.mxu0 0
        %3352 = vmatprep.subr.bf16.mxu0 0
        %3353 = vmatpush1.bf16.msra.mxu0 0
        %3354 = vmatprep.subr.bf16.mxu0 0
        %3355 = vmatpush1.bf16.msra.mxu0 0
        %3356 = vmatprep.subr.bf16.mxu0 0
        %3357 = vmatpush1.bf16.msra.mxu0 0
        %3358 = vmatprep.subr.bf16.mxu0 0
        %3359 = vmatpush1.bf16.msra.mxu0 0
        %3360 = vmatprep.subr.bf16.mxu0 0
        %3361 = vmatpush1.bf16.msra.mxu0 0
        %3362 = vmatprep.subr.bf16.mxu0 0
        %3363 = vmatpush1.bf16.msra.mxu0 0
        %3364 = vmatprep.subr.bf16.mxu0 0
        %3365 = vmatpush1.bf16.msra.mxu0 0
        %3366 = vmatprep.subr.bf16.mxu0 0
        %3367 = vmatpush1.bf16.msra.mxu0 0
        %3368 = vmatprep.subr.bf16.mxu0 0
        %3369 = vmatpush1.bf16.msra.mxu0 0
        %3370 = vmatprep.mubr.bf16.mxu0 0
        %3371 = vmatmul.mubr.bf16.gmra.mrb[0].mxu0 %v3283
        %v3372 = vpop.f32.mrb[0].mxu0
        %v3373 = vadd.f32 0.0, %v3372
        %v3374 = vpop.f32.mrb[0].mxu0
        %v3375 = vpop.f32.mrb[0].mxu0
        %v3376 = vpop.f32.mrb[0].mxu0
        %3377 = vdwg.mxu0
        %v3378 = vpack.c.bf16 %v3373, %v3373
        %v3379 = vld [vmem:[%s422] sm:$0xf]
        %v3381 = vsel %vm424, %v3379, 0
        %v3384 = vsel %vm428, %v3378, 0
        %3386 = vmatprep.subr.bf16.mxu0 0
        %3387 = vmatpush1.bf16.msra.mxu0 %v3384
        %3388 = vmatprep.subr.bf16.mxu0 0
        %3389 = vmatpush1.bf16.msra.mxu0 0
        %3390 = vmatprep.subr.bf16.mxu0 0
        %3391 = vmatpush1.bf16.msra.mxu0 0
        %3392 = vmatprep.subr.bf16.mxu0 0
        %3393 = vmatpush1.bf16.msra.mxu0 0
        %3394 = vmatprep.subr.bf16.mxu0 0
        %3395 = vmatpush1.bf16.msra.mxu0 0
        %3396 = vmatprep.subr.bf16.mxu0 0
        %3397 = vmatpush1.bf16.msra.mxu0 0
        %3398 = vmatprep.subr.bf16.mxu0 0
        %3399 = vmatpush1.bf16.msra.mxu0 0
        %3400 = vmatprep.subr.bf16.mxu0 0
        %3401 = vmatpush1.bf16.msra.mxu0 0
        %3402 = vmatprep.subr.bf16.mxu0 0
        %3403 = vmatpush1.bf16.msra.mxu0 0
        %3404 = vmatprep.subr.bf16.mxu0 0
        %3405 = vmatpush1.bf16.msra.mxu0 0
        %3406 = vmatprep.subr.bf16.mxu0 0
        %3407 = vmatpush1.bf16.msra.mxu0 0
        %3408 = vmatprep.subr.bf16.mxu0 0
        %3409 = vmatpush1.bf16.msra.mxu0 0
        %3410 = vmatprep.subr.bf16.mxu0 0
        %3411 = vmatpush1.bf16.msra.mxu0 0
        %3412 = vmatprep.subr.bf16.mxu0 0
        %3413 = vmatpush1.bf16.msra.mxu0 0
        %3414 = vmatprep.subr.bf16.mxu0 0
        %3415 = vmatpush1.bf16.msra.mxu0 0
        %3416 = vmatprep.subr.bf16.mxu0 0
        %3417 = vmatpush1.bf16.msra.mxu0 0
        %3418 = vmatprep.mubr.bf16.mxu0 0
        %3419 = vmatmul.mubr.bf16.gmra.mrb[0].mxu0 %v3381
        %v3420 = vpop.f32.mrb[0].mxu0
        %v3421 = vadd.f32 0.0, %v3420
        %v3422 = vpop.f32.mrb[0].mxu0
        %v3423 = vpop.f32.mrb[0].mxu0
        %v3424 = vpop.f32.mrb[0].mxu0
        %3425 = vdwg.mxu0
        %v3427 = vsel %vm424, %v3326, 0
        %v3430 = vsel %vm428, %v3325, 0
        %3432 = vmatprep.subr.bf16.mxu0 0
        %3433 = vmatpush1.bf16.msra.mxu0 %v3430
        %3434 = vmatprep.subr.bf16.mxu0 0
        %3435 = vmatpush1.bf16.msra.mxu0 0
        %3436 = vmatprep.subr.bf16.mxu0 0
        %3437 = vmatpush1.bf16.msra.mxu0 0
        %3438 = vmatprep.subr.bf16.mxu0 0
        %3439 = vmatpush1.bf16.msra.mxu0 0
        %3440 = vmatprep.subr.bf16.mxu0 0
        %3441 = vmatpush1.bf16.msra.mxu0 0
        %3442 = vmatprep.subr.bf16.mxu0 0
        %3443 = vmatpush1.bf16.msra.mxu0 0
        %3444 = vmatprep.subr.bf16.mxu0 0
        %3445 = vmatpush1.bf16.msra.mxu0 0
        %3446 = vmatprep.subr.bf16.mxu0 0
        %3447 = vmatpush1.bf16.msra.mxu0 0
        %3448 = vmatprep.subr.bf16.mxu0 0
        %3449 = vmatpush1.bf16.msra.mxu0 0
        %3450 = vmatprep.subr.bf16.mxu0 0
        %3451 = vmatpush1.bf16.msra.mxu0 0
        %3452 = vmatprep.subr.bf16.mxu0 0
        %3453 = vmatpush1.bf16.msra.mxu0 0
        %3454 = vmatprep.subr.bf16.mxu0 0
        %3455 = vmatpush1.bf16.msra.mxu0 0
        %3456 = vmatprep.subr.bf16.mxu0 0
        %3457 = vmatpush1.bf16.msra.mxu0 0
        %3458 = vmatprep.subr.bf16.mxu0 0
        %3459 = vmatpush1.bf16.msra.mxu0 0
        %3460 = vmatprep.subr.bf16.mxu0 0
        %3461 = vmatpush1.bf16.msra.mxu0 0
        %3462 = vmatprep.subr.bf16.mxu0 0
        %3463 = vmatpush1.bf16.msra.mxu0 0
        %3464 = vmatprep.mubr.bf16.mxu0 0
        %3465 = vmatmul.mubr.bf16.gmra.mrb[0].mxu0 %v3427
        %v3466 = vpop.f32.mrb[0].mxu0
        %v3467 = vadd.f32 %v3421, %v3466
        %v3468 = vpop.f32.mrb[0].mxu0
        %v3469 = vpop.f32.mrb[0].mxu0
        %v3470 = vpop.f32.mrb[0].mxu0
        %3471 = vdwg.mxu0
        %v3472 = vlaneseq
        %v3473 = vshrl.u32 %v3472, 7
        %v3474 = vsub.s32 2, %v3473
        %v3475 = vrot.slane %v281, %v3474
        %vm3476 = vcmp.eq.s32.totalorder %v284, %v3475
        %vm3477 = vcmp.eq.s32.totalorder %v285, %v3475
        %v3478 = vsel %vm3476, 1, 0
        %v3479 = vsel %vm3477, 1, 0
        %v3480 = vcvt.s32.f32 %v3478
        %v3481 = vcvt.s32.f32 %v3479
        %v3482 = vpack.c.bf16 %v3481, %v3480
        %3483 = vmatprep.subr.bf16.mxu0 0
        %3484 = vmatpush1.bf16.msra.mxu0 %v3482
        %3485 = vmatprep.subr.bf16.mxu0 0
        %3486 = vmatpush1.bf16.msra.mxu0 0
        %3487 = vmatprep.subr.bf16.mxu0 0
        %3488 = vmatpush1.bf16.msra.mxu0 0
        %3489 = vmatprep.subr.bf16.mxu0 0
        %3490 = vmatpush1.bf16.msra.mxu0 0
        %3491 = vmatprep.subr.bf16.mxu0 0
        %3492 = vmatpush1.bf16.msra.mxu0 0
        %3493 = vmatprep.subr.bf16.mxu0 0
        %3494 = vmatpush1.bf16.msra.mxu0 0
        %3495 = vmatprep.subr.bf16.mxu0 0
        %3496 = vmatpush1.bf16.msra.mxu0 0
        %3497 = vmatprep.subr.bf16.mxu0 0
        %3498 = vmatpush1.bf16.msra.mxu0 0
        %3499 = vmatprep.subr.bf16.mxu0 0
        %3500 = vmatpush1.bf16.msra.mxu0 0
        %3501 = vmatprep.subr.bf16.mxu0 0
        %3502 = vmatpush1.bf16.msra.mxu0 0
        %3503 = vmatprep.subr.bf16.mxu0 0
        %3504 = vmatpush1.bf16.msra.mxu0 0
        %3505 = vmatprep.subr.bf16.mxu0 0
        %3506 = vmatpush1.bf16.msra.mxu0 0
        %3507 = vmatprep.subr.bf16.mxu0 0
        %3508 = vmatpush1.bf16.msra.mxu0 0
        %3509 = vmatprep.subr.bf16.mxu0 0
        %3510 = vmatpush1.bf16.msra.mxu0 0
        %3511 = vmatprep.subr.bf16.mxu0 0
        %3512 = vmatpush1.bf16.msra.mxu0 0
        %3513 = vmatprep.subr.bf16.mxu0 0
        %3514 = vmatpush1.bf16.msra.mxu0 0
        %3515 = vmatprep.mubr.bf16.mxu0 0
        %3516 = vmatmul.mubr.bf16.gmra.mrb[0].mxu0 %v3283
        %v3517 = vpop.f32.mrb[0].mxu0
        %v3518 = vadd.f32 0.0, %v3517
        %v3519 = vpop.f32.mrb[0].mxu0
        %v3520 = vpop.f32.mrb[0].mxu0
        %v3521 = vpop.f32.mrb[0].mxu0
        %3522 = vdwg.mxu0
        %v3523 = vpack.c.bf16 %v3518, %v3518
        %v3524 = vld [vmem:[%s570] sm:$0xf]
        %v3526 = vsel %vm424, %v3524, 0
        %v3529 = vsel %vm428, %v3523, 0
        %3531 = vmatprep.subr.bf16.mxu0 0
        %3532 = vmatpush1.bf16.msra.mxu0 %v3529
        %3533 = vmatprep.subr.bf16.mxu0 0
        %3534 = vmatpush1.bf16.msra.mxu0 0
        %3535 = vmatprep.subr.bf16.mxu0 0
        %3536 = vmatpush1.bf16.msra.mxu0 0
        %3537 = vmatprep.subr.bf16.mxu0 0
        %3538 = vmatpush1.bf16.msra.mxu0 0
        %3539 = vmatprep.subr.bf16.mxu0 0
        %3540 = vmatpush1.bf16.msra.mxu0 0
        %3541 = vmatprep.subr.bf16.mxu0 0
        %3542 = vmatpush1.bf16.msra.mxu0 0
        %3543 = vmatprep.subr.bf16.mxu0 0
        %3544 = vmatpush1.bf16.msra.mxu0 0
        %3545 = vmatprep.subr.bf16.mxu0 0
        %3546 = vmatpush1.bf16.msra.mxu0 0
        %3547 = vmatprep.subr.bf16.mxu0 0
        %3548 = vmatpush1.bf16.msra.mxu0 0
        %3549 = vmatprep.subr.bf16.mxu0 0
        %3550 = vmatpush1.bf16.msra.mxu0 0
        %3551 = vmatprep.subr.bf16.mxu0 0
        %3552 = vmatpush1.bf16.msra.mxu0 0
        %3553 = vmatprep.subr.bf16.mxu0 0
        %3554 = vmatpush1.bf16.msra.mxu0 0
        %3555 = vmatprep.subr.bf16.mxu0 0
        %3556 = vmatpush1.bf16.msra.mxu0 0
        %3557 = vmatprep.subr.bf16.mxu0 0
        %3558 = vmatpush1.bf16.msra.mxu0 0
        %3559 = vmatprep.subr.bf16.mxu0 0
        %3560 = vmatpush1.bf16.msra.mxu0 0
        %3561 = vmatprep.subr.bf16.mxu0 0
        %3562 = vmatpush1.bf16.msra.mxu0 0
        %3563 = vmatprep.mubr.bf16.mxu0 0
        %3564 = vmatmul.mubr.bf16.gmra.mrb[0].mxu0 %v3526
        %v3565 = vpop.f32.mrb[0].mxu0
        %v3566 = vadd.f32 0.0, %v3565
        %v3567 = vpop.f32.mrb[0].mxu0
        %v3568 = vpop.f32.mrb[0].mxu0
        %v3569 = vpop.f32.mrb[0].mxu0
        %3570 = vdwg.mxu0
        %v3571 = vadd.f32 %v3467, %v3566
        %v3572 = vlaneseq
        %v3573 = vshrl.u32 %v3572, 7
        %v3574 = vsub.s32 3, %v3573
        %v3575 = vrot.slane %v281, %v3574
        %vm3576 = vcmp.eq.s32.totalorder %v284, %v3575
        %vm3577 = vcmp.eq.s32.totalorder %v285, %v3575
        %v3578 = vsel %vm3576, 1, 0
        %v3579 = vsel %vm3577, 1, 0
        %v3580 = vcvt.s32.f32 %v3578
        %v3581 = vcvt.s32.f32 %v3579
        %v3582 = vpack.c.bf16 %v3581, %v3580
        %3583 = vmatprep.subr.bf16.mxu0 0
        %3584 = vmatpush1.bf16.msra.mxu0 %v3582
        %3585 = vmatprep.subr.bf16.mxu0 0
        %3586 = vmatpush1.bf16.msra.mxu0 0
        %3587 = vmatprep.subr.bf16.mxu0 0
        %3588 = vmatpush1.bf16.msra.mxu0 0
        %3589 = vmatprep.subr.bf16.mxu0 0
        %3590 = vmatpush1.bf16.msra.mxu0 0
        %3591 = vmatprep.subr.bf16.mxu0 0
        %3592 = vmatpush1.bf16.msra.mxu0 0
        %3593 = vmatprep.subr.bf16.mxu0 0
        %3594 = vmatpush1.bf16.msra.mxu0 0
        %3595 = vmatprep.subr.bf16.mxu0 0
        %3596 = vmatpush1.bf16.msra.mxu0 0
        %3597 = vmatprep.subr.bf16.mxu0 0
        %3598 = vmatpush1.bf16.msra.mxu0 0
        %3599 = vmatprep.subr.bf16.mxu0 0
        %3600 = vmatpush1.bf16.msra.mxu0 0
        %3601 = vmatprep.subr.bf16.mxu0 0
        %3602 = vmatpush1.bf16.msra.mxu0 0
        %3603 = vmatprep.subr.bf16.mxu0 0
        %3604 = vmatpush1.bf16.msra.mxu0 0
        %3605 = vmatprep.subr.bf16.mxu0 0
        %3606 = vmatpush1.bf16.msra.mxu0 0
        %3607 = vmatprep.subr.bf16.mxu0 0
        %3608 = vmatpush1.bf16.msra.mxu0 0
        %3609 = vmatprep.subr.bf16.mxu0 0
        %3610 = vmatpush1.bf16.msra.mxu0 0
        %3611 = vmatprep.subr.bf16.mxu0 0
        %3612 = vmatpush1.bf16.msra.mxu0 0
        %3613 = vmatprep.subr.bf16.mxu0 0
        %3614 = vmatpush1.bf16.msra.mxu0 0
        %3615 = vmatprep.mubr.bf16.mxu0 0
        %3616 = vmatmul.mubr.bf16.gmra.mrb[0].mxu0 %v3283
        %v3617 = vpop.f32.mrb[0].mxu0
        %v3618 = vadd.f32 0.0, %v3617
        %v3619 = vpop.f32.mrb[0].mxu0
        %v3620 = vpop.f32.mrb[0].mxu0
        %v3621 = vpop.f32.mrb[0].mxu0
        %3622 = vdwg.mxu0
        %v3623 = vpack.c.bf16 %v3618, %v3618
        %v3624 = vld [vmem:[%s671] sm:$0xf]
        %v3626 = vsel %vm424, %v3624, 0
        %v3629 = vsel %vm428, %v3623, 0
        %3631 = vmatprep.subr.bf16.mxu0 0
        %3632 = vmatpush1.bf16.msra.mxu0 %v3629
        %3633 = vmatprep.subr.bf16.mxu0 0
        %3634 = vmatpush1.bf16.msra.mxu0 0
        %3635 = vmatprep.subr.bf16.mxu0 0
        %3636 = vmatpush1.bf16.msra.mxu0 0
        %3637 = vmatprep.subr.bf16.mxu0 0
        %3638 = vmatpush1.bf16.msra.mxu0 0
        %3639 = vmatprep.subr.bf16.mxu0 0
        %3640 = vmatpush1.bf16.msra.mxu0 0
        %3641 = vmatprep.subr.bf16.mxu0 0
        %3642 = vmatpush1.bf16.msra.mxu0 0
        %3643 = vmatprep.subr.bf16.mxu0 0
        %3644 = vmatpush1.bf16.msra.mxu0 0
        %3645 = vmatprep.subr.bf16.mxu0 0
        %3646 = vmatpush1.bf16.msra.mxu0 0
        %3647 = vmatprep.subr.bf16.mxu0 0
        %3648 = vmatpush1.bf16.msra.mxu0 0
        %3649 = vmatprep.subr.bf16.mxu0 0
        %3650 = vmatpush1.bf16.msra.mxu0 0
        %3651 = vmatprep.subr.bf16.mxu0 0
        %3652 = vmatpush1.bf16.msra.mxu0 0
        %3653 = vmatprep.subr.bf16.mxu0 0
        %3654 = vmatpush1.bf16.msra.mxu0 0
        %3655 = vmatprep.subr.bf16.mxu0 0
        %3656 = vmatpush1.bf16.msra.mxu0 0
        %3657 = vmatprep.subr.bf16.mxu0 0
        %3658 = vmatpush1.bf16.msra.mxu0 0
        %3659 = vmatprep.subr.bf16.mxu0 0
        %3660 = vmatpush1.bf16.msra.mxu0 0
        %3661 = vmatprep.subr.bf16.mxu0 0
        %3662 = vmatpush1.bf16.msra.mxu0 0
        %3663 = vmatprep.mubr.bf16.mxu0 0
        %3664 = vmatmul.mubr.bf16.gmra.mrb[0].mxu0 %v3626
        %v3665 = vpop.f32.mrb[0].mxu0
        %v3666 = vadd.f32 0.0, %v3665
        %v3667 = vpop.f32.mrb[0].mxu0
        %v3668 = vpop.f32.mrb[0].mxu0
        %v3669 = vpop.f32.mrb[0].mxu0
        %3670 = vdwg.mxu0
        %v3671 = vadd.f32 %v3571, %v3666
        %v3672 = vadd.f32 %v3671, %v723
        %v3674 = vcombine.high %v3672, %v3672
        %v3676 = vunpack.c.l.s4 1966171168
        %v3677 = vunpack.c.0.s8 %v3676
        %v3678 = vlaneseq
        %v3679 = vshrl.u32 %v3678, 7
        %v3680 = vsub.s32 %v3677, %v3679
        %v3681 = vrot.slane %v3672, %v3680
        %v3683 = vunpack.c.l.s4 1966171168
        %v3684 = vunpack.c.0.s8 %v3683
        %v3685 = vlaneseq
        %v3686 = vshrl.u32 %v3685, 7
        %v3687 = vsub.s32 %v3684, %v3686
        %v3688 = vrot.slane %v3674, %v3687
        %v3689 = vcombine.high %v3681, %v3681
        %v3690 = vcombine.high %v3688, %v3688
        %v3692 = vunpack.c.l.s4 1966171168
        %v3693 = vunpack.c.0.s8 %v3692
        %v3694 = vlaneseq
        %v3695 = vshrl.u32 %v3694, 7
        %v3696 = vsub.s32 %v3693, %v3695
        %v3697 = vrot.slane %v3681, %v3696
        %v3699 = vunpack.c.l.s4 1966171168
        %v3700 = vunpack.c.0.s8 %v3699
        %v3701 = vlaneseq
        %v3702 = vshrl.u32 %v3701, 7
        %v3703 = vsub.s32 %v3700, %v3702
        %v3704 = vrot.slane %v3688, %v3703
        %v3706 = vunpack.c.l.s4 1966171168
        %v3707 = vunpack.c.0.s8 %v3706
        %v3708 = vlaneseq
        %v3709 = vshrl.u32 %v3708, 7
        %v3710 = vsub.s32 %v3707, %v3709
        %v3711 = vrot.slane %v3689, %v3710
        %v3713 = vunpack.c.l.s4 1966171168
        %v3714 = vunpack.c.0.s8 %v3713
        %v3715 = vlaneseq
        %v3716 = vshrl.u32 %v3715, 7
        %v3717 = vsub.s32 %v3714, %v3716
        %v3718 = vrot.slane %v3690, %v3717
        %v3719 = vcombine.high %v3697, %v3697
        %v3720 = vcombine.high %v3704, %v3704
        %v3721 = vcombine.high %v3711, %v3711
        %v3722 = vcombine.high %v3718, %v3718
        %3731 = vst.msk [vmem:[%s272 + $0x6] sm:$0x1] %vm784, %v3697
        %3732 = vst.msk [vmem:[%s272 + $0xe] sm:$0x1] %vm784, %v3711
        %3733 = vst.msk [vmem:[%s272 + $0x16] sm:$0x1] %vm784, %v3719
        %3734 = vst.msk [vmem:[%s272 + $0x1e] sm:$0x1] %vm784, %v3721
        %3735 = vst.msk [vmem:[%s272 + $0x26] sm:$0x1] %vm784, %v3704
        %3736 = vst.msk [vmem:[%s272 + $0x2e] sm:$0x1] %vm784, %v3718
        %3737 = vst.msk [vmem:[%s272 + $0x36] sm:$0x1] %vm784, %v3720
        %3738 = vst.msk [vmem:[%s272 + $0x3e] sm:$0x1] %vm784, %v3722
        %v3739 = vld [vmem:[%s234 + $0x7] sm:$0x1]
        %v3740 = vld [vmem:[%s234 + $0xf] sm:$0x1]
        %v3741 = vld [vmem:[%s234 + $0x17] sm:$0x1]
        %v3742 = vld [vmem:[%s234 + $0x1f] sm:$0x1]
        %v3743 = vpack.c.bf16 %v3739, %v3739
        %v3744 = vpack.c.bf16 %v3740, %v3740
        %v3745 = vpack.c.bf16 %v3741, %v3741
        %v3746 = vpack.c.bf16 %v3742, %v3742
        %v3747 = vlaneseq
        %v3748 = vshrl.u32 %v3747, 7
        %v3749 = vsub.s32 0, %v3748
        %v3750 = vrot.slane %v282, %v3749
        %vm3751 = vcmp.eq.s32.totalorder %v284, %v3750
        %vm3752 = vcmp.eq.s32.totalorder %v285, %v3750
        %v3753 = vsel %vm3751, 1, 0
        %v3754 = vsel %vm3752, 1, 0
        %v3755 = vcvt.s32.f32 %v3753
        %v3756 = vcvt.s32.f32 %v3754
        %v3757 = vpack.c.bf16 %v3756, %v3755
        %v3762 = vunpack.c.l.b16 %v3743
        %v3763 = vunpack.c.l.b16 %v3744
        %v3764 = vunpack.c.l.b16 %v3745
        %v3765 = vunpack.c.l.b16 %v3746
        %v3766 = vrot.slane %v3763, 7
        %v3767 = vsel %vm315, %v3766, %v3762
        %v3768 = vrot.slane %v3764, 6
        %v3769 = vsel %vm318, %v3768, %v3767
        %v3770 = vrot.slane %v3765, 5
        %v3771 = vsel %vm321, %v3770, %v3769
        %v3772 = vpack.c.b16 %v3771, %v3771
        %v3774 = vsel %vm324, %v3772, 0
        %3776 = vmatprep.subr.bf16.mxu0 0
        %3777 = vmatpush1.bf16.msra.mxu0 %v3757
        %3778 = vmatprep.subr.bf16.mxu0 0
        %3779 = vmatpush1.bf16.msra.mxu0 0
        %3780 = vmatprep.subr.bf16.mxu0 0
        %3781 = vmatpush1.bf16.msra.mxu0 0
        %3782 = vmatprep.subr.bf16.mxu0 0
        %3783 = vmatpush1.bf16.msra.mxu0 0
        %3784 = vmatprep.subr.bf16.mxu0 0
        %3785 = vmatpush1.bf16.msra.mxu0 0
        %3786 = vmatprep.subr.bf16.mxu0 0
        %3787 = vmatpush1.bf16.msra.mxu0 0
        %3788 = vmatprep.subr.bf16.mxu0 0
        %3789 = vmatpush1.bf16.msra.mxu0 0
        %3790 = vmatprep.subr.bf16.mxu0 0
        %3791 = vmatpush1.bf16.msra.mxu0 0
        %3792 = vmatprep.subr.bf16.mxu0 0
        %3793 = vmatpush1.bf16.msra.mxu0 0
        %3794 = vmatprep.subr.bf16.mxu0 0
        %3795 = vmatpush1.bf16.msra.mxu0 0
        %3796 = vmatprep.subr.bf16.mxu0 0
        %3797 = vmatpush1.bf16.msra.mxu0 0
        %3798 = vmatprep.subr.bf16.mxu0 0
        %3799 = vmatpush1.bf16.msra.mxu0 0
        %3800 = vmatprep.subr.bf16.mxu0 0
        %3801 = vmatpush1.bf16.msra.mxu0 0
        %3802 = vmatprep.subr.bf16.mxu0 0
        %3803 = vmatpush1.bf16.msra.mxu0 0
        %3804 = vmatprep.subr.bf16.mxu0 0
        %3805 = vmatpush1.bf16.msra.mxu0 0
        %3806 = vmatprep.subr.bf16.mxu0 0
        %3807 = vmatpush1.bf16.msra.mxu0 0
        %3808 = vmatprep.mubr.bf16.mxu0 0
        %3809 = vmatmul.mubr.bf16.gmra.mrb[0].mxu0 %v3774
        %v3810 = vpop.f32.mrb[0].mxu0
        %v3811 = vadd.f32 0.0, %v3810
        %v3812 = vpop.f32.mrb[0].mxu0
        %v3813 = vpop.f32.mrb[0].mxu0
        %v3814 = vpop.f32.mrb[0].mxu0
        %3815 = vdwg.mxu0
        %v3816 = vpack.c.bf16 %v3811, %v3811
        %v3817 = vld [vmem:[%s2] sm:$0xf]
        %v3818 = vlaneseq
        %v3819 = vshrl.u32 %v3818, 7
        %v3820 = vsub.s32 1, %v3819
        %v3821 = vrot.slane %v282, %v3820
        %vm3822 = vcmp.eq.s32.totalorder %v284, %v3821
        %vm3823 = vcmp.eq.s32.totalorder %v285, %v3821
        %v3824 = vsel %vm3822, 1, 0
        %v3825 = vsel %vm3823, 1, 0
        %v3826 = vcvt.s32.f32 %v3824
        %v3827 = vcvt.s32.f32 %v3825
        %v3828 = vpack.c.bf16 %v3827, %v3826
        %3829 = vmatprep.subr.bf16.mxu0 0
        %3830 = vmatpush1.bf16.msra.mxu0 %v3828
        %3831 = vmatprep.subr.bf16.mxu0 0
        %3832 = vmatpush1.bf16.msra.mxu0 0
        %3833 = vmatprep.subr.bf16.mxu0 0
        %3834 = vmatpush1.bf16.msra.mxu0 0
        %3835 = vmatprep.subr.bf16.mxu0 0
        %3836 = vmatpush1.bf16.msra.mxu0 0
        %3837 = vmatprep.subr.bf16.mxu0 0
        %3838 = vmatpush1.bf16.msra.mxu0 0
        %3839 = vmatprep.subr.bf16.mxu0 0
        %3840 = vmatpush1.bf16.msra.mxu0 0
        %3841 = vmatprep.subr.bf16.mxu0 0
        %3842 = vmatpush1.bf16.msra.mxu0 0
        %3843 = vmatprep.subr.bf16.mxu0 0
        %3844 = vmatpush1.bf16.msra.mxu0 0
        %3845 = vmatprep.subr.bf16.mxu0 0
        %3846 = vmatpush1.bf16.msra.mxu0 0
        %3847 = vmatprep.subr.bf16.mxu0 0
        %3848 = vmatpush1.bf16.msra.mxu0 0
        %3849 = vmatprep.subr.bf16.mxu0 0
        %3850 = vmatpush1.bf16.msra.mxu0 0
        %3851 = vmatprep.subr.bf16.mxu0 0
        %3852 = vmatpush1.bf16.msra.mxu0 0
        %3853 = vmatprep.subr.bf16.mxu0 0
        %3854 = vmatpush1.bf16.msra.mxu0 0
        %3855 = vmatprep.subr.bf16.mxu0 0
        %3856 = vmatpush1.bf16.msra.mxu0 0
        %3857 = vmatprep.subr.bf16.mxu0 0
        %3858 = vmatpush1.bf16.msra.mxu0 0
        %3859 = vmatprep.subr.bf16.mxu0 0
        %3860 = vmatpush1.bf16.msra.mxu0 0
        %3861 = vmatprep.mubr.bf16.mxu0 0
        %3862 = vmatmul.mubr.bf16.gmra.mrb[0].mxu0 %v3774
        %v3863 = vpop.f32.mrb[0].mxu0
        %v3864 = vadd.f32 0.0, %v3863
        %v3865 = vpop.f32.mrb[0].mxu0
        %v3866 = vpop.f32.mrb[0].mxu0
        %v3867 = vpop.f32.mrb[0].mxu0
        %3868 = vdwg.mxu0
        %v3869 = vpack.c.bf16 %v3864, %v3864
        %v3870 = vld [vmem:[%s422] sm:$0xf]
        %v3872 = vsel %vm424, %v3870, 0
        %v3875 = vsel %vm428, %v3869, 0
        %3877 = vmatprep.subr.bf16.mxu0 0
        %3878 = vmatpush1.bf16.msra.mxu0 %v3875
        %3879 = vmatprep.subr.bf16.mxu0 0
        %3880 = vmatpush1.bf16.msra.mxu0 0
        %3881 = vmatprep.subr.bf16.mxu0 0
        %3882 = vmatpush1.bf16.msra.mxu0 0
        %3883 = vmatprep.subr.bf16.mxu0 0
        %3884 = vmatpush1.bf16.msra.mxu0 0
        %3885 = vmatprep.subr.bf16.mxu0 0
        %3886 = vmatpush1.bf16.msra.mxu0 0
        %3887 = vmatprep.subr.bf16.mxu0 0
        %3888 = vmatpush1.bf16.msra.mxu0 0
        %3889 = vmatprep.subr.bf16.mxu0 0
        %3890 = vmatpush1.bf16.msra.mxu0 0
        %3891 = vmatprep.subr.bf16.mxu0 0
        %3892 = vmatpush1.bf16.msra.mxu0 0
        %3893 = vmatprep.subr.bf16.mxu0 0
        %3894 = vmatpush1.bf16.msra.mxu0 0
        %3895 = vmatprep.subr.bf16.mxu0 0
        %3896 = vmatpush1.bf16.msra.mxu0 0
        %3897 = vmatprep.subr.bf16.mxu0 0
        %3898 = vmatpush1.bf16.msra.mxu0 0
        %3899 = vmatprep.subr.bf16.mxu0 0
        %3900 = vmatpush1.bf16.msra.mxu0 0
        %3901 = vmatprep.subr.bf16.mxu0 0
        %3902 = vmatpush1.bf16.msra.mxu0 0
        %3903 = vmatprep.subr.bf16.mxu0 0
        %3904 = vmatpush1.bf16.msra.mxu0 0
        %3905 = vmatprep.subr.bf16.mxu0 0
        %3906 = vmatpush1.bf16.msra.mxu0 0
        %3907 = vmatprep.subr.bf16.mxu0 0
        %3908 = vmatpush1.bf16.msra.mxu0 0
        %3909 = vmatprep.mubr.bf16.mxu0 0
        %3910 = vmatmul.mubr.bf16.gmra.mrb[0].mxu0 %v3872
        %v3911 = vpop.f32.mrb[0].mxu0
        %v3912 = vadd.f32 0.0, %v3911
        %v3913 = vpop.f32.mrb[0].mxu0
        %v3914 = vpop.f32.mrb[0].mxu0
        %v3915 = vpop.f32.mrb[0].mxu0
        %3916 = vdwg.mxu0
        %v3918 = vsel %vm424, %v3817, 0
        %v3921 = vsel %vm428, %v3816, 0
        %3923 = vmatprep.subr.bf16.mxu0 0
        %3924 = vmatpush1.bf16.msra.mxu0 %v3921
        %3925 = vmatprep.subr.bf16.mxu0 0
        %3926 = vmatpush1.bf16.msra.mxu0 0
        %3927 = vmatprep.subr.bf16.mxu0 0
        %3928 = vmatpush1.bf16.msra.mxu0 0
        %3929 = vmatprep.subr.bf16.mxu0 0
        %3930 = vmatpush1.bf16.msra.mxu0 0
        %3931 = vmatprep.subr.bf16.mxu0 0
        %3932 = vmatpush1.bf16.msra.mxu0 0
        %3933 = vmatprep.subr.bf16.mxu0 0
        %3934 = vmatpush1.bf16.msra.mxu0 0
        %3935 = vmatprep.subr.bf16.mxu0 0
        %3936 = vmatpush1.bf16.msra.mxu0 0
        %3937 = vmatprep.subr.bf16.mxu0 0
        %3938 = vmatpush1.bf16.msra.mxu0 0
        %3939 = vmatprep.subr.bf16.mxu0 0
        %3940 = vmatpush1.bf16.msra.mxu0 0
        %3941 = vmatprep.subr.bf16.mxu0 0
        %3942 = vmatpush1.bf16.msra.mxu0 0
        %3943 = vmatprep.subr.bf16.mxu0 0
        %3944 = vmatpush1.bf16.msra.mxu0 0
        %3945 = vmatprep.subr.bf16.mxu0 0
        %3946 = vmatpush1.bf16.msra.mxu0 0
        %3947 = vmatprep.subr.bf16.mxu0 0
        %3948 = vmatpush1.bf16.msra.mxu0 0
        %3949 = vmatprep.subr.bf16.mxu0 0
        %3950 = vmatpush1.bf16.msra.mxu0 0
        %3951 = vmatprep.subr.bf16.mxu0 0
        %3952 = vmatpush1.bf16.msra.mxu0 0
        %3953 = vmatprep.subr.bf16.mxu0 0
        %3954 = vmatpush1.bf16.msra.mxu0 0
        %3955 = vmatprep.mubr.bf16.mxu0 0
        %3956 = vmatmul.mubr.bf16.gmra.mrb[0].mxu0 %v3918
        %v3957 = vpop.f32.mrb[0].mxu0
        %v3958 = vadd.f32 %v3912, %v3957
        %v3959 = vpop.f32.mrb[0].mxu0
        %v3960 = vpop.f32.mrb[0].mxu0
        %v3961 = vpop.f32.mrb[0].mxu0
        %3962 = vdwg.mxu0
        %v3963 = vlaneseq
        %v3964 = vshrl.u32 %v3963, 7
        %v3965 = vsub.s32 2, %v3964
        %v3966 = vrot.slane %v282, %v3965
        %vm3967 = vcmp.eq.s32.totalorder %v284, %v3966
        %vm3968 = vcmp.eq.s32.totalorder %v285, %v3966
        %v3969 = vsel %vm3967, 1, 0
        %v3970 = vsel %vm3968, 1, 0
        %v3971 = vcvt.s32.f32 %v3969
        %v3972 = vcvt.s32.f32 %v3970
        %v3973 = vpack.c.bf16 %v3972, %v3971
        %3974 = vmatprep.subr.bf16.mxu0 0
        %3975 = vmatpush1.bf16.msra.mxu0 %v3973
        %3976 = vmatprep.subr.bf16.mxu0 0
        %3977 = vmatpush1.bf16.msra.mxu0 0
        %3978 = vmatprep.subr.bf16.mxu0 0
        %3979 = vmatpush1.bf16.msra.mxu0 0
        %3980 = vmatprep.subr.bf16.mxu0 0
        %3981 = vmatpush1.bf16.msra.mxu0 0
        %3982 = vmatprep.subr.bf16.mxu0 0
        %3983 = vmatpush1.bf16.msra.mxu0 0
        %3984 = vmatprep.subr.bf16.mxu0 0
        %3985 = vmatpush1.bf16.msra.mxu0 0
        %3986 = vmatprep.subr.bf16.mxu0 0
        %3987 = vmatpush1.bf16.msra.mxu0 0
        %3988 = vmatprep.subr.bf16.mxu0 0
        %3989 = vmatpush1.bf16.msra.mxu0 0
        %3990 = vmatprep.subr.bf16.mxu0 0
        %3991 = vmatpush1.bf16.msra.mxu0 0
        %3992 = vmatprep.subr.bf16.mxu0 0
        %3993 = vmatpush1.bf16.msra.mxu0 0
        %3994 = vmatprep.subr.bf16.mxu0 0
        %3995 = vmatpush1.bf16.msra.mxu0 0
        %3996 = vmatprep.subr.bf16.mxu0 0
        %3997 = vmatpush1.bf16.msra.mxu0 0
        %3998 = vmatprep.subr.bf16.mxu0 0
        %3999 = vmatpush1.bf16.msra.mxu0 0
        %4000 = vmatprep.subr.bf16.mxu0 0
        %4001 = vmatpush1.bf16.msra.mxu0 0
        %4002 = vmatprep.subr.bf16.mxu0 0
        %4003 = vmatpush1.bf16.msra.mxu0 0
        %4004 = vmatprep.subr.bf16.mxu0 0
        %4005 = vmatpush1.bf16.msra.mxu0 0
        %4006 = vmatprep.mubr.bf16.mxu0 0
        %4007 = vmatmul.mubr.bf16.gmra.mrb[0].mxu0 %v3774
        %v4008 = vpop.f32.mrb[0].mxu0
        %v4009 = vadd.f32 0.0, %v4008
        %v4010 = vpop.f32.mrb[0].mxu0
        %v4011 = vpop.f32.mrb[0].mxu0
        %v4012 = vpop.f32.mrb[0].mxu0
        %4013 = vdwg.mxu0
        %v4014 = vpack.c.bf16 %v4009, %v4009
        %v4015 = vld [vmem:[%s570] sm:$0xf]
        %v4017 = vsel %vm424, %v4015, 0
        %v4020 = vsel %vm428, %v4014, 0
        %4022 = vmatprep.subr.bf16.mxu0 0
        %4023 = vmatpush1.bf16.msra.mxu0 %v4020
        %4024 = vmatprep.subr.bf16.mxu0 0
        %4025 = vmatpush1.bf16.msra.mxu0 0
        %4026 = vmatprep.subr.bf16.mxu0 0
        %4027 = vmatpush1.bf16.msra.mxu0 0
        %4028 = vmatprep.subr.bf16.mxu0 0
        %4029 = vmatpush1.bf16.msra.mxu0 0
        %4030 = vmatprep.subr.bf16.mxu0 0
        %4031 = vmatpush1.bf16.msra.mxu0 0
        %4032 = vmatprep.subr.bf16.mxu0 0
        %4033 = vmatpush1.bf16.msra.mxu0 0
        %4034 = vmatprep.subr.bf16.mxu0 0
        %4035 = vmatpush1.bf16.msra.mxu0 0
        %4036 = vmatprep.subr.bf16.mxu0 0
        %4037 = vmatpush1.bf16.msra.mxu0 0
        %4038 = vmatprep.subr.bf16.mxu0 0
        %4039 = vmatpush1.bf16.msra.mxu0 0
        %4040 = vmatprep.subr.bf16.mxu0 0
        %4041 = vmatpush1.bf16.msra.mxu0 0
        %4042 = vmatprep.subr.bf16.mxu0 0
        %4043 = vmatpush1.bf16.msra.mxu0 0
        %4044 = vmatprep.subr.bf16.mxu0 0
        %4045 = vmatpush1.bf16.msra.mxu0 0
        %4046 = vmatprep.subr.bf16.mxu0 0
        %4047 = vmatpush1.bf16.msra.mxu0 0
        %4048 = vmatprep.subr.bf16.mxu0 0
        %4049 = vmatpush1.bf16.msra.mxu0 0
        %4050 = vmatprep.subr.bf16.mxu0 0
        %4051 = vmatpush1.bf16.msra.mxu0 0
        %4052 = vmatprep.subr.bf16.mxu0 0
        %4053 = vmatpush1.bf16.msra.mxu0 0
        %4054 = vmatprep.mubr.bf16.mxu0 0
        %4055 = vmatmul.mubr.bf16.gmra.mrb[0].mxu0 %v4017
        %v4056 = vpop.f32.mrb[0].mxu0
        %v4057 = vadd.f32 0.0, %v4056
        %v4058 = vpop.f32.mrb[0].mxu0
        %v4059 = vpop.f32.mrb[0].mxu0
        %v4060 = vpop.f32.mrb[0].mxu0
        %4061 = vdwg.mxu0
        %v4062 = vadd.f32 %v3958, %v4057
        %v4063 = vlaneseq
        %v4064 = vshrl.u32 %v4063, 7
        %v4065 = vsub.s32 3, %v4064
        %v4066 = vrot.slane %v282, %v4065
        %vm4067 = vcmp.eq.s32.totalorder %v284, %v4066
        %vm4068 = vcmp.eq.s32.totalorder %v285, %v4066
        %v4069 = vsel %vm4067, 1, 0
        %v4070 = vsel %vm4068, 1, 0
        %v4071 = vcvt.s32.f32 %v4069
        %v4072 = vcvt.s32.f32 %v4070
        %v4073 = vpack.c.bf16 %v4072, %v4071
        %4074 = vmatprep.subr.bf16.mxu0 0
        %4075 = vmatpush1.bf16.msra.mxu0 %v4073
        %4076 = vmatprep.subr.bf16.mxu0 0
        %4077 = vmatpush1.bf16.msra.mxu0 0
        %4078 = vmatprep.subr.bf16.mxu0 0
        %4079 = vmatpush1.bf16.msra.mxu0 0
        %4080 = vmatprep.subr.bf16.mxu0 0
        %4081 = vmatpush1.bf16.msra.mxu0 0
        %4082 = vmatprep.subr.bf16.mxu0 0
        %4083 = vmatpush1.bf16.msra.mxu0 0
        %4084 = vmatprep.subr.bf16.mxu0 0
        %4085 = vmatpush1.bf16.msra.mxu0 0
        %4086 = vmatprep.subr.bf16.mxu0 0
        %4087 = vmatpush1.bf16.msra.mxu0 0
        %4088 = vmatprep.subr.bf16.mxu0 0
        %4089 = vmatpush1.bf16.msra.mxu0 0
        %4090 = vmatprep.subr.bf16.mxu0 0
        %4091 = vmatpush1.bf16.msra.mxu0 0
        %4092 = vmatprep.subr.bf16.mxu0 0
        %4093 = vmatpush1.bf16.msra.mxu0 0
        %4094 = vmatprep.subr.bf16.mxu0 0
        %4095 = vmatpush1.bf16.msra.mxu0 0
        %4096 = vmatprep.subr.bf16.mxu0 0
        %4097 = vmatpush1.bf16.msra.mxu0 0
        %4098 = vmatprep.subr.bf16.mxu0 0
        %4099 = vmatpush1.bf16.msra.mxu0 0
        %4100 = vmatprep.subr.bf16.mxu0 0
        %4101 = vmatpush1.bf16.msra.mxu0 0
        %4102 = vmatprep.subr.bf16.mxu0 0
        %4103 = vmatpush1.bf16.msra.mxu0 0
        %4104 = vmatprep.subr.bf16.mxu0 0
        %4105 = vmatpush1.bf16.msra.mxu0 0
        %4106 = vmatprep.mubr.bf16.mxu0 0
        %4107 = vmatmul.mubr.bf16.gmra.mrb[0].mxu0 %v3774
        %v4108 = vpop.f32.mrb[0].mxu0
        %v4109 = vadd.f32 0.0, %v4108
        %v4110 = vpop.f32.mrb[0].mxu0
        %v4111 = vpop.f32.mrb[0].mxu0
        %v4112 = vpop.f32.mrb[0].mxu0
        %4113 = vdwg.mxu0
        %v4114 = vpack.c.bf16 %v4109, %v4109
        %v4115 = vld [vmem:[%s671] sm:$0xf]
        %v4117 = vsel %vm424, %v4115, 0
        %v4120 = vsel %vm428, %v4114, 0
        %4122 = vmatprep.subr.bf16.mxu0 0
        %4123 = vmatpush1.bf16.msra.mxu0 %v4120
        %4124 = vmatprep.subr.bf16.mxu0 0
        %4125 = vmatpush1.bf16.msra.mxu0 0
        %4126 = vmatprep.subr.bf16.mxu0 0
        %4127 = vmatpush1.bf16.msra.mxu0 0
        %4128 = vmatprep.subr.bf16.mxu0 0
        %4129 = vmatpush1.bf16.msra.mxu0 0
        %4130 = vmatprep.subr.bf16.mxu0 0
        %4131 = vmatpush1.bf16.msra.mxu0 0
        %4132 = vmatprep.subr.bf16.mxu0 0
        %4133 = vmatpush1.bf16.msra.mxu0 0
        %4134 = vmatprep.subr.bf16.mxu0 0
        %4135 = vmatpush1.bf16.msra.mxu0 0
        %4136 = vmatprep.subr.bf16.mxu0 0
        %4137 = vmatpush1.bf16.msra.mxu0 0
        %4138 = vmatprep.subr.bf16.mxu0 0
        %4139 = vmatpush1.bf16.msra.mxu0 0
        %4140 = vmatprep.subr.bf16.mxu0 0
        %4141 = vmatpush1.bf16.msra.mxu0 0
        %4142 = vmatprep.subr.bf16.mxu0 0
        %4143 = vmatpush1.bf16.msra.mxu0 0
        %4144 = vmatprep.subr.bf16.mxu0 0
        %4145 = vmatpush1.bf16.msra.mxu0 0
        %4146 = vmatprep.subr.bf16.mxu0 0
        %4147 = vmatpush1.bf16.msra.mxu0 0
        %4148 = vmatprep.subr.bf16.mxu0 0
        %4149 = vmatpush1.bf16.msra.mxu0 0
        %4150 = vmatprep.subr.bf16.mxu0 0
        %4151 = vmatpush1.bf16.msra.mxu0 0
        %4152 = vmatprep.subr.bf16.mxu0 0
        %4153 = vmatpush1.bf16.msra.mxu0 0
        %4154 = vmatprep.mubr.bf16.mxu0 0
        %4155 = vmatmul.mubr.bf16.gmra.mrb[0].mxu0 %v4117
        %v4156 = vpop.f32.mrb[0].mxu0
        %v4157 = vadd.f32 0.0, %v4156
        %v4158 = vpop.f32.mrb[0].mxu0
        %v4159 = vpop.f32.mrb[0].mxu0
        %v4160 = vpop.f32.mrb[0].mxu0
        %4161 = vdwg.mxu0
        %v4162 = vadd.f32 %v4062, %v4157
        %v4163 = vadd.f32 %v4162, %v723
        %v4165 = vcombine.high %v4163, %v4163
        %v4167 = vunpack.c.l.s4 1966171168
        %v4168 = vunpack.c.0.s8 %v4167
        %v4169 = vlaneseq
        %v4170 = vshrl.u32 %v4169, 7
        %v4171 = vsub.s32 %v4168, %v4170
        %v4172 = vrot.slane %v4163, %v4171
        %v4174 = vunpack.c.l.s4 1966171168
        %v4175 = vunpack.c.0.s8 %v4174
        %v4176 = vlaneseq
        %v4177 = vshrl.u32 %v4176, 7
        %v4178 = vsub.s32 %v4175, %v4177
        %v4179 = vrot.slane %v4165, %v4178
        %v4180 = vcombine.high %v4172, %v4172
        %v4181 = vcombine.high %v4179, %v4179
        %v4183 = vunpack.c.l.s4 1966171168
        %v4184 = vunpack.c.0.s8 %v4183
        %v4185 = vlaneseq
        %v4186 = vshrl.u32 %v4185, 7
        %v4187 = vsub.s32 %v4184, %v4186
        %v4188 = vrot.slane %v4172, %v4187
        %v4190 = vunpack.c.l.s4 1966171168
        %v4191 = vunpack.c.0.s8 %v4190
        %v4192 = vlaneseq
        %v4193 = vshrl.u32 %v4192, 7
        %v4194 = vsub.s32 %v4191, %v4193
        %v4195 = vrot.slane %v4179, %v4194
        %v4197 = vunpack.c.l.s4 1966171168
        %v4198 = vunpack.c.0.s8 %v4197
        %v4199 = vlaneseq
        %v4200 = vshrl.u32 %v4199, 7
        %v4201 = vsub.s32 %v4198, %v4200
        %v4202 = vrot.slane %v4180, %v4201
        %v4204 = vunpack.c.l.s4 1966171168
        %v4205 = vunpack.c.0.s8 %v4204
        %v4206 = vlaneseq
        %v4207 = vshrl.u32 %v4206, 7
        %v4208 = vsub.s32 %v4205, %v4207
        %v4209 = vrot.slane %v4181, %v4208
        %v4210 = vcombine.high %v4188, %v4188
        %v4211 = vcombine.high %v4195, %v4195
        %v4212 = vcombine.high %v4202, %v4202
        %v4213 = vcombine.high %v4209, %v4209
        %4222 = vst.msk [vmem:[%s272 + $0x7] sm:$0x1] %vm784, %v4188
        %4223 = vst.msk [vmem:[%s272 + $0xf] sm:$0x1] %vm784, %v4202
        %4224 = vst.msk [vmem:[%s272 + $0x17] sm:$0x1] %vm784, %v4210
        %4225 = vst.msk [vmem:[%s272 + $0x1f] sm:$0x1] %vm784, %v4212
        %4226 = vst.msk [vmem:[%s272 + $0x27] sm:$0x1] %vm784, %v4195
        %4227 = vst.msk [vmem:[%s272 + $0x2f] sm:$0x1] %vm784, %v4209
        %4228 = vst.msk [vmem:[%s272 + $0x37] sm:$0x1] %vm784, %v4211
        %4229 = vst.msk [vmem:[%s272 + $0x3f] sm:$0x1] %vm784, %v4213
        %s4230 = sand.u32 %s142, 1
        %s4231 = scalar_lea.sflag [#allocation4], %s4230
        %s4232 = sand.u32 %s142, 1
        %s4233 = smul.addr %s4232, 64
        %s4234 = scalar_lea.vmem [#allocation7], %s4233
        // Predicated region
        $region45: #{tpu_custom_call.1} parent=35 // pred_check
          %p4235 = pneg %p152
        $region46: #{tpu_custom_call.1} parent=35 // pred_check_branch
          %4237 = sbr.rel (%p4235) target = $region48
        $region47: #{tpu_custom_call.1} parent=35 // pred_region
          %s4239 = ssub.s32 1024, 1024
          %4240 = vsyncadd %s4231, %s4239
          %s4241 = smul.addr %s28, 16
          %s4242 = sadd.s32 %s29, %s4241
          %s4243 = smul.addr %s4242, 128
          %s4244 = scalar_lea.hbm %s4, %s4243
          %s4245 = sshll.u32 %s4234, 4
          %s4246 = int_to_ptr.vmem [resolvable:$true] %s4245
          %4251 = dma.vmem_to_hbm [thread:$0]  %s4246, 1024, %s4244, %s4231, 128, 256, 8
        $region48: #{tpu_custom_call.1} parent=35 // pred_fallthru
          _
      $region36: #{tpu_custom_call.1} parent=5 // pred_fallthru
        _
      %p4252 = scmp.le.s32.totalorder 2, %s19
      // Predicated region
      $region49: #{tpu_custom_call.1} parent=5 // pred_check
        %p4253 = pneg %p4252
      $region50: #{tpu_custom_call.1} parent=5 // pred_check_branch
        %4255 = sbr.rel (%p4253) target = $region52
      $region51: #{tpu_custom_call.1} parent=5 // pred_region
        %s4256 = ssub.s32 %s19, 2
        // Predicated region
        $region53: #{tpu_custom_call.1} parent=51 // pred_check
          %p4257 = pneg %p158
        $region54: #{tpu_custom_call.1} parent=51 // pred_check_branch
          %4259 = sbr.rel (%p4257) target = $region56
        $region55: #{tpu_custom_call.1} parent=51 // pred_region
          %s4260 = sand.u32 %s143, 1
          %s4261 = scalar_lea.sflag [#allocation4], %s4260
          %s4262 = sand.u32 %s143, 1
          %s4263 = smul.addr %s4262, 64
          %s4264 = scalar_lea.vmem [#allocation7], %s4263
          %4265 = dma.done %s4261, 1024
        $region56: #{tpu_custom_call.1} parent=51 // pred_fallthru
          _
      $region52: #{tpu_custom_call.1} parent=5 // pred_fallthru
        _
    $region6: #{tpu_custom_call.1} parent=1 // loop_footer
      %s23 = sadd.s32 1, %s19
    $region7: #{tpu_custom_call.1} parent=1 // loop_footer_branch
      %18 = sbr.rel target = $region3
    $region8: #{tpu_custom_call.1} parent=1 // loop_exit
      _
    %4266 = vsyncpa [#allocation3], 1
    %s4267 = scalar_lea.sflag [#allocation3], 1
    %4268 = vsyncpa %s4267, 1
    %4269 = vsyncpa [#allocation6], 1
    %s4270 = scalar_lea.sflag [#allocation6], 1
    %4271 = vsyncpa %s4270, 1
    %4272 = vsyncpa [#allocation4], 1
    %s4273 = scalar_lea.sflag [#allocation4], 1
    %4274 = vsyncpa %s4273, 1

</llo_original>
